<compile_context>
chip_gen: v6e
topology: v6e:2x2x1
jax: 0.10.0
libtpu: 0.0.40
codegen_flags: <defaults>
</compile_context>

<pallas_src>
import functools

import jax
import jax.numpy as jnp
from jax.experimental import pallas as pl
from jax.experimental.pallas import tpu as pltpu

LANE = 128
SUBLANE = 8


def _round_up(n, m):
    return ((n + m - 1) // m) * m


def _pad2d(a, rows, cols):
    return jnp.pad(a, ((0, rows - a.shape[0]), (0, cols - a.shape[1])))


# ----------------------------------------------------------------------------
# Kernel math (shared by both kernels)
# ----------------------------------------------------------------------------
def _vae_compute(x, eps, w1, b1, wh, bh, w3, b3, w4, b4, mm_dtype):
    """Returns (x_recon_f32, [mu | logvar] f32 slab)."""
    lp = eps.shape[-1]                      # padded per-head latent width
    # Encoder: h = relu(x @ W1 + b1)        (MXU f32-accumulate, f32 epilogue)
    h = jnp.dot(x, w1, preferred_element_type=jnp.float32) + b1
    h = jnp.maximum(h, 0.0)
    # Fused mu/logvar head: one [Hp, 2*Lp] matmul, split at lane lp.
    s = jnp.dot(h.astype(mm_dtype), wh, preferred_element_type=jnp.float32) + bh
    mu = s[:, :lp]
    logvar = s[:, lp:]
    # Reparameterize: z = mu + eps * exp(0.5*logvar)     (VPU/EUP, all f32)
    z = mu + eps * jnp.exp(0.5 * logvar)
    # Decoder: x_recon = sigmoid(relu(z @ W3 + b3) @ W4 + b4)
    h2 = jnp.maximum(
        jnp.dot(z.astype(mm_dtype), w3, preferred_element_type=jnp.float32) + b3, 0.0)
    logits = jnp.dot(h2.astype(mm_dtype), w4,
                     preferred_element_type=jnp.float32) + b4
    return jax.nn.sigmoid(logits), s


def _vae_kernel_host_eps(x_ref, eps_ref, w1_ref, b1_ref, wh_ref, bh_ref,
                         w3_ref, b3_ref, w4_ref, b4_ref, xrec_ref, mulv_ref):
    xr, s = _vae_compute(x_ref[...], eps_ref[...],
                         w1_ref[...], b1_ref[...], wh_ref[...], bh_ref[...],
                         w3_ref[...], b3_ref[...], w4_ref[...], b4_ref[...],
                         mm_dtype=w1_ref.dtype)
    xrec_ref[...] = xr.astype(xrec_ref.dtype)       # lane-dense stores
    mulv_ref[...] = s.astype(mulv_ref.dtype)


def _vae_kernel_device_rng(seed_ref, x_ref, w1_ref, b1_ref, wh_ref, bh_ref,
                           w3_ref, b3_ref, w4_ref, b4_ref, xrec_ref, mulv_ref):
    tb = x_ref.shape[0]
    lp = mulv_ref.shape[-1] // 2
    # eps ~ N(0,1) drawn on-chip (Box-Muller over the hardware PRNG): removes
    # the [B, Lp] f32 eps input DMA entirely.
    pltpu.prng_seed(seed_ref[0] + pl.program_id(0))
    bits = pltpu.bitcast(pltpu.prng_random_bits((tb, 2 * lp)), jnp.uint32)
    u = (bits >> 8).astype(jnp.float32) * (1.0 / (1 << 24))     # uniform [0,1)
    u1 = jnp.maximum(u[:, :lp], 1e-7)
    u2 = u[:, lp:]
    eps = jnp.sqrt(-2.0 * jnp.log(u1)) * jnp.cos((2.0 * jnp.pi) * u2)
    # Padded eps lanes are random, but w3's padded rows are zero so they never
    # reach the decoder, and padded mu/logvar lanes stay exactly 0.
    xr, s = _vae_compute(x_ref[...], eps,
                         w1_ref[...], b1_ref[...], wh_ref[...], bh_ref[...],
                         w3_ref[...], b3_ref[...], w4_ref[...], b4_ref[...],
                         mm_dtype=w1_ref.dtype)
    xrec_ref[...] = xr.astype(xrec_ref.dtype)
    mulv_ref[...] = s.astype(mulv_ref.dtype)


# ----------------------------------------------------------------------------
# Parameter packing: pad feature dims, fuse mu/logvar heads, cast weights
# ----------------------------------------------------------------------------
def pack_params(params, *, matmul_dtype=jnp.bfloat16):
    """bf16 MXU operands by default (native on v5e/v6e/v7x; f32 accumulate and
    f32 epilogue keep precision); pass jnp.float32 for the bit-exact path."""
    D, H = params["w1"].shape
    L = params["w21"].shape[1]
    Dp, Hp = _round_up(D, LANE), _round_up(H, LANE)
    # Pad each head only to a half-lane (64): the fused [mu|logvar] slab is
    # 2*Lp, still a multiple of 128 (lane-dense stores) but without the 8x
    # over-padding a full 128-pad per head costs at small latent dims.
    Lp = _round_up(L, LANE // 2)

    def pw(w, r, c):
        return _pad2d(w, r, c).astype(matmul_dtype)

    def pb(b, c):                               # biases stay f32 (epilogue math)
        return _pad2d(b, 1, c).astype(jnp.float32)

    # Zero padding guarantees padded mu/logvar lanes are exactly 0 (std = 1)
    # and padded rows of w3 keep them out of the decoder.
    w_head = jnp.concatenate(
        [_pad2d(params["w21"], Hp, Lp), _pad2d(params["w22"], Hp, Lp)],
        axis=1).astype(matmul_dtype)
    b_head = jnp.concatenate(
        [_pad2d(params["b21"], 1, Lp), _pad2d(params["b22"], 1, Lp)],
        axis=1).astype(jnp.float32)

    packed = dict(
        w1=pw(params["w1"], Dp, Hp), b1=pb(params["b1"], Hp),
        w_head=w_head, b_head=b_head,
        w3=pw(params["w3"], Lp, Hp), b3=pb(params["b3"], Hp),
        w4=pw(params["w4"], Hp, Dp), b4=pb(params["b4"], Dp),
    )
    dims = dict(D=D, H=H, L=L, Dp=Dp, Hp=Hp, Lp=Lp)
    return packed, dims


# ----------------------------------------------------------------------------
# Device-aware knobs
# ----------------------------------------------------------------------------
def _num_tensorcores_per_chip():
    """2 for dual-TC parts (v7x, and megacore v4/v5p), else 1. Only a perf
    heuristic; correctness never depends on it."""
    try:
        kind = jax.devices()[0].device_kind.lower()
    except Exception:
        return 1
    if "v5 lite" in kind or "v5e" in kind or "v6" in kind:
        return 1
    if "v4" in kind or "v5p" in kind or "7" in kind:
        return 2
    return 1


def _vmem_capacity_bytes():
    try:
        return int(pltpu.get_tpu_info().vmem_capacity_bytes)
    except Exception:
        return 64 * 1024 * 1024        # v7x per-TC VMEM: conservative floor


def _default_tile_b(batch):
    """Whole padded batch on single-TC chips (grid=(1,): no per-step overhead,
    bigger M for the MXU); one tile per TensorCore on dual-TC chips so the
    'parallel' batch axis uses both cores; capped at 512 rows."""
    b8 = _round_up(max(batch, 1), SUBLANE)
    n_tc = _num_tensorcores_per_chip()
    per_core = _round_up((b8 + n_tc - 1) // n_tc, SUBLANE)
    return max(SUBLANE, min(512, per_core))


def _resident_spec(shape, single_buffer):
    # Constant index_map -> the tile is DMA'd once and stays VMEM-resident for
    # the whole grid. Buffered(1) drops the default double-buffering so only
    # one VMEM copy of each weight is allocated (matters for large hidden dims
    # on v7x's 64 MiB VMEM). Falls back automatically if unsupported.
    if single_buffer:
        return pl.BlockSpec(shape, lambda i: (0, 0), pipeline_mode=pl.Buffered(1))
    return pl.BlockSpec(shape, lambda i: (0, 0))


# ----------------------------------------------------------------------------
# Jitted forward: pad -> pallas_call -> slice, all fused under one jit
# ----------------------------------------------------------------------------
@functools.partial(jax.jit, static_argnames=("dims", "tile_b", "out_dtype",
                                              "use_device_rng", "single_buffer"))
def _vae_forward_impl(x, eps_or_seed, packed, *, dims, tile_b, out_dtype,
                      use_device_rng, single_buffer):
    D, L, Dp, Hp, Lp = dims
    B = x.shape[0]
    Bp = _round_up(_round_up(B, SUBLANE), tile_b)
    grid = (Bp // tile_b,)
    mm_dtype = packed["w1"].dtype

    # Pad/cast inside the jit: fused with the dispatch, no extra HBM round trip.
    x_p = jnp.pad(x.astype(jnp.float32), ((0, Bp - B), (0, Dp - D))).astype(mm_dtype)

    def batch_spec(cols):
        return pl.BlockSpec((tile_b, cols), lambda i: (i, 0))

    w_specs = [
        _resident_spec((Dp, Hp), single_buffer), _resident_spec((1, Hp), single_buffer),
        _resident_spec((Hp, 2 * Lp), single_buffer), _resident_spec((1, 2 * Lp), single_buffer),
        _resident_spec((Lp, Hp), single_buffer), _resident_spec((1, Hp), single_buffer),
        _resident_spec((Hp, Dp), single_buffer), _resident_spec((1, Dp), single_buffer),
    ]
    w_args = (packed["w1"], packed["b1"], packed["w_head"], packed["b_head"],
              packed["w3"], packed["b3"], packed["w4"], packed["b4"])

    out_specs = (batch_spec(Dp), batch_spec(2 * Lp))
    out_shape = (jax.ShapeDtypeStruct((Bp, Dp), out_dtype),
                 jax.ShapeDtypeStruct((Bp, 2 * Lp), out_dtype))

    if use_device_rng:
        kernel = _vae_kernel_device_rng
        seed = eps_or_seed.reshape((1,)).astype(jnp.int32)
        in_specs = [pl.BlockSpec(memory_space=pltpu.MemorySpace.SMEM),
                    batch_spec(Dp), *w_specs]
        args = (seed, x_p, *w_args)
        eps_tile_bytes = 0
    else:
        kernel = _vae_kernel_host_eps
        eps_p = jnp.pad(eps_or_seed.astype(jnp.float32), ((0, Bp - B), (0, Lp - L)))
        in_specs = [batch_spec(Dp), batch_spec(Lp), *w_specs]
        args = (x_p, eps_p, *w_args)
        eps_tile_bytes = tile_b * Lp * 4

    # VMEM budget: resident weights (1x if single-buffered, 2x otherwise) +
    # double-buffered I/O tiles + f32 temporaries; clamp to device VMEM.
    w_item = jnp.dtype(mm_dtype).itemsize
    out_item = jnp.dtype(out_dtype).itemsize
    weight_bytes = (Dp * Hp + Hp * 2 * Lp + Lp * Hp + Hp * Dp) * w_item
    bias_bytes = (2 * Hp + 2 * Lp + Dp) * 4
    wfactor = 1 if single_buffer else 2
    io_tile_bytes = tile_b * (Dp * w_item + (Dp + 2 * Lp) * out_item) + eps_tile_bytes
    act_bytes = tile_b * (2 * Hp + 6 * Lp + 2 * Dp) * 4
    vmem_needed = wfactor * (weight_bytes + bias_bytes) + 2 * io_tile_bytes + act_bytes

    cp_kwargs = dict(dimension_semantics=("parallel",))   # batch axis -> both TCs
    if vmem_needed > 30 * 1024 * 1024:
        cap = _vmem_capacity_bytes() - (2 << 20)
        cp_kwargs["vmem_limit_bytes"] = int(min(vmem_needed * 1.25, cap))

    xrec_p, mulv_p = pl.pallas_call(
        kernel,
        grid=grid,
        out_shape=out_shape,
        in_specs=in_specs,
        out_specs=out_specs,
        compiler_params=pltpu.CompilerParams(**cp_kwargs),
    )(*args)

    # Output slices stay inside the jit -> fused, padded lanes never round-trip.
    x_recon = xrec_p[:B, :D]
    mu = mulv_p[:B, :L]
    logvar = mulv_p[:B, Lp:Lp + L]
    return x_recon, mu, logvar


_SINGLE_BUFFER_WEIGHTS = True   # auto-falls back if pl.Buffered(1) unsupported


def vae_forward(x, packed, dims, *, eps=None, seed=0, tile_b=None,
                out_dtype=jnp.float32):
    """x: [B, input_dim]. eps: [B, latent_dim] host noise (bit-reproducible), or
    None to draw eps ~ N(0,1) in-kernel. Returns (x_recon, mu, logvar)."""
    global _SINGLE_BUFFER_WEIGHTS
    if tile_b is None:
        tile_b = _default_tile_b(x.shape[0])
    use_device_rng = eps is None
    eps_or_seed = jnp.asarray([seed], dtype=jnp.int32) if use_device_rng else eps
    dims_key = (dims["D"], dims["L"], dims["Dp"], dims["Hp"], dims["Lp"])
    kwargs = dict(dims=dims_key, tile_b=int(tile_b), out_dtype=out_dtype,
                  use_device_rng=use_device_rng)
    try:
        return _vae_forward_impl(x, eps_or_seed, packed,
                                 single_buffer=_SINGLE_BUFFER_WEIGHTS, **kwargs)
    except Exception:
        if not _SINGLE_BUFFER_WEIGHTS:
            raise
        _SINGLE_BUFFER_WEIGHTS = False    # pipeline_mode unsupported: fall back
        return _vae_forward_impl(x, eps_or_seed, packed,
                                 single_buffer=False, **kwargs)


# ----------------------------------------------------------------------------
# Synthetic parameters (PyTorch-style uniform init); weights stored [in, out].
# ----------------------------------------------------------------------------
def init_params(key, input_dim, hidden_dim, latent_dim):
    def linear(k, fan_in, fan_out):
        kw, kb = jax.random.split(k)
        bound = 1.0 / jnp.sqrt(fan_in)
        w = jax.random.uniform(kw, (fan_in, fan_out), jnp.float32, -bound, bound)
        b = jax.random.uniform(kb, (1, fan_out), jnp.float32, -bound, bound)
        return w, b

    k1, k21, k22, k3, k4 = jax.random.split(key, 5)
    w1, b1 = linear(k1, input_dim, hidden_dim)      # fc1
    w21, b21 = linear(k21, hidden_dim, latent_dim)  # fc21 (mu)
    w22, b22 = linear(k22, hidden_dim, latent_dim)  # fc22 (logvar)
    w3, b3 = linear(k3, latent_dim, hidden_dim)     # fc3
    w4, b4 = linear(k4, hidden_dim, input_dim)      # fc4
    return dict(w1=w1, b1=b1, w21=w21, b21=b21, w22=w22, b22=b22,
                w3=w3, b3=b3, w4=w4, b4=b4)


if __name__ == "__main__":
    # Logical (module) sizes; padded internally to lane-friendly shapes.
    B, input_dim, hidden_dim, latent_dim = 256, 64, 32, 16

    key = jax.random.PRNGKey(0)
    kx, keps, kp = jax.random.split(key, 3)
    x = jax.random.uniform(kx, (B, input_dim), jnp.float32)
    eps = jax.random.normal(keps, (B, latent_dim), jnp.float32)
    params = init_params(kp, input_dim, hidden_dim, latent_dim)

    # Pure-JAX reference (same math, outside the kernel).
    h = jnp.maximum(x @ params["w1"] + params["b1"], 0.0)
    mu_ref = h @ params["w21"] + params["b21"]
    lv_ref = h @ params["w22"] + params["b22"]
    z = mu_ref + eps * jnp.exp(0.5 * lv_ref)
    h2 = jnp.maximum(z @ params["w3"] + params["b3"], 0.0)
    xr_ref = jax.nn.sigmoid(h2 @ params["w4"] + params["b4"])

    # 1) f32 MXU operands, f32 outputs, host eps: exact-path check.
    packed32, dims32 = pack_params(params, matmul_dtype=jnp.float32)
    xr, mu, lv = vae_forward(x, packed32, dims32, eps=eps)
    jax.block_until_ready((xr, mu, lv))
    assert xr.shape == (B, input_dim) and mu.shape == (B, latent_dim)
    assert lv.shape == (B, latent_dim)
    assert jnp.allclose(xr, xr_ref, atol=1e-4)
    assert jnp.allclose(mu, mu_ref, atol=1e-4)
    assert jnp.allclose(lv, lv_ref, atol=1e-4)

    # 2) Default throughput path: bf16 MXU operands + bf16 outputs (all gens).
    packed16, dims16 = pack_params(params)          # bf16 operands by default
    xr16, mu16, lv16 = vae_forward(x, packed16, dims16, eps=eps,
                                   out_dtype=jnp.bfloat16)
    jax.block_until_ready((xr16, mu16, lv16))
    assert jnp.allclose(xr16.astype(jnp.float32), xr_ref, atol=5e-2)
    assert jnp.allclose(mu16.astype(jnp.float32), mu_ref, atol=5e-2)
    assert jnp.allclose(lv16.astype(jnp.float32), lv_ref, atol=5e-2)

    # 3) Optional: eps drawn in-kernel from the hardware PRNG (no eps DMA).
    #    Skipped silently if the PRNG/trig ops are unavailable in this backend.
    rng_outputs = None
    try:
        rng_outputs = vae_forward(x, packed16, dims16, eps=None, seed=1234,
                                  out_dtype=jnp.bfloat16)
        jax.block_until_ready(rng_outputs)
    except Exception:
        rng_outputs = None
    if rng_outputs is not None:
        xr_r, mu_r, lv_r = rng_outputs
        assert xr_r.shape == (B, input_dim)
        xr_r32 = xr_r.astype(jnp.float32)
        assert bool(jnp.isfinite(xr_r32).all())
        assert bool(((xr_r32 >= 0.0) & (xr_r32 <= 1.0)).all())
        # mu/logvar do not depend on eps -> must match the host-eps bf16 run.
        assert jnp.allclose(mu_r.astype(jnp.float32),
                            mu16.astype(jnp.float32), atol=1e-2)
        assert jnp.allclose(lv_r.astype(jnp.float32),
                            lv16.astype(jnp.float32), atol=1e-2)

    print("KERNEL_OK")
</pallas_src>

<mosaic_0001>
module attributes {stable_mosaic.version = 11 : i64} {
  func.func @_vae_kernel_host_eps(%arg0: i32, %arg1: memref<256x128xf32, #tpu.memory_space<vmem>>, %arg2: memref<256x64xf32, #tpu.memory_space<vmem>>, %arg3: memref<128x128xf32, #tpu.memory_space<vmem>>, %arg4: memref<1x128xf32, #tpu.memory_space<vmem>>, %arg5: memref<128x128xf32, #tpu.memory_space<vmem>>, %arg6: memref<1x128xf32, #tpu.memory_space<vmem>>, %arg7: memref<64x128xf32, #tpu.memory_space<vmem>>, %arg8: memref<1x128xf32, #tpu.memory_space<vmem>>, %arg9: memref<128x128xf32, #tpu.memory_space<vmem>>, %arg10: memref<1x128xf32, #tpu.memory_space<vmem>>, %arg11: memref<256x128xf32, #tpu.memory_space<vmem>>, %arg12: memref<256x128xf32, #tpu.memory_space<vmem>>) attributes {dimension_semantics = [#tpu.dimension_semantics<parallel>], iteration_bounds = array<i64: 1>, scalar_prefetch = 0 : i64, scratch_operands = 0 : i64, tpu.core_type = #tpu.core_type<tc>, window_params = [{transform_indices = @transform_0, window_bounds = array<i64: 256, 128>}, {transform_indices = @transform_1, window_bounds = array<i64: 256, 64>}, {pipeline_mode = #tpu.pipeline_mode<synchronous>, transform_indices = @transform_2, window_bounds = array<i64: 128, 128>}, {pipeline_mode = #tpu.pipeline_mode<synchronous>, transform_indices = @transform_3, window_bounds = array<i64: 1, 128>}, {pipeline_mode = #tpu.pipeline_mode<synchronous>, transform_indices = @transform_4, window_bounds = array<i64: 128, 128>}, {pipeline_mode = #tpu.pipeline_mode<synchronous>, transform_indices = @transform_5, window_bounds = array<i64: 1, 128>}, {pipeline_mode = #tpu.pipeline_mode<synchronous>, transform_indices = @transform_6, window_bounds = array<i64: 64, 128>}, {pipeline_mode = #tpu.pipeline_mode<synchronous>, transform_indices = @transform_7, window_bounds = array<i64: 1, 128>}, {pipeline_mode = #tpu.pipeline_mode<synchronous>, transform_indices = @transform_8, window_bounds = array<i64: 128, 128>}, {pipeline_mode = #tpu.pipeline_mode<synchronous>, transform_indices = @transform_9, window_bounds = array<i64: 1, 128>}, {transform_indices = @transform_10, window_bounds = array<i64: 256, 128>}, {transform_indices = @transform_11, window_bounds = array<i64: 256, 128>}]} {
    %c0 = arith.constant 0 : index
    %c0_0 = arith.constant 0 : index
    %0 = vector.load %arg1[%c0, %c0_0] : memref<256x128xf32, #tpu.memory_space<vmem>>, vector<256x128xf32>
    %c0_1 = arith.constant 0 : index
    %c0_2 = arith.constant 0 : index
    %1 = vector.load %arg2[%c0_1, %c0_2] : memref<256x64xf32, #tpu.memory_space<vmem>>, vector<256x64xf32>
    %c0_3 = arith.constant 0 : index
    %c0_4 = arith.constant 0 : index
    %2 = vector.load %arg3[%c0_3, %c0_4] : memref<128x128xf32, #tpu.memory_space<vmem>>, vector<128x128xf32>
    %c0_5 = arith.constant 0 : index
    %c0_6 = arith.constant 0 : index
    %3 = vector.load %arg4[%c0_5, %c0_6] : memref<1x128xf32, #tpu.memory_space<vmem>>, vector<1x128xf32>
    %c0_7 = arith.constant 0 : index
    %c0_8 = arith.constant 0 : index
    %4 = vector.load %arg5[%c0_7, %c0_8] : memref<128x128xf32, #tpu.memory_space<vmem>>, vector<128x128xf32>
    %c0_9 = arith.constant 0 : index
    %c0_10 = arith.constant 0 : index
    %5 = vector.load %arg6[%c0_9, %c0_10] : memref<1x128xf32, #tpu.memory_space<vmem>>, vector<1x128xf32>
    %c0_11 = arith.constant 0 : index
    %c0_12 = arith.constant 0 : index
    %6 = vector.load %arg7[%c0_11, %c0_12] : memref<64x128xf32, #tpu.memory_space<vmem>>, vector<64x128xf32>
    %c0_13 = arith.constant 0 : index
    %c0_14 = arith.constant 0 : index
    %7 = vector.load %arg8[%c0_13, %c0_14] : memref<1x128xf32, #tpu.memory_space<vmem>>, vector<1x128xf32>
    %c0_15 = arith.constant 0 : index
    %c0_16 = arith.constant 0 : index
    %8 = vector.load %arg9[%c0_15, %c0_16] : memref<128x128xf32, #tpu.memory_space<vmem>>, vector<128x128xf32>
    %c0_17 = arith.constant 0 : index
    %c0_18 = arith.constant 0 : index
    %9 = vector.load %arg10[%c0_17, %c0_18] : memref<1x128xf32, #tpu.memory_space<vmem>>, vector<1x128xf32>
    %cst = arith.constant dense<0.000000e+00> : vector<256x128xf32>
    %10 = tpu.matmul %0, %2, %cst {dimension_numbers = #tpu.dot_dimension_numbers<[1], [0], [0], [1], [0, 0, 1, 1], [], []>} : vector<256x128xf32>, vector<128x128xf32>, vector<256x128xf32> -> vector<256x128xf32>
    %11 = vector.broadcast %3 : vector<1x128xf32> to vector<256x128xf32>
    %12 = arith.addf %10, %11 : vector<256x128xf32>
    %cst_19 = arith.constant 0.000000e+00 : f32
    %13 = vector.broadcast %cst_19 : f32 to vector<256x128xf32>
    %14 = arith.maximumf %12, %13 : vector<256x128xf32>
    %cst_20 = arith.constant dense<0.000000e+00> : vector<256x128xf32>
    %15 = tpu.matmul %14, %4, %cst_20 {dimension_numbers = #tpu.dot_dimension_numbers<[1], [0], [0], [1], [0, 0, 1, 1], [], []>} : vector<256x128xf32>, vector<128x128xf32>, vector<256x128xf32> -> vector<256x128xf32>
    %16 = vector.broadcast %5 : vector<1x128xf32> to vector<256x128xf32>
    %17 = arith.addf %15, %16 : vector<256x128xf32>
    %18 = vector.extract_strided_slice %17 {offsets = [0, 0], sizes = [256, 64], strides = [1, 1]} : vector<256x128xf32> to vector<256x64xf32>
    %19 = vector.extract_strided_slice %17 {offsets = [0, 64], sizes = [256, 64], strides = [1, 1]} : vector<256x128xf32> to vector<256x64xf32>
    %cst_21 = arith.constant 5.000000e-01 : f32
    %20 = vector.broadcast %cst_21 : f32 to vector<256x64xf32>
    %21 = arith.mulf %20, %19 : vector<256x64xf32>
    %22 = math.exp %21 : vector<256x64xf32>
    %23 = arith.mulf %1, %22 : vector<256x64xf32>
    %24 = arith.addf %18, %23 : vector<256x64xf32>
    %cst_22 = arith.constant dense<0.000000e+00> : vector<256x128xf32>
    %25 = tpu.matmul %24, %6, %cst_22 {dimension_numbers = #tpu.dot_dimension_numbers<[1], [0], [0], [1], [0, 0, 1, 1], [], []>} : vector<256x64xf32>, vector<64x128xf32>, vector<256x128xf32> -> vector<256x128xf32>
    %26 = vector.broadcast %7 : vector<1x128xf32> to vector<256x128xf32>
    %27 = arith.addf %25, %26 : vector<256x128xf32>
    %cst_23 = arith.constant 0.000000e+00 : f32
    %28 = vector.broadcast %cst_23 : f32 to vector<256x128xf32>
    %29 = arith.maximumf %27, %28 : vector<256x128xf32>
    %cst_24 = arith.constant dense<0.000000e+00> : vector<256x128xf32>
    %30 = tpu.matmul %29, %8, %cst_24 {dimension_numbers = #tpu.dot_dimension_numbers<[1], [0], [0], [1], [0, 0, 1, 1], [], []>} : vector<256x128xf32>, vector<128x128xf32>, vector<256x128xf32> -> vector<256x128xf32>
    %31 = vector.broadcast %9 : vector<1x128xf32> to vector<256x128xf32>
    %32 = arith.addf %30, %31 : vector<256x128xf32>
    %33 = arith.negf %32 : vector<256x128xf32>
    %34 = math.exp %33 : vector<256x128xf32>
    %cst_25 = arith.constant 1.000000e+00 : f32
    %35 = vector.broadcast %cst_25 : f32 to vector<256x128xf32>
    %36 = arith.addf %35, %34 : vector<256x128xf32>
    %37 = arith.divf %35, %36 : vector<256x128xf32>
    %c0_26 = arith.constant 0 : index
    %c0_27 = arith.constant 0 : index
    %38 = vector.load %arg11[%c0_26, %c0_27] : memref<256x128xf32, #tpu.memory_space<vmem>>, vector<256x128xf32>
    tpu.vector_store %arg11[%c0_26, %c0_27], %37 {strides = array<i32>} : memref<256x128xf32, #tpu.memory_space<vmem>>, vector<256x128xf32>,
    %c0_28 = arith.constant 0 : index
    %c0_29 = arith.constant 0 : index
    %39 = vector.load %arg12[%c0_28, %c0_29] : memref<256x128xf32, #tpu.memory_space<vmem>>, vector<256x128xf32>
    tpu.vector_store %arg12[%c0_28, %c0_29], %17 {strides = array<i32>} : memref<256x128xf32, #tpu.memory_space<vmem>>, vector<256x128xf32>,
    return
  }
  func.func @transform_0(%arg0: i32) -> (i32, i32) {
    %c0_i32 = arith.constant 0 : i32
    %c0_i32_0 = arith.constant 0 : i32
    return %arg0, %c0_i32 : i32, i32
  }
  func.func @transform_1(%arg0: i32) -> (i32, i32) {
    %c0_i32 = arith.constant 0 : i32
    %c0_i32_0 = arith.constant 0 : i32
    return %arg0, %c0_i32 : i32, i32
  }
  func.func @transform_2(%arg0: i32) -> (i32, i32) {
    %c0_i32 = arith.constant 0 : i32
    %c0_i32_0 = arith.constant 0 : i32
    %c0_i32_1 = arith.constant 0 : i32
    return %c0_i32, %c0_i32_0 : i32, i32
  }
  func.func @transform_3(%arg0: i32) -> (i32, i32) {
    %c0_i32 = arith.constant 0 : i32
    %c0_i32_0 = arith.constant 0 : i32
    %c0_i32_1 = arith.constant 0 : i32
    return %c0_i32, %c0_i32_0 : i32, i32
  }
  func.func @transform_4(%arg0: i32) -> (i32, i32) {
    %c0_i32 = arith.constant 0 : i32
    %c0_i32_0 = arith.constant 0 : i32
    %c0_i32_1 = arith.constant 0 : i32
    return %c0_i32, %c0_i32_0 : i32, i32
  }
  func.func @transform_5(%arg0: i32) -> (i32, i32) {
    %c0_i32 = arith.constant 0 : i32
    %c0_i32_0 = arith.constant 0 : i32
    %c0_i32_1 = arith.constant 0 : i32
    return %c0_i32, %c0_i32_0 : i32, i32
  }
  func.func @transform_6(%arg0: i32) -> (i32, i32) {
    %c0_i32 = arith.constant 0 : i32
    %c0_i32_0 = arith.constant 0 : i32
    %c0_i32_1 = arith.constant 0 : i32
    return %c0_i32, %c0_i32_0 : i32, i32
  }
  func.func @transform_7(%arg0: i32) -> (i32, i32) {
    %c0_i32 = arith.constant 0 : i32
    %c0_i32_0 = arith.constant 0 : i32
    %c0_i32_1 = arith.constant 0 : i32
    return %c0_i32, %c0_i32_0 : i32, i32
  }
  func.func @transform_8(%arg0: i32) -> (i32, i32) {
    %c0_i32 = arith.constant 0 : i32
    %c0_i32_0 = arith.constant 0 : i32
    %c0_i32_1 = arith.constant 0 : i32
    return %c0_i32, %c0_i32_0 : i32, i32
  }
  func.func @transform_9(%arg0: i32) -> (i32, i32) {
    %c0_i32 = arith.constant 0 : i32
    %c0_i32_0 = arith.constant 0 : i32
    %c0_i32_1 = arith.constant 0 : i32
    return %c0_i32, %c0_i32_0 : i32, i32
  }
  func.func @transform_10(%arg0: i32) -> (i32, i32) {
    %c0_i32 = arith.constant 0 : i32
    %c0_i32_0 = arith.constant 0 : i32
    return %arg0, %c0_i32 : i32, i32
  }
  func.func @transform_11(%arg0: i32) -> (i32, i32) {
    %c0_i32 = arith.constant 0 : i32
    %c0_i32_0 = arith.constant 0 : i32
    return %arg0, %c0_i32 : i32, i32
  }
}

module attributes {stable_mosaic.version = 11 : i64} {
  func.func @_vae_kernel_host_eps(%arg0: i32, %arg1: memref<256x128xf32, #tpu.memory_space<vmem>>, %arg2: memref<256x64xf32, #tpu.memory_space<vmem>>, %arg3: memref<128x128xf32, #tpu.memory_space<vmem>>, %arg4: memref<1x128xf32, #tpu.memory_space<vmem>>, %arg5: memref<128x128xf32, #tpu.memory_space<vmem>>, %arg6: memref<1x128xf32, #tpu.memory_space<vmem>>, %arg7: memref<64x128xf32, #tpu.memory_space<vmem>>, %arg8: memref<1x128xf32, #tpu.memory_space<vmem>>, %arg9: memref<128x128xf32, #tpu.memory_space<vmem>>, %arg10: memref<1x128xf32, #tpu.memory_space<vmem>>, %arg11: memref<256x128xf32, #tpu.memory_space<vmem>>, %arg12: memref<256x128xf32, #tpu.memory_space<vmem>>) attributes {dimension_semantics = [#tpu.dimension_semantics<parallel>], iteration_bounds = array<i64: 1>, scalar_prefetch = 0 : i64, scratch_operands = 0 : i64, tpu.core_type = #tpu.core_type<tc>, window_params = [{transform_indices = @transform_0, window_bounds = array<i64: 256, 128>}, {transform_indices = @transform_1, window_bounds = array<i64: 256, 64>}, {pipeline_mode = #tpu.pipeline_mode<synchronous>, transform_indices = @transform_2, window_bounds = array<i64: 128, 128>}, {pipeline_mode = #tpu.pipeline_mode<synchronous>, transform_indices = @transform_3, window_bounds = array<i64: 1, 128>}, {pipeline_mode = #tpu.pipeline_mode<synchronous>, transform_indices = @transform_4, window_bounds = array<i64: 128, 128>}, {pipeline_mode = #tpu.pipeline_mode<synchronous>, transform_indices = @transform_5, window_bounds = array<i64: 1, 128>}, {pipeline_mode = #tpu.pipeline_mode<synchronous>, transform_indices = @transform_6, window_bounds = array<i64: 64, 128>}, {pipeline_mode = #tpu.pipeline_mode<synchronous>, transform_indices = @transform_7, window_bounds = array<i64: 1, 128>}, {pipeline_mode = #tpu.pipeline_mode<synchronous>, transform_indices = @transform_8, window_bounds = array<i64: 128, 128>}, {pipeline_mode = #tpu.pipeline_mode<synchronous>, transform_indices = @transform_9, window_bounds = array<i64: 1, 128>}, {transform_indices = @transform_10, window_bounds = array<i64: 256, 128>}, {transform_indices = @transform_11, window_bounds = array<i64: 256, 128>}]} {
    %c0 = arith.constant 0 : index
    %c0_0 = arith.constant 0 : index
    %0 = vector.load %arg1[%c0, %c0_0] : memref<256x128xf32, #tpu.memory_space<vmem>>, vector<256x128xf32>
    %c0_1 = arith.constant 0 : index
    %c0_2 = arith.constant 0 : index
    %1 = vector.load %arg2[%c0_1, %c0_2] : memref<256x64xf32, #tpu.memory_space<vmem>>, vector<256x64xf32>
    %c0_3 = arith.constant 0 : index
    %c0_4 = arith.constant 0 : index
    %2 = vector.load %arg3[%c0_3, %c0_4] : memref<128x128xf32, #tpu.memory_space<vmem>>, vector<128x128xf32>
    %c0_5 = arith.constant 0 : index
    %c0_6 = arith.constant 0 : index
    %3 = vector.load %arg4[%c0_5, %c0_6] : memref<1x128xf32, #tpu.memory_space<vmem>>, vector<1x128xf32>
    %c0_7 = arith.constant 0 : index
    %c0_8 = arith.constant 0 : index
    %4 = vector.load %arg5[%c0_7, %c0_8] : memref<128x128xf32, #tpu.memory_space<vmem>>, vector<128x128xf32>
    %c0_9 = arith.constant 0 : index
    %c0_10 = arith.constant 0 : index
    %5 = vector.load %arg6[%c0_9, %c0_10] : memref<1x128xf32, #tpu.memory_space<vmem>>, vector<1x128xf32>
    %c0_11 = arith.constant 0 : index
    %c0_12 = arith.constant 0 : index
    %6 = vector.load %arg7[%c0_11, %c0_12] : memref<64x128xf32, #tpu.memory_space<vmem>>, vector<64x128xf32>
    %c0_13 = arith.constant 0 : index
    %c0_14 = arith.constant 0 : index
    %7 = vector.load %arg8[%c0_13, %c0_14] : memref<1x128xf32, #tpu.memory_space<vmem>>, vector<1x128xf32>
    %c0_15 = arith.constant 0 : index
    %c0_16 = arith.constant 0 : index
    %8 = vector.load %arg9[%c0_15, %c0_16] : memref<128x128xf32, #tpu.memory_space<vmem>>, vector<128x128xf32>
    %c0_17 = arith.constant 0 : index
    %c0_18 = arith.constant 0 : index
    %9 = vector.load %arg10[%c0_17, %c0_18] : memref<1x128xf32, #tpu.memory_space<vmem>>, vector<1x128xf32>
    %cst = arith.constant dense<0.000000e+00> : vector<256x128xf32>
    %10 = tpu.matmul %0, %2, %cst {dimension_numbers = #tpu.dot_dimension_numbers<[1], [0], [0], [1], [0, 0, 1, 1], [], []>} : vector<256x128xf32>, vector<128x128xf32>, vector<256x128xf32> -> vector<256x128xf32>
    %11 = vector.broadcast %3 : vector<1x128xf32> to vector<256x128xf32>
    %12 = arith.addf %10, %11 : vector<256x128xf32>
    %cst_19 = arith.constant 0.000000e+00 : f32
    %13 = vector.broadcast %cst_19 : f32 to vector<256x128xf32>
    %14 = arith.maximumf %12, %13 : vector<256x128xf32>
    %cst_20 = arith.constant dense<0.000000e+00> : vector<256x128xf32>
    %15 = tpu.matmul %14, %4, %cst_20 {dimension_numbers = #tpu.dot_dimension_numbers<[1], [0], [0], [1], [0, 0, 1, 1], [], []>} : vector<256x128xf32>, vector<128x128xf32>, vector<256x128xf32> -> vector<256x128xf32>
    %16 = vector.broadcast %5 : vector<1x128xf32> to vector<256x128xf32>
    %17 = arith.addf %15, %16 : vector<256x128xf32>
    %18 = vector.extract_strided_slice %17 {offsets = [0, 0], sizes = [256, 64], strides = [1, 1]} : vector<256x128xf32> to vector<256x64xf32>
    %19 = vector.extract_strided_slice %17 {offsets = [0, 64], sizes = [256, 64], strides = [1, 1]} : vector<256x128xf32> to vector<256x64xf32>
    %cst_21 = arith.constant 5.000000e-01 : f32
    %20 = vector.broadcast %cst_21 : f32 to vector<256x64xf32>
    %21 = arith.mulf %20, %19 : vector<256x64xf32>
    %22 = math.exp %21 : vector<256x64xf32>
    %23 = arith.mulf %1, %22 : vector<256x64xf32>
    %24 = arith.addf %18, %23 : vector<256x64xf32>
    %cst_22 = arith.constant dense<0.000000e+00> : vector<256x128xf32>
    %25 = tpu.matmul %24, %6, %cst_22 {dimension_numbers = #tpu.dot_dimension_numbers<[1], [0], [0], [1], [0, 0, 1, 1], [], []>} : vector<256x64xf32>, vector<64x128xf32>, vector<256x128xf32> -> vector<256x128xf32>
    %26 = vector.broadcast %7 : vector<1x128xf32> to vector<256x128xf32>
    %27 = arith.addf %25, %26 : vector<256x128xf32>
    %cst_23 = arith.constant 0.000000e+00 : f32
    %28 = vector.broadcast %cst_23 : f32 to vector<256x128xf32>
    %29 = arith.maximumf %27, %28 : vector<256x128xf32>
    %cst_24 = arith.constant dense<0.000000e+00> : vector<256x128xf32>
    %30 = tpu.matmul %29, %8, %cst_24 {dimension_numbers = #tpu.dot_dimension_numbers<[1], [0], [0], [1], [0, 0, 1, 1], [], []>} : vector<256x128xf32>, vector<128x128xf32>, vector<256x128xf32> -> vector<256x128xf32>
    %31 = vector.broadcast %9 : vector<1x128xf32> to vector<256x128xf32>
    %32 = arith.addf %30, %31 : vector<256x128xf32>
    %33 = arith.negf %32 : vector<256x128xf32>
    %34 = math.exp %33 : vector<256x128xf32>
    %cst_25 = arith.constant 1.000000e+00 : f32
    %35 = vector.broadcast %cst_25 : f32 to vector<256x128xf32>
    %36 = arith.addf %35, %34 : vector<256x128xf32>
    %37 = arith.divf %35, %36 : vector<256x128xf32>
    %c0_26 = arith.constant 0 : index
    %c0_27 = arith.constant 0 : index
    %38 = vector.load %arg11[%c0_26, %c0_27] : memref<256x128xf32, #tpu.memory_space<vmem>>, vector<256x128xf32>
    tpu.vector_store %arg11[%c0_26, %c0_27], %37 {strides = array<i32>} : memref<256x128xf32, #tpu.memory_space<vmem>>, vector<256x128xf32>,
    %c0_28 = arith.constant 0 : index
    %c0_29 = arith.constant 0 : index
    %39 = vector.load %arg12[%c0_28, %c0_29] : memref<256x128xf32, #tpu.memory_space<vmem>>, vector<256x128xf32>
    tpu.vector_store %arg12[%c0_28, %c0_29], %17 {strides = array<i32>} : memref<256x128xf32, #tpu.memory_space<vmem>>, vector<256x128xf32>,
    return
  }
  func.func @transform_0(%arg0: i32) -> (i32, i32) {
    %c0_i32 = arith.constant 0 : i32
    %c0_i32_0 = arith.constant 0 : i32
    return %arg0, %c0_i32 : i32, i32
  }
  func.func @transform_1(%arg0: i32) -> (i32, i32) {
    %c0_i32 = arith.constant 0 : i32
    %c0_i32_0 = arith.constant 0 : i32
    return %arg0, %c0_i32 : i32, i32
  }
  func.func @transform_2(%arg0: i32) -> (i32, i32) {
    %c0_i32 = arith.constant 0 : i32
    %c0_i32_0 = arith.constant 0 : i32
    %c0_i32_1 = arith.constant 0 : i32
    return %c0_i32, %c0_i32_0 : i32, i32
  }
  func.func @transform_3(%arg0: i32) -> (i32, i32) {
    %c0_i32 = arith.constant 0 : i32
    %c0_i32_0 = arith.constant 0 : i32
    %c0_i32_1 = arith.constant 0 : i32
    return %c0_i32, %c0_i32_0 : i32, i32
  }
  func.func @transform_4(%arg0: i32) -> (i32, i32) {
    %c0_i32 = arith.constant 0 : i32
    %c0_i32_0 = arith.constant 0 : i32
    %c0_i32_1 = arith.constant 0 : i32
    return %c0_i32, %c0_i32_0 : i32, i32
  }
  func.func @transform_5(%arg0: i32) -> (i32, i32) {
    %c0_i32 = arith.constant 0 : i32
    %c0_i32_0 = arith.constant 0 : i32
    %c0_i32_1 = arith.constant 0 : i32
    return %c0_i32, %c0_i32_0 : i32, i32
  }
  func.func @transform_6(%arg0: i32) -> (i32, i32) {
    %c0_i32 = arith.constant 0 : i32
    %c0_i32_0 = arith.constant 0 : i32
    %c0_i32_1 = arith.constant 0 : i32
    return %c0_i32, %c0_i32_0 : i32, i32
  }
  func.func @transform_7(%arg0: i32) -> (i32, i32) {
    %c0_i32 = arith.constant 0 : i32
    %c0_i32_0 = arith.constant 0 : i32
    %c0_i32_1 = arith.constant 0 : i32
    return %c0_i32, %c0_i32_0 : i32, i32
  }
  func.func @transform_8(%arg0: i32) -> (i32, i32) {
    %c0_i32 = arith.constant 0 : i32
    %c0_i32_0 = arith.constant 0 : i32
    %c0_i32_1 = arith.constant 0 : i32
    return %c0_i32, %c0_i32_0 : i32, i32
  }
  func.func @transform_9(%arg0: i32) -> (i32, i32) {
    %c0_i32 = arith.constant 0 : i32
    %c0_i32_0 = arith.constant 0 : i32
    %c0_i32_1 = arith.constant 0 : i32
    return %c0_i32, %c0_i32_0 : i32, i32
  }
  func.func @transform_10(%arg0: i32) -> (i32, i32) {
    %c0_i32 = arith.constant 0 : i32
    %c0_i32_0 = arith.constant 0 : i32
    return %arg0, %c0_i32 : i32, i32
  }
  func.func @transform_11(%arg0: i32) -> (i32, i32) {
    %c0_i32 = arith.constant 0 : i32
    %c0_i32_0 = arith.constant 0 : i32
    return %arg0, %c0_i32 : i32, i32
  }
}

</mosaic_0001>

<llo_original>
// kernel: _vae_forward_impl.1
$region0: #{_vae_forward_impl.1}
  #allocation0 [shape = 'u32[]', space=smem, size = 0x4, offset = 0x4, fixed_abs, tag = 'smem constant byte address 0x4 - core index']
  #allocation1 [shape = 'u32[144,128]{1,0:T(1,128)}', space=vmem, size = 0x12000, scoped, tag = 'internal scratch']
  %s0 = inlined_call_operand.vmem [shape: f32[256,128], index: 0, kind: input, shape index: {}]
  %s1 = inlined_call_operand.vmem [shape: f32[256,64], index: 1, kind: input, shape index: {}]
  %s2 = inlined_call_operand.vmem [shape: f32[128,128], index: 2, kind: input, shape index: {}]
  %s3 = inlined_call_operand.vmem [shape: f32[1,128], index: 3, kind: input, shape index: {}]
  %s4 = inlined_call_operand.vmem [shape: f32[128,128], index: 4, kind: input, shape index: {}]
  %s5 = inlined_call_operand.vmem [shape: f32[1,128], index: 5, kind: input, shape index: {}]
  %s6 = inlined_call_operand.vmem [shape: f32[64,128], index: 6, kind: input, shape index: {}]
  %s7 = inlined_call_operand.vmem [shape: f32[1,128], index: 7, kind: input, shape index: {}]
  %s8 = inlined_call_operand.vmem [shape: f32[128,128], index: 8, kind: input, shape index: {}]
  %s9 = inlined_call_operand.vmem [shape: f32[1,128], index: 9, kind: input, shape index: {}]
  %s10 = inlined_call_operand.vmem [shape: f32[256,128], index: 10, kind: output, shape index: {0}]
  %s11 = inlined_call_operand.vmem [shape: f32[256,128], index: 11, kind: output, shape index: {1}]
  %12 = xla_tuple %s10, %s11
  %s13 = sld [smem:[#allocation0]]
  $region58: #{_vae_forward_impl.1} parent=0
    _
  %s15 = ssub.s32 1, %s13
  %s16 = scalar_select 0, %s15, %s13
  // Predicated region
  $region2: #{_vae_forward_impl.1} parent=0 // pred_check
    _
  $region3: #{_vae_forward_impl.1} parent=0 // pred_check_branch
    %18 = sbr.rel (0) target = $region5
  $region4: #{_vae_forward_impl.1} parent=0 // pred_region
    _
  $region5: #{_vae_forward_impl.1} parent=0 // pred_fallthru
    _
  // Predicated region
  $region6: #{_vae_forward_impl.1} parent=0 // pred_check
    _
  $region7: #{_vae_forward_impl.1} parent=0 // pred_check_branch
    %20 = sbr.rel (0) target = $region9
  $region8: #{_vae_forward_impl.1} parent=0 // pred_region
    _
  $region9: #{_vae_forward_impl.1} parent=0 // pred_fallthru
    _
  // Predicated region
  $region10: #{_vae_forward_impl.1} parent=0 // pred_check
    _
  $region11: #{_vae_forward_impl.1} parent=0 // pred_check_branch
    %22 = sbr.rel (0) target = $region13
  $region12: #{_vae_forward_impl.1} parent=0 // pred_region
    _
  $region13: #{_vae_forward_impl.1} parent=0 // pred_fallthru
    _
  // Predicated region
  $region14: #{_vae_forward_impl.1} parent=0 // pred_check
    _
  $region15: #{_vae_forward_impl.1} parent=0 // pred_check_branch
    %24 = sbr.rel (0) target = $region17
  $region16: #{_vae_forward_impl.1} parent=0 // pred_region
    _
  $region17: #{_vae_forward_impl.1} parent=0 // pred_fallthru
    _
  // Predicated region
  $region18: #{_vae_forward_impl.1} parent=0 // pred_check
    _
  $region19: #{_vae_forward_impl.1} parent=0 // pred_check_branch
    %26 = sbr.rel (0) target = $region21
  $region20: #{_vae_forward_impl.1} parent=0 // pred_region
    _
  $region21: #{_vae_forward_impl.1} parent=0 // pred_fallthru
    _
  // Predicated region
  $region22: #{_vae_forward_impl.1} parent=0 // pred_check
    _
  $region23: #{_vae_forward_impl.1} parent=0 // pred_check_branch
    %28 = sbr.rel (0) target = $region25
  $region24: #{_vae_forward_impl.1} parent=0 // pred_region
    _
  $region25: #{_vae_forward_impl.1} parent=0 // pred_fallthru
    _
  // Predicated region
  $region26: #{_vae_forward_impl.1} parent=0 // pred_check
    _
  $region27: #{_vae_forward_impl.1} parent=0 // pred_check_branch
    %30 = sbr.rel (0) target = $region29
  $region28: #{_vae_forward_impl.1} parent=0 // pred_region
    _
  $region29: #{_vae_forward_impl.1} parent=0 // pred_fallthru
    _
  // Predicated region
  $region30: #{_vae_forward_impl.1} parent=0 // pred_check
    _
  $region31: #{_vae_forward_impl.1} parent=0 // pred_check_branch
    %32 = sbr.rel (0) target = $region33
  $region32: #{_vae_forward_impl.1} parent=0 // pred_region
    _
  $region33: #{_vae_forward_impl.1} parent=0 // pred_fallthru
    _
  // Predicated region
  $region34: #{_vae_forward_impl.1} parent=0 // pred_check
    _
  $region35: #{_vae_forward_impl.1} parent=0 // pred_check_branch
    %34 = sbr.rel (0) target = $region37
  $region36: #{_vae_forward_impl.1} parent=0 // pred_region
    _
  $region37: #{_vae_forward_impl.1} parent=0 // pred_fallthru
    _
  // Predicated region
  $region38: #{_vae_forward_impl.1} parent=0 // pred_check
    _
  $region39: #{_vae_forward_impl.1} parent=0 // pred_check_branch
    %36 = sbr.rel (0) target = $region41
  $region40: #{_vae_forward_impl.1} parent=0 // pred_region
    _
  $region41: #{_vae_forward_impl.1} parent=0 // pred_fallthru
    _
  %v37 = vld [vmem:[%s0] sm:$0xff]
  %v38 = vld [vmem:[%s0 + $0x8] sm:$0xff]
  %v39 = vld [vmem:[%s0 + $0x10] sm:$0xff]
  %v40 = vld [vmem:[%s0 + $0x18] sm:$0xff]
  %v41 = vld [vmem:[%s0 + $0x20] sm:$0xff]
  %v42 = vld [vmem:[%s0 + $0x28] sm:$0xff]
  %v43 = vld [vmem:[%s0 + $0x30] sm:$0xff]
  %v44 = vld [vmem:[%s0 + $0x38] sm:$0xff]
  %v45 = vld [vmem:[%s0 + $0x40] sm:$0xff]
  %v46 = vld [vmem:[%s0 + $0x48] sm:$0xff]
  %v47 = vld [vmem:[%s0 + $0x50] sm:$0xff]
  %v48 = vld [vmem:[%s0 + $0x58] sm:$0xff]
  %v49 = vld [vmem:[%s0 + $0x60] sm:$0xff]
  %v50 = vld [vmem:[%s0 + $0x68] sm:$0xff]
  %v51 = vld [vmem:[%s0 + $0x70] sm:$0xff]
  %v52 = vld [vmem:[%s0 + $0x78] sm:$0xff]
  %v53 = vld [vmem:[%s0 + $0x80] sm:$0xff]
  %v54 = vld [vmem:[%s0 + $0x88] sm:$0xff]
  %v55 = vld [vmem:[%s0 + $0x90] sm:$0xff]
  %v56 = vld [vmem:[%s0 + $0x98] sm:$0xff]
  %v57 = vld [vmem:[%s0 + $0xa0] sm:$0xff]
  %v58 = vld [vmem:[%s0 + $0xa8] sm:$0xff]
  %v59 = vld [vmem:[%s0 + $0xb0] sm:$0xff]
  %v60 = vld [vmem:[%s0 + $0xb8] sm:$0xff]
  %v61 = vld [vmem:[%s0 + $0xc0] sm:$0xff]
  %v62 = vld [vmem:[%s0 + $0xc8] sm:$0xff]
  %v63 = vld [vmem:[%s0 + $0xd0] sm:$0xff]
  %v64 = vld [vmem:[%s0 + $0xd8] sm:$0xff]
  %v65 = vld [vmem:[%s0 + $0xe0] sm:$0xff]
  %v66 = vld [vmem:[%s0 + $0xe8] sm:$0xff]
  %v67 = vld [vmem:[%s0 + $0xf0] sm:$0xff]
  %v68 = vld [vmem:[%s0 + $0xf8] sm:$0xff]
  %v69 = vld [vmem:[%s1] sm:$0xff]
  %v70 = vld [vmem:[%s1 + $0x8] sm:$0xff]
  %v71 = vld [vmem:[%s1 + $0x10] sm:$0xff]
  %v72 = vld [vmem:[%s1 + $0x18] sm:$0xff]
  %v73 = vld [vmem:[%s1 + $0x20] sm:$0xff]
  %v74 = vld [vmem:[%s1 + $0x28] sm:$0xff]
  %v75 = vld [vmem:[%s1 + $0x30] sm:$0xff]
  %v76 = vld [vmem:[%s1 + $0x38] sm:$0xff]
  %v77 = vld [vmem:[%s1 + $0x40] sm:$0xff]
  %v78 = vld [vmem:[%s1 + $0x48] sm:$0xff]
  %v79 = vld [vmem:[%s1 + $0x50] sm:$0xff]
  %v80 = vld [vmem:[%s1 + $0x58] sm:$0xff]
  %v81 = vld [vmem:[%s1 + $0x60] sm:$0xff]
  %v82 = vld [vmem:[%s1 + $0x68] sm:$0xff]
  %v83 = vld [vmem:[%s1 + $0x70] sm:$0xff]
  %v84 = vld [vmem:[%s1 + $0x78] sm:$0xff]
  %v85 = vld [vmem:[%s1 + $0x80] sm:$0xff]
  %v86 = vld [vmem:[%s1 + $0x88] sm:$0xff]
  %v87 = vld [vmem:[%s1 + $0x90] sm:$0xff]
  %v88 = vld [vmem:[%s1 + $0x98] sm:$0xff]
  %v89 = vld [vmem:[%s1 + $0xa0] sm:$0xff]
  %v90 = vld [vmem:[%s1 + $0xa8] sm:$0xff]
  %v91 = vld [vmem:[%s1 + $0xb0] sm:$0xff]
  %v92 = vld [vmem:[%s1 + $0xb8] sm:$0xff]
  %v93 = vld [vmem:[%s1 + $0xc0] sm:$0xff]
  %v94 = vld [vmem:[%s1 + $0xc8] sm:$0xff]
  %v95 = vld [vmem:[%s1 + $0xd0] sm:$0xff]
  %v96 = vld [vmem:[%s1 + $0xd8] sm:$0xff]
  %v97 = vld [vmem:[%s1 + $0xe0] sm:$0xff]
  %v98 = vld [vmem:[%s1 + $0xe8] sm:$0xff]
  %v99 = vld [vmem:[%s1 + $0xf0] sm:$0xff]
  %v100 = vld [vmem:[%s1 + $0xf8] sm:$0xff]
  %v101 = vld [vmem:[%s2] sm:$0xff]
  %v102 = vld [vmem:[%s2 + $0x8] sm:$0xff]
  %v103 = vld [vmem:[%s2 + $0x10] sm:$0xff]
  %v104 = vld [vmem:[%s2 + $0x18] sm:$0xff]
  %v105 = vld [vmem:[%s2 + $0x20] sm:$0xff]
  %v106 = vld [vmem:[%s2 + $0x28] sm:$0xff]
  %v107 = vld [vmem:[%s2 + $0x30] sm:$0xff]
  %v108 = vld [vmem:[%s2 + $0x38] sm:$0xff]
  %v109 = vld [vmem:[%s2 + $0x40] sm:$0xff]
  %v110 = vld [vmem:[%s2 + $0x48] sm:$0xff]
  %v111 = vld [vmem:[%s2 + $0x50] sm:$0xff]
  %v112 = vld [vmem:[%s2 + $0x58] sm:$0xff]
  %v113 = vld [vmem:[%s2 + $0x60] sm:$0xff]
  %v114 = vld [vmem:[%s2 + $0x68] sm:$0xff]
  %v115 = vld [vmem:[%s2 + $0x70] sm:$0xff]
  %v116 = vld [vmem:[%s2 + $0x78] sm:$0xff]
  %v117 = vld [vmem:[%s3] sm:$0x1]
  %v118 = vld [vmem:[%s4] sm:$0xff]
  %v119 = vld [vmem:[%s4 + $0x8] sm:$0xff]
  %v120 = vld [vmem:[%s4 + $0x10] sm:$0xff]
  %v121 = vld [vmem:[%s4 + $0x18] sm:$0xff]
  %v122 = vld [vmem:[%s4 + $0x20] sm:$0xff]
  %v123 = vld [vmem:[%s4 + $0x28] sm:$0xff]
  %v124 = vld [vmem:[%s4 + $0x30] sm:$0xff]
  %v125 = vld [vmem:[%s4 + $0x38] sm:$0xff]
  %v126 = vld [vmem:[%s4 + $0x40] sm:$0xff]
  %v127 = vld [vmem:[%s4 + $0x48] sm:$0xff]
  %v128 = vld [vmem:[%s4 + $0x50] sm:$0xff]
  %v129 = vld [vmem:[%s4 + $0x58] sm:$0xff]
  %v130 = vld [vmem:[%s4 + $0x60] sm:$0xff]
  %v131 = vld [vmem:[%s4 + $0x68] sm:$0xff]
  %v132 = vld [vmem:[%s4 + $0x70] sm:$0xff]
  %v133 = vld [vmem:[%s4 + $0x78] sm:$0xff]
  %v134 = vld [vmem:[%s5] sm:$0x1]
  %v135 = vld [vmem:[%s6] sm:$0xff]
  %v136 = vld [vmem:[%s6 + $0x8] sm:$0xff]
  %v137 = vld [vmem:[%s6 + $0x10] sm:$0xff]
  %v138 = vld [vmem:[%s6 + $0x18] sm:$0xff]
  %v139 = vld [vmem:[%s6 + $0x20] sm:$0xff]
  %v140 = vld [vmem:[%s6 + $0x28] sm:$0xff]
  %v141 = vld [vmem:[%s6 + $0x30] sm:$0xff]
  %v142 = vld [vmem:[%s6 + $0x38] sm:$0xff]
  %v143 = vld [vmem:[%s7] sm:$0x1]
  %v144 = vld [vmem:[%s8] sm:$0xff]
  %v145 = vld [vmem:[%s8 + $0x8] sm:$0xff]
  %v146 = vld [vmem:[%s8 + $0x10] sm:$0xff]
  %v147 = vld [vmem:[%s8 + $0x18] sm:$0xff]
  %v148 = vld [vmem:[%s8 + $0x20] sm:$0xff]
  %v149 = vld [vmem:[%s8 + $0x28] sm:$0xff]
  %v150 = vld [vmem:[%s8 + $0x30] sm:$0xff]
  %v151 = vld [vmem:[%s8 + $0x38] sm:$0xff]
  %v152 = vld [vmem:[%s8 + $0x40] sm:$0xff]
  %v153 = vld [vmem:[%s8 + $0x48] sm:$0xff]
  %v154 = vld [vmem:[%s8 + $0x50] sm:$0xff]
  %v155 = vld [vmem:[%s8 + $0x58] sm:$0xff]
  %v156 = vld [vmem:[%s8 + $0x60] sm:$0xff]
  %v157 = vld [vmem:[%s8 + $0x68] sm:$0xff]
  %v158 = vld [vmem:[%s8 + $0x70] sm:$0xff]
  %v159 = vld [vmem:[%s8 + $0x78] sm:$0xff]
  %v160 = vld [vmem:[%s9] sm:$0x1]
  %v162 = vlaneseq
  %v163 = vshrl.u32 %v162, 7
  %v164 = vsub.s32 0, %v163
  %v165 = vrot.slane %v117, %v164
  %167 = vmatprep.subr.mxu0 0.0
  %168 = vmatpush1.msra.mxu0 %v116
  %169 = vmatprep.subr.mxu0 0.0
  %170 = vmatpush1.msra.mxu0 %v115
  %171 = vmatprep.subr.mxu0 0.0
  %172 = vmatpush1.msra.mxu0 %v114
  %173 = vmatprep.subr.mxu0 0.0
  %174 = vmatpush1.msra.mxu0 %v113
  %175 = vmatprep.subr.mxu0 0.0
  %176 = vmatpush1.msra.mxu0 %v112
  %177 = vmatprep.subr.mxu0 0.0
  %178 = vmatpush1.msra.mxu0 %v111
  %179 = vmatprep.subr.mxu0 0.0
  %180 = vmatpush1.msra.mxu0 %v110
  %181 = vmatprep.subr.mxu0 0.0
  %182 = vmatpush1.msra.mxu0 %v109
  %183 = vmatprep.subr.mxu0 0.0
  %184 = vmatpush1.msra.mxu0 %v108
  %185 = vmatprep.subr.mxu0 0.0
  %186 = vmatpush1.msra.mxu0 %v107
  %187 = vmatprep.subr.mxu0 0.0
  %188 = vmatpush1.msra.mxu0 %v106
  %189 = vmatprep.subr.mxu0 0.0
  %190 = vmatpush1.msra.mxu0 %v105
  %191 = vmatprep.subr.mxu0 0.0
  %192 = vmatpush1.msra.mxu0 %v104
  %193 = vmatprep.subr.mxu0 0.0
  %194 = vmatpush1.msra.mxu0 %v103
  %195 = vmatprep.subr.mxu0 0.0
  %196 = vmatpush1.msra.mxu0 %v102
  %197 = vmatprep.subr.mxu0 0.0
  %198 = vmatpush1.msra.mxu0 %v101
  %199 = vmatprep.subr.mxu0 0.0
  %200 = vmatpush2.msra.mxu0 0.0
  %201 = vmatprep.subr.mxu0 0.0
  %202 = vmatpush2.msra.mxu0 0.0
  %203 = vmatprep.subr.mxu0 0.0
  %204 = vmatpush2.msra.mxu0 0.0
  %205 = vmatprep.subr.mxu0 0.0
  %206 = vmatpush2.msra.mxu0 0.0
  %207 = vmatprep.subr.mxu0 0.0
  %208 = vmatpush2.msra.mxu0 0.0
  %209 = vmatprep.subr.mxu0 0.0
  %210 = vmatpush2.msra.mxu0 0.0
  %211 = vmatprep.subr.mxu0 0.0
  %212 = vmatpush2.msra.mxu0 0.0
  %213 = vmatprep.subr.mxu0 0.0
  %214 = vmatpush2.msra.mxu0 0.0
  %215 = vmatprep.subr.mxu0 0.0
  %216 = vmatpush2.msra.mxu0 0.0
  %217 = vmatprep.subr.mxu0 0.0
  %218 = vmatpush2.msra.mxu0 0.0
  %219 = vmatprep.subr.mxu0 0.0
  %220 = vmatpush2.msra.mxu0 0.0
  %221 = vmatprep.subr.mxu0 0.0
  %222 = vmatpush2.msra.mxu0 0.0
  %223 = vmatprep.subr.mxu0 0.0
  %224 = vmatpush2.msra.mxu0 0.0
  %225 = vmatprep.subr.mxu0 0.0
  %226 = vmatpush2.msra.mxu0 0.0
  %227 = vmatprep.subr.mxu0 0.0
  %228 = vmatpush2.msra.mxu0 0.0
  %229 = vmatprep.subr.mxu0 0.0
  %230 = vmatpush2.msra.mxu0 0.0
  %231 = vmatprep.mubr.f32.mxu0 0.0
  %232 = vmatmul.mubr.f32.gmra.mxu0 %v37
  %v233 = vpop.f32.mrf.mxu0
  %v234 = vadd.f32 %v165, %v233
  %v235 = vpop.f32.mrf.mxu0
  %236 = vmatprep.mubr.f32.mxu0 0.0
  %237 = vmatmul.mubr.f32.gmra.mxu0 %v38
  %v238 = vpop.f32.mrf.mxu0
  %v239 = vadd.f32 %v165, %v238
  %v240 = vpop.f32.mrf.mxu0
  %241 = vmatprep.mubr.f32.mxu0 0.0
  %242 = vmatmul.mubr.f32.gmra.mxu0 %v39
  %v243 = vpop.f32.mrf.mxu0
  %v244 = vadd.f32 %v165, %v243
  %v245 = vpop.f32.mrf.mxu0
  %246 = vmatprep.mubr.f32.mxu0 0.0
  %247 = vmatmul.mubr.f32.gmra.mxu0 %v40
  %v248 = vpop.f32.mrf.mxu0
  %v249 = vadd.f32 %v165, %v248
  %v250 = vpop.f32.mrf.mxu0
  %251 = vmatprep.mubr.f32.mxu0 0.0
  %252 = vmatmul.mubr.f32.gmra.mxu0 %v41
  %v253 = vpop.f32.mrf.mxu0
  %v254 = vadd.f32 %v165, %v253
  %v255 = vpop.f32.mrf.mxu0
  %256 = vmatprep.mubr.f32.mxu0 0.0
  %257 = vmatmul.mubr.f32.gmra.mxu0 %v42
  %v258 = vpop.f32.mrf.mxu0
  %v259 = vadd.f32 %v165, %v258
  %v260 = vpop.f32.mrf.mxu0
  %261 = vmatprep.mubr.f32.mxu0 0.0
  %262 = vmatmul.mubr.f32.gmra.mxu0 %v43
  %v263 = vpop.f32.mrf.mxu0
  %v264 = vadd.f32 %v165, %v263
  %v265 = vpop.f32.mrf.mxu0
  %266 = vmatprep.mubr.f32.mxu0 0.0
  %267 = vmatmul.mubr.f32.gmra.mxu0 %v44
  %v268 = vpop.f32.mrf.mxu0
  %v269 = vadd.f32 %v165, %v268
  %v270 = vpop.f32.mrf.mxu0
  %271 = vmatprep.mubr.f32.mxu0 0.0
  %272 = vmatmul.mubr.f32.gmra.mxu0 %v45
  %v273 = vpop.f32.mrf.mxu0
  %v274 = vadd.f32 %v165, %v273
  %v275 = vpop.f32.mrf.mxu0
  %276 = vmatprep.mubr.f32.mxu0 0.0
  %277 = vmatmul.mubr.f32.gmra.mxu0 %v46
  %v278 = vpop.f32.mrf.mxu0
  %v279 = vadd.f32 %v165, %v278
  %v280 = vpop.f32.mrf.mxu0
  %281 = vmatprep.mubr.f32.mxu0 0.0
  %282 = vmatmul.mubr.f32.gmra.mxu0 %v47
  %v283 = vpop.f32.mrf.mxu0
  %v284 = vadd.f32 %v165, %v283
  %v285 = vpop.f32.mrf.mxu0
  %286 = vmatprep.mubr.f32.mxu0 0.0
  %287 = vmatmul.mubr.f32.gmra.mxu0 %v48
  %v288 = vpop.f32.mrf.mxu0
  %v289 = vadd.f32 %v165, %v288
  %v290 = vpop.f32.mrf.mxu0
  %291 = vmatprep.mubr.f32.mxu0 0.0
  %292 = vmatmul.mubr.f32.gmra.mxu0 %v49
  %v293 = vpop.f32.mrf.mxu0
  %v294 = vadd.f32 %v165, %v293
  %v295 = vpop.f32.mrf.mxu0
  %296 = vmatprep.mubr.f32.mxu0 0.0
  %297 = vmatmul.mubr.f32.gmra.mxu0 %v50
  %v298 = vpop.f32.mrf.mxu0
  %v299 = vadd.f32 %v165, %v298
  %v300 = vpop.f32.mrf.mxu0
  %301 = vmatprep.mubr.f32.mxu0 0.0
  %302 = vmatmul.mubr.f32.gmra.mxu0 %v51
  %v303 = vpop.f32.mrf.mxu0
  %v304 = vadd.f32 %v165, %v303
  %v305 = vpop.f32.mrf.mxu0
  %306 = vmatprep.mubr.f32.mxu0 0.0
  %307 = vmatmul.mubr.f32.gmra.mxu0 %v52
  %v308 = vpop.f32.mrf.mxu0
  %v309 = vadd.f32 %v165, %v308
  %v310 = vpop.f32.mrf.mxu0
  %311 = vmatprep.mubr.f32.mxu0 0.0
  %312 = vmatmul.mubr.f32.gmra.mxu0 %v53
  %v313 = vpop.f32.mrf.mxu0
  %v314 = vadd.f32 %v165, %v313
  %v315 = vpop.f32.mrf.mxu0
  %316 = vmatprep.mubr.f32.mxu0 0.0
  %317 = vmatmul.mubr.f32.gmra.mxu0 %v54
  %v318 = vpop.f32.mrf.mxu0
  %v319 = vadd.f32 %v165, %v318
  %v320 = vpop.f32.mrf.mxu0
  %321 = vmatprep.mubr.f32.mxu0 0.0
  %322 = vmatmul.mubr.f32.gmra.mxu0 %v55
  %v323 = vpop.f32.mrf.mxu0
  %v324 = vadd.f32 %v165, %v323
  %v325 = vpop.f32.mrf.mxu0
  %326 = vmatprep.mubr.f32.mxu0 0.0
  %327 = vmatmul.mubr.f32.gmra.mxu0 %v56
  %v328 = vpop.f32.mrf.mxu0
  %v329 = vadd.f32 %v165, %v328
  %v330 = vpop.f32.mrf.mxu0
  %331 = vmatprep.mubr.f32.mxu0 0.0
  %332 = vmatmul.mubr.f32.gmra.mxu0 %v57
  %v333 = vpop.f32.mrf.mxu0
  %v334 = vadd.f32 %v165, %v333
  %v335 = vpop.f32.mrf.mxu0
  %336 = vmatprep.mubr.f32.mxu0 0.0
  %337 = vmatmul.mubr.f32.gmra.mxu0 %v58
  %v338 = vpop.f32.mrf.mxu0
  %v339 = vadd.f32 %v165, %v338
  %v340 = vpop.f32.mrf.mxu0
  %341 = vmatprep.mubr.f32.mxu0 0.0
  %342 = vmatmul.mubr.f32.gmra.mxu0 %v59
  %v343 = vpop.f32.mrf.mxu0
  %v344 = vadd.f32 %v165, %v343
  %v345 = vpop.f32.mrf.mxu0
  %346 = vmatprep.mubr.f32.mxu0 0.0
  %347 = vmatmul.mubr.f32.gmra.mxu0 %v60
  %v348 = vpop.f32.mrf.mxu0
  %v349 = vadd.f32 %v165, %v348
  %v350 = vpop.f32.mrf.mxu0
  %351 = vmatprep.mubr.f32.mxu0 0.0
  %352 = vmatmul.mubr.f32.gmra.mxu0 %v61
  %v353 = vpop.f32.mrf.mxu0
  %v354 = vadd.f32 %v165, %v353
  %v355 = vpop.f32.mrf.mxu0
  %356 = vmatprep.mubr.f32.mxu0 0.0
  %357 = vmatmul.mubr.f32.gmra.mxu0 %v62
  %v358 = vpop.f32.mrf.mxu0
  %v359 = vadd.f32 %v165, %v358
  %v360 = vpop.f32.mrf.mxu0
  %361 = vmatprep.mubr.f32.mxu0 0.0
  %362 = vmatmul.mubr.f32.gmra.mxu0 %v63
  %v363 = vpop.f32.mrf.mxu0
  %v364 = vadd.f32 %v165, %v363
  %v365 = vpop.f32.mrf.mxu0
  %366 = vmatprep.mubr.f32.mxu0 0.0
  %367 = vmatmul.mubr.f32.gmra.mxu0 %v64
  %v368 = vpop.f32.mrf.mxu0
  %v369 = vadd.f32 %v165, %v368
  %v370 = vpop.f32.mrf.mxu0
  %371 = vmatprep.mubr.f32.mxu0 0.0
  %372 = vmatmul.mubr.f32.gmra.mxu0 %v65
  %v373 = vpop.f32.mrf.mxu0
  %v374 = vadd.f32 %v165, %v373
  %v375 = vpop.f32.mrf.mxu0
  %376 = vmatprep.mubr.f32.mxu0 0.0
  %377 = vmatmul.mubr.f32.gmra.mxu0 %v66
  %v378 = vpop.f32.mrf.mxu0
  %v379 = vadd.f32 %v165, %v378
  %v380 = vpop.f32.mrf.mxu0
  %381 = vmatprep.mubr.f32.mxu0 0.0
  %382 = vmatmul.mubr.f32.gmra.mxu0 %v67
  %v383 = vpop.f32.mrf.mxu0
  %v384 = vadd.f32 %v165, %v383
  %v385 = vpop.f32.mrf.mxu0
  %386 = vmatprep.mubr.f32.mxu0 0.0
  %387 = vmatmul.mubr.f32.gmra.mxu0 %v68
  %v388 = vpop.f32.mrf.mxu0
  %v389 = vadd.f32 %v165, %v388
  %v390 = vpop.f32.mrf.mxu0
  %391 = vdwg.mxu0
  %v392 = vmax.f32 %v234, 0.0
  %v393 = vmax.f32 %v239, 0.0
  %v394 = vmax.f32 %v244, 0.0
  %v395 = vmax.f32 %v249, 0.0
  %v396 = vmax.f32 %v254, 0.0
  %v397 = vmax.f32 %v259, 0.0
  %v398 = vmax.f32 %v264, 0.0
  %v399 = vmax.f32 %v269, 0.0
  %v400 = vmax.f32 %v274, 0.0
  %v401 = vmax.f32 %v279, 0.0
  %v402 = vmax.f32 %v284, 0.0
  %v403 = vmax.f32 %v289, 0.0
  %v404 = vmax.f32 %v294, 0.0
  %v405 = vmax.f32 %v299, 0.0
  %v406 = vmax.f32 %v304, 0.0
  %v407 = vmax.f32 %v309, 0.0
  %v408 = vmax.f32 %v314, 0.0
  %v409 = vmax.f32 %v319, 0.0
  %v410 = vmax.f32 %v324, 0.0
  %v411 = vmax.f32 %v329, 0.0
  %v412 = vmax.f32 %v334, 0.0
  %v413 = vmax.f32 %v339, 0.0
  %v414 = vmax.f32 %v344, 0.0
  %v415 = vmax.f32 %v349, 0.0
  %v416 = vmax.f32 %v354, 0.0
  %v417 = vmax.f32 %v359, 0.0
  %v418 = vmax.f32 %v364, 0.0
  %v419 = vmax.f32 %v369, 0.0
  %v420 = vmax.f32 %v374, 0.0
  %v421 = vmax.f32 %v379, 0.0
  %v422 = vmax.f32 %v384, 0.0
  %v423 = vmax.f32 %v389, 0.0
  %v425 = vlaneseq
  %v426 = vshrl.u32 %v425, 7
  %v427 = vsub.s32 0, %v426
  %v428 = vrot.slane %v134, %v427
  %430 = vmatprep.subr.mxu0 0.0
  %431 = vmatpush1.msra.mxu0 %v133
  %432 = vmatprep.subr.mxu0 0.0
  %433 = vmatpush1.msra.mxu0 %v132
  %434 = vmatprep.subr.mxu0 0.0
  %435 = vmatpush1.msra.mxu0 %v131
  %436 = vmatprep.subr.mxu0 0.0
  %437 = vmatpush1.msra.mxu0 %v130
  %438 = vmatprep.subr.mxu0 0.0
  %439 = vmatpush1.msra.mxu0 %v129
  %440 = vmatprep.subr.mxu0 0.0
  %441 = vmatpush1.msra.mxu0 %v128
  %442 = vmatprep.subr.mxu0 0.0
  %443 = vmatpush1.msra.mxu0 %v127
  %444 = vmatprep.subr.mxu0 0.0
  %445 = vmatpush1.msra.mxu0 %v126
  %446 = vmatprep.subr.mxu0 0.0
  %447 = vmatpush1.msra.mxu0 %v125
  %448 = vmatprep.subr.mxu0 0.0
  %449 = vmatpush1.msra.mxu0 %v124
  %450 = vmatprep.subr.mxu0 0.0
  %451 = vmatpush1.msra.mxu0 %v123
  %452 = vmatprep.subr.mxu0 0.0
  %453 = vmatpush1.msra.mxu0 %v122
  %454 = vmatprep.subr.mxu0 0.0
  %455 = vmatpush1.msra.mxu0 %v121
  %456 = vmatprep.subr.mxu0 0.0
  %457 = vmatpush1.msra.mxu0 %v120
  %458 = vmatprep.subr.mxu0 0.0
  %459 = vmatpush1.msra.mxu0 %v119
  %460 = vmatprep.subr.mxu0 0.0
  %461 = vmatpush1.msra.mxu0 %v118
  %462 = vmatprep.subr.mxu0 0.0
  %463 = vmatpush2.msra.mxu0 0.0
  %464 = vmatprep.subr.mxu0 0.0
  %465 = vmatpush2.msra.mxu0 0.0
  %466 = vmatprep.subr.mxu0 0.0
  %467 = vmatpush2.msra.mxu0 0.0
  %468 = vmatprep.subr.mxu0 0.0
  %469 = vmatpush2.msra.mxu0 0.0
  %470 = vmatprep.subr.mxu0 0.0
  %471 = vmatpush2.msra.mxu0 0.0
  %472 = vmatprep.subr.mxu0 0.0
  %473 = vmatpush2.msra.mxu0 0.0
  %474 = vmatprep.subr.mxu0 0.0
  %475 = vmatpush2.msra.mxu0 0.0
  %476 = vmatprep.subr.mxu0 0.0
  %477 = vmatpush2.msra.mxu0 0.0
  %478 = vmatprep.subr.mxu0 0.0
  %479 = vmatpush2.msra.mxu0 0.0
  %480 = vmatprep.subr.mxu0 0.0
  %481 = vmatpush2.msra.mxu0 0.0
  %482 = vmatprep.subr.mxu0 0.0
  %483 = vmatpush2.msra.mxu0 0.0
  %484 = vmatprep.subr.mxu0 0.0
  %485 = vmatpush2.msra.mxu0 0.0
  %486 = vmatprep.subr.mxu0 0.0
  %487 = vmatpush2.msra.mxu0 0.0
  %488 = vmatprep.subr.mxu0 0.0
  %489 = vmatpush2.msra.mxu0 0.0
  %490 = vmatprep.subr.mxu0 0.0
  %491 = vmatpush2.msra.mxu0 0.0
  %492 = vmatprep.subr.mxu0 0.0
  %493 = vmatpush2.msra.mxu0 0.0
  %494 = vmatprep.mubr.f32.mxu0 0.0
  %495 = vmatmul.mubr.f32.gmra.mxu0 %v392
  %v496 = vpop.f32.mrf.mxu0
  %v497 = vadd.f32 %v428, %v496
  %v498 = vpop.f32.mrf.mxu0
  %499 = vmatprep.mubr.f32.mxu0 0.0
  %500 = vmatmul.mubr.f32.gmra.mxu0 %v393
  %v501 = vpop.f32.mrf.mxu0
  %v502 = vadd.f32 %v428, %v501
  %v503 = vpop.f32.mrf.mxu0
  %504 = vmatprep.mubr.f32.mxu0 0.0
  %505 = vmatmul.mubr.f32.gmra.mxu0 %v394
  %v506 = vpop.f32.mrf.mxu0
  %v507 = vadd.f32 %v428, %v506
  %v508 = vpop.f32.mrf.mxu0
  %509 = vmatprep.mubr.f32.mxu0 0.0
  %510 = vmatmul.mubr.f32.gmra.mxu0 %v395
  %v511 = vpop.f32.mrf.mxu0
  %v512 = vadd.f32 %v428, %v511
  %v513 = vpop.f32.mrf.mxu0
  %514 = vmatprep.mubr.f32.mxu0 0.0
  %515 = vmatmul.mubr.f32.gmra.mxu0 %v396
  %v516 = vpop.f32.mrf.mxu0
  %v517 = vadd.f32 %v428, %v516
  %v518 = vpop.f32.mrf.mxu0
  %519 = vmatprep.mubr.f32.mxu0 0.0
  %520 = vmatmul.mubr.f32.gmra.mxu0 %v397
  %v521 = vpop.f32.mrf.mxu0
  %v522 = vadd.f32 %v428, %v521
  %v523 = vpop.f32.mrf.mxu0
  %524 = vmatprep.mubr.f32.mxu0 0.0
  %525 = vmatmul.mubr.f32.gmra.mxu0 %v398
  %v526 = vpop.f32.mrf.mxu0
  %v527 = vadd.f32 %v428, %v526
  %v528 = vpop.f32.mrf.mxu0
  %529 = vmatprep.mubr.f32.mxu0 0.0
  %530 = vmatmul.mubr.f32.gmra.mxu0 %v399
  %v531 = vpop.f32.mrf.mxu0
  %v532 = vadd.f32 %v428, %v531
  %v533 = vpop.f32.mrf.mxu0
  %534 = vmatprep.mubr.f32.mxu0 0.0
  %535 = vmatmul.mubr.f32.gmra.mxu0 %v400
  %v536 = vpop.f32.mrf.mxu0
  %v537 = vadd.f32 %v428, %v536
  %v538 = vpop.f32.mrf.mxu0
  %539 = vmatprep.mubr.f32.mxu0 0.0
  %540 = vmatmul.mubr.f32.gmra.mxu0 %v401
  %v541 = vpop.f32.mrf.mxu0
  %v542 = vadd.f32 %v428, %v541
  %v543 = vpop.f32.mrf.mxu0
  %544 = vmatprep.mubr.f32.mxu0 0.0
  %545 = vmatmul.mubr.f32.gmra.mxu0 %v402
  %v546 = vpop.f32.mrf.mxu0
  %v547 = vadd.f32 %v428, %v546
  %v548 = vpop.f32.mrf.mxu0
  %549 = vmatprep.mubr.f32.mxu0 0.0
  %550 = vmatmul.mubr.f32.gmra.mxu0 %v403
  %v551 = vpop.f32.mrf.mxu0
  %v552 = vadd.f32 %v428, %v551
  %v553 = vpop.f32.mrf.mxu0
  %554 = vmatprep.mubr.f32.mxu0 0.0
  %555 = vmatmul.mubr.f32.gmra.mxu0 %v404
  %v556 = vpop.f32.mrf.mxu0
  %v557 = vadd.f32 %v428, %v556
  %v558 = vpop.f32.mrf.mxu0
  %559 = vmatprep.mubr.f32.mxu0 0.0
  %560 = vmatmul.mubr.f32.gmra.mxu0 %v405
  %v561 = vpop.f32.mrf.mxu0
  %v562 = vadd.f32 %v428, %v561
  %v563 = vpop.f32.mrf.mxu0
  %564 = vmatprep.mubr.f32.mxu0 0.0
  %565 = vmatmul.mubr.f32.gmra.mxu0 %v406
  %v566 = vpop.f32.mrf.mxu0
  %v567 = vadd.f32 %v428, %v566
  %v568 = vpop.f32.mrf.mxu0
  %569 = vmatprep.mubr.f32.mxu0 0.0
  %570 = vmatmul.mubr.f32.gmra.mxu0 %v407
  %v571 = vpop.f32.mrf.mxu0
  %v572 = vadd.f32 %v428, %v571
  %v573 = vpop.f32.mrf.mxu0
  %574 = vmatprep.mubr.f32.mxu0 0.0
  %575 = vmatmul.mubr.f32.gmra.mxu0 %v408
  %v576 = vpop.f32.mrf.mxu0
  %v577 = vadd.f32 %v428, %v576
  %v578 = vpop.f32.mrf.mxu0
  %579 = vmatprep.mubr.f32.mxu0 0.0
  %580 = vmatmul.mubr.f32.gmra.mxu0 %v409
  %v581 = vpop.f32.mrf.mxu0
  %v582 = vadd.f32 %v428, %v581
  %v583 = vpop.f32.mrf.mxu0
  %584 = vmatprep.mubr.f32.mxu0 0.0
  %585 = vmatmul.mubr.f32.gmra.mxu0 %v410
  %v586 = vpop.f32.mrf.mxu0
  %v587 = vadd.f32 %v428, %v586
  %v588 = vpop.f32.mrf.mxu0
  %589 = vmatprep.mubr.f32.mxu0 0.0
  %590 = vmatmul.mubr.f32.gmra.mxu0 %v411
  %v591 = vpop.f32.mrf.mxu0
  %v592 = vadd.f32 %v428, %v591
  %v593 = vpop.f32.mrf.mxu0
  %594 = vmatprep.mubr.f32.mxu0 0.0
  %595 = vmatmul.mubr.f32.gmra.mxu0 %v412
  %v596 = vpop.f32.mrf.mxu0
  %v597 = vadd.f32 %v428, %v596
  %v598 = vpop.f32.mrf.mxu0
  %599 = vmatprep.mubr.f32.mxu0 0.0
  %600 = vmatmul.mubr.f32.gmra.mxu0 %v413
  %v601 = vpop.f32.mrf.mxu0
  %v602 = vadd.f32 %v428, %v601
  %v603 = vpop.f32.mrf.mxu0
  %604 = vmatprep.mubr.f32.mxu0 0.0
  %605 = vmatmul.mubr.f32.gmra.mxu0 %v414
  %v606 = vpop.f32.mrf.mxu0
  %v607 = vadd.f32 %v428, %v606
  %v608 = vpop.f32.mrf.mxu0
  %609 = vmatprep.mubr.f32.mxu0 0.0
  %610 = vmatmul.mubr.f32.gmra.mxu0 %v415
  %v611 = vpop.f32.mrf.mxu0
  %v612 = vadd.f32 %v428, %v611
  %v613 = vpop.f32.mrf.mxu0
  %614 = vmatprep.mubr.f32.mxu0 0.0
  %615 = vmatmul.mubr.f32.gmra.mxu0 %v416
  %v616 = vpop.f32.mrf.mxu0
  %v617 = vadd.f32 %v428, %v616
  %v618 = vpop.f32.mrf.mxu0
  %619 = vmatprep.mubr.f32.mxu0 0.0
  %620 = vmatmul.mubr.f32.gmra.mxu0 %v417
  %v621 = vpop.f32.mrf.mxu0
  %v622 = vadd.f32 %v428, %v621
  %v623 = vpop.f32.mrf.mxu0
  %624 = vmatprep.mubr.f32.mxu0 0.0
  %625 = vmatmul.mubr.f32.gmra.mxu0 %v418
  %v626 = vpop.f32.mrf.mxu0
  %v627 = vadd.f32 %v428, %v626
  %v628 = vpop.f32.mrf.mxu0
  %629 = vmatprep.mubr.f32.mxu0 0.0
  %630 = vmatmul.mubr.f32.gmra.mxu0 %v419
  %v631 = vpop.f32.mrf.mxu0
  %v632 = vadd.f32 %v428, %v631
  %v633 = vpop.f32.mrf.mxu0
  %634 = vmatprep.mubr.f32.mxu0 0.0
  %635 = vmatmul.mubr.f32.gmra.mxu0 %v420
  %v636 = vpop.f32.mrf.mxu0
  %v637 = vadd.f32 %v428, %v636
  %v638 = vpop.f32.mrf.mxu0
  %639 = vmatprep.mubr.f32.mxu0 0.0
  %640 = vmatmul.mubr.f32.gmra.mxu0 %v421
  %v641 = vpop.f32.mrf.mxu0
  %v642 = vadd.f32 %v428, %v641
  %v643 = vpop.f32.mrf.mxu0
  %644 = vmatprep.mubr.f32.mxu0 0.0
  %645 = vmatmul.mubr.f32.gmra.mxu0 %v422
  %v646 = vpop.f32.mrf.mxu0
  %v647 = vadd.f32 %v428, %v646
  %v648 = vpop.f32.mrf.mxu0
  %649 = vmatprep.mubr.f32.mxu0 0.0
  %650 = vmatmul.mubr.f32.gmra.mxu0 %v423
  %v651 = vpop.f32.mrf.mxu0
  %v652 = vadd.f32 %v428, %v651
  %v653 = vpop.f32.mrf.mxu0
  %654 = vdwg.mxu0
  %v655 = vmul.f32 %v497, 0.5
  %v656 = vmul.f32 %v502, 0.5
  %v657 = vmul.f32 %v507, 0.5
  %v658 = vmul.f32 %v512, 0.5
  %v659 = vmul.f32 %v517, 0.5
  %v660 = vmul.f32 %v522, 0.5
  %v661 = vmul.f32 %v527, 0.5
  %v662 = vmul.f32 %v532, 0.5
  %v663 = vmul.f32 %v537, 0.5
  %v664 = vmul.f32 %v542, 0.5
  %v665 = vmul.f32 %v547, 0.5
  %v666 = vmul.f32 %v552, 0.5
  %v667 = vmul.f32 %v557, 0.5
  %v668 = vmul.f32 %v562, 0.5
  %v669 = vmul.f32 %v567, 0.5
  %v670 = vmul.f32 %v572, 0.5
  %v671 = vmul.f32 %v577, 0.5
  %v672 = vmul.f32 %v582, 0.5
  %v673 = vmul.f32 %v587, 0.5
  %v674 = vmul.f32 %v592, 0.5
  %v675 = vmul.f32 %v597, 0.5
  %v676 = vmul.f32 %v602, 0.5
  %v677 = vmul.f32 %v607, 0.5
  %v678 = vmul.f32 %v612, 0.5
  %v679 = vmul.f32 %v617, 0.5
  %v680 = vmul.f32 %v622, 0.5
  %v681 = vmul.f32 %v627, 0.5
  %v682 = vmul.f32 %v632, 0.5
  %v683 = vmul.f32 %v637, 0.5
  %v684 = vmul.f32 %v642, 0.5
  %v685 = vmul.f32 %v647, 0.5
  %v686 = vmul.f32 %v652, 0.5
  %v687 = vmul.f32 %v655, 1.442695
  %v688 = vpow.pop %v687
  %v689 = vmul.f32 %v656, 1.442695
  %v690 = vpow.pop %v689
  %v691 = vmul.f32 %v657, 1.442695
  %v692 = vpow.pop %v691
  %v693 = vmul.f32 %v658, 1.442695
  %v694 = vpow.pop %v693
  %v695 = vmul.f32 %v659, 1.442695
  %v696 = vpow.pop %v695
  %v697 = vmul.f32 %v660, 1.442695
  %v698 = vpow.pop %v697
  %v699 = vmul.f32 %v661, 1.442695
  %v700 = vpow.pop %v699
  %v701 = vmul.f32 %v662, 1.442695
  %v702 = vpow.pop %v701
  %v703 = vmul.f32 %v663, 1.442695
  %v704 = vpow.pop %v703
  %v705 = vmul.f32 %v664, 1.442695
  %v706 = vpow.pop %v705
  %v707 = vmul.f32 %v665, 1.442695
  %v708 = vpow.pop %v707
  %v709 = vmul.f32 %v666, 1.442695
  %v710 = vpow.pop %v709
  %v711 = vmul.f32 %v667, 1.442695
  %v712 = vpow.pop %v711
  %v713 = vmul.f32 %v668, 1.442695
  %v714 = vpow.pop %v713
  %v715 = vmul.f32 %v669, 1.442695
  %v716 = vpow.pop %v715
  %v717 = vmul.f32 %v670, 1.442695
  %v718 = vpow.pop %v717
  %v719 = vmul.f32 %v671, 1.442695
  %v720 = vpow.pop %v719
  %v721 = vmul.f32 %v672, 1.442695
  %v722 = vpow.pop %v721
  %v723 = vmul.f32 %v673, 1.442695
  %v724 = vpow.pop %v723
  %v725 = vmul.f32 %v674, 1.442695
  %v726 = vpow.pop %v725
  %v727 = vmul.f32 %v675, 1.442695
  %v728 = vpow.pop %v727
  %v729 = vmul.f32 %v676, 1.442695
  %v730 = vpow.pop %v729
  %v731 = vmul.f32 %v677, 1.442695
  %v732 = vpow.pop %v731
  %v733 = vmul.f32 %v678, 1.442695
  %v734 = vpow.pop %v733
  %v735 = vmul.f32 %v679, 1.442695
  %v736 = vpow.pop %v735
  %v737 = vmul.f32 %v680, 1.442695
  %v738 = vpow.pop %v737
  %v739 = vmul.f32 %v681, 1.442695
  %v740 = vpow.pop %v739
  %v741 = vmul.f32 %v682, 1.442695
  %v742 = vpow.pop %v741
  %v743 = vmul.f32 %v683, 1.442695
  %v744 = vpow.pop %v743
  %v745 = vmul.f32 %v684, 1.442695
  %v746 = vpow.pop %v745
  %v747 = vmul.f32 %v685, 1.442695
  %v748 = vpow.pop %v747
  %v749 = vmul.f32 %v686, 1.442695
  %v750 = vpow.pop %v749
  %783 = vrot.lane.b32.xlu0 %v688, 64
  %v784 = vpop.permute.xlu0 %783
  %785 = vrot.lane.b32.xlu0 %v690, 64
  %v786 = vpop.permute.xlu0 %785
  %787 = vrot.lane.b32.xlu0 %v692, 64
  %v788 = vpop.permute.xlu0 %787
  %789 = vrot.lane.b32.xlu0 %v694, 64
  %v790 = vpop.permute.xlu0 %789
  %791 = vrot.lane.b32.xlu0 %v696, 64
  %v792 = vpop.permute.xlu0 %791
  %793 = vrot.lane.b32.xlu0 %v698, 64
  %v794 = vpop.permute.xlu0 %793
  %795 = vrot.lane.b32.xlu0 %v700, 64
  %v796 = vpop.permute.xlu0 %795
  %797 = vrot.lane.b32.xlu0 %v702, 64
  %v798 = vpop.permute.xlu0 %797
  %799 = vrot.lane.b32.xlu0 %v704, 64
  %v800 = vpop.permute.xlu0 %799
  %801 = vrot.lane.b32.xlu0 %v706, 64
  %v802 = vpop.permute.xlu0 %801
  %803 = vrot.lane.b32.xlu0 %v708, 64
  %v804 = vpop.permute.xlu0 %803
  %805 = vrot.lane.b32.xlu0 %v710, 64
  %v806 = vpop.permute.xlu0 %805
  %807 = vrot.lane.b32.xlu0 %v712, 64
  %v808 = vpop.permute.xlu0 %807
  %809 = vrot.lane.b32.xlu0 %v714, 64
  %v810 = vpop.permute.xlu0 %809
  %811 = vrot.lane.b32.xlu0 %v716, 64
  %v812 = vpop.permute.xlu0 %811
  %813 = vrot.lane.b32.xlu0 %v718, 64
  %v814 = vpop.permute.xlu0 %813
  %815 = vrot.lane.b32.xlu0 %v720, 64
  %v816 = vpop.permute.xlu0 %815
  %817 = vrot.lane.b32.xlu0 %v722, 64
  %v818 = vpop.permute.xlu0 %817
  %819 = vrot.lane.b32.xlu0 %v724, 64
  %v820 = vpop.permute.xlu0 %819
  %821 = vrot.lane.b32.xlu0 %v726, 64
  %v822 = vpop.permute.xlu0 %821
  %823 = vrot.lane.b32.xlu0 %v728, 64
  %v824 = vpop.permute.xlu0 %823
  %825 = vrot.lane.b32.xlu0 %v730, 64
  %v826 = vpop.permute.xlu0 %825
  %827 = vrot.lane.b32.xlu0 %v732, 64
  %v828 = vpop.permute.xlu0 %827
  %829 = vrot.lane.b32.xlu0 %v734, 64
  %v830 = vpop.permute.xlu0 %829
  %831 = vrot.lane.b32.xlu0 %v736, 64
  %v832 = vpop.permute.xlu0 %831
  %833 = vrot.lane.b32.xlu0 %v738, 64
  %v834 = vpop.permute.xlu0 %833
  %835 = vrot.lane.b32.xlu0 %v740, 64
  %v836 = vpop.permute.xlu0 %835
  %837 = vrot.lane.b32.xlu0 %v742, 64
  %v838 = vpop.permute.xlu0 %837
  %839 = vrot.lane.b32.xlu0 %v744, 64
  %v840 = vpop.permute.xlu0 %839
  %841 = vrot.lane.b32.xlu0 %v746, 64
  %v842 = vpop.permute.xlu0 %841
  %843 = vrot.lane.b32.xlu0 %v748, 64
  %v844 = vpop.permute.xlu0 %843
  %845 = vrot.lane.b32.xlu0 %v750, 64
  %v846 = vpop.permute.xlu0 %845
  %v879 = vmul.f32 %v69, %v784
  %v880 = vmul.f32 %v70, %v786
  %v881 = vmul.f32 %v71, %v788
  %v882 = vmul.f32 %v72, %v790
  %v883 = vmul.f32 %v73, %v792
  %v884 = vmul.f32 %v74, %v794
  %v885 = vmul.f32 %v75, %v796
  %v886 = vmul.f32 %v76, %v798
  %v887 = vmul.f32 %v77, %v800
  %v888 = vmul.f32 %v78, %v802
  %v889 = vmul.f32 %v79, %v804
  %v890 = vmul.f32 %v80, %v806
  %v891 = vmul.f32 %v81, %v808
  %v892 = vmul.f32 %v82, %v810
  %v893 = vmul.f32 %v83, %v812
  %v894 = vmul.f32 %v84, %v814
  %v895 = vmul.f32 %v85, %v816
  %v896 = vmul.f32 %v86, %v818
  %v897 = vmul.f32 %v87, %v820
  %v898 = vmul.f32 %v88, %v822
  %v899 = vmul.f32 %v89, %v824
  %v900 = vmul.f32 %v90, %v826
  %v901 = vmul.f32 %v91, %v828
  %v902 = vmul.f32 %v92, %v830
  %v903 = vmul.f32 %v93, %v832
  %v904 = vmul.f32 %v94, %v834
  %v905 = vmul.f32 %v95, %v836
  %v906 = vmul.f32 %v96, %v838
  %v907 = vmul.f32 %v97, %v840
  %v908 = vmul.f32 %v98, %v842
  %v909 = vmul.f32 %v99, %v844
  %v910 = vmul.f32 %v100, %v846
  %v911 = vadd.f32 %v497, %v879
  %v912 = vadd.f32 %v502, %v880
  %v913 = vadd.f32 %v507, %v881
  %v914 = vadd.f32 %v512, %v882
  %v915 = vadd.f32 %v517, %v883
  %v916 = vadd.f32 %v522, %v884
  %v917 = vadd.f32 %v527, %v885
  %v918 = vadd.f32 %v532, %v886
  %v919 = vadd.f32 %v537, %v887
  %v920 = vadd.f32 %v542, %v888
  %v921 = vadd.f32 %v547, %v889
  %v922 = vadd.f32 %v552, %v890
  %v923 = vadd.f32 %v557, %v891
  %v924 = vadd.f32 %v562, %v892
  %v925 = vadd.f32 %v567, %v893
  %v926 = vadd.f32 %v572, %v894
  %v927 = vadd.f32 %v577, %v895
  %v928 = vadd.f32 %v582, %v896
  %v929 = vadd.f32 %v587, %v897
  %v930 = vadd.f32 %v592, %v898
  %v931 = vadd.f32 %v597, %v899
  %v932 = vadd.f32 %v602, %v900
  %v933 = vadd.f32 %v607, %v901
  %v934 = vadd.f32 %v612, %v902
  %v935 = vadd.f32 %v617, %v903
  %v936 = vadd.f32 %v622, %v904
  %v937 = vadd.f32 %v627, %v905
  %v938 = vadd.f32 %v632, %v906
  %v939 = vadd.f32 %v637, %v907
  %v940 = vadd.f32 %v642, %v908
  %v941 = vadd.f32 %v647, %v909
  %v942 = vadd.f32 %v652, %v910
  %v944 = vlaneseq
  %v945 = vshrl.u32 %v944, 7
  %v946 = vsub.s32 0, %v945
  %v947 = vrot.slane %v143, %v946
  %vm949 = vcmask 523264
  %v951 = vsel %vm949, %v911, 0
  %v954 = vsel %vm949, %v912, 0
  %v957 = vsel %vm949, %v913, 0
  %v960 = vsel %vm949, %v914, 0
  %v963 = vsel %vm949, %v915, 0
  %v966 = vsel %vm949, %v916, 0
  %v969 = vsel %vm949, %v917, 0
  %v972 = vsel %vm949, %v918, 0
  %v975 = vsel %vm949, %v919, 0
  %v978 = vsel %vm949, %v920, 0
  %v981 = vsel %vm949, %v921, 0
  %v984 = vsel %vm949, %v922, 0
  %v987 = vsel %vm949, %v923, 0
  %v990 = vsel %vm949, %v924, 0
  %v993 = vsel %vm949, %v925, 0
  %v996 = vsel %vm949, %v926, 0
  %v999 = vsel %vm949, %v927, 0
  %v1002 = vsel %vm949, %v928, 0
  %v1005 = vsel %vm949, %v929, 0
  %v1008 = vsel %vm949, %v930, 0
  %v1011 = vsel %vm949, %v931, 0
  %v1014 = vsel %vm949, %v932, 0
  %v1017 = vsel %vm949, %v933, 0
  %v1020 = vsel %vm949, %v934, 0
  %v1023 = vsel %vm949, %v935, 0
  %v1026 = vsel %vm949, %v936, 0
  %v1029 = vsel %vm949, %v937, 0
  %v1032 = vsel %vm949, %v938, 0
  %v1035 = vsel %vm949, %v939, 0
  %v1038 = vsel %vm949, %v940, 0
  %v1041 = vsel %vm949, %v941, 0
  %v1044 = vsel %vm949, %v942, 0
  %1046 = vmatprep.subr.mxu0 0.0
  %1047 = vmatpush1.msra.mxu0 0.0
  %1048 = vmatprep.subr.mxu0 0.0
  %1049 = vmatpush1.msra.mxu0 0.0
  %1050 = vmatprep.subr.mxu0 0.0
  %1051 = vmatpush1.msra.mxu0 0.0
  %1052 = vmatprep.subr.mxu0 0.0
  %1053 = vmatpush1.msra.mxu0 0.0
  %1054 = vmatprep.subr.mxu0 0.0
  %1055 = vmatpush1.msra.mxu0 0.0
  %1056 = vmatprep.subr.mxu0 0.0
  %1057 = vmatpush1.msra.mxu0 0.0
  %1058 = vmatprep.subr.mxu0 0.0
  %1059 = vmatpush1.msra.mxu0 0.0
  %1060 = vmatprep.subr.mxu0 0.0
  %1061 = vmatpush1.msra.mxu0 0.0
  %1062 = vmatprep.subr.mxu0 0.0
  %1063 = vmatpush1.msra.mxu0 %v142
  %1064 = vmatprep.subr.mxu0 0.0
  %1065 = vmatpush1.msra.mxu0 %v141
  %1066 = vmatprep.subr.mxu0 0.0
  %1067 = vmatpush1.msra.mxu0 %v140
  %1068 = vmatprep.subr.mxu0 0.0
  %1069 = vmatpush1.msra.mxu0 %v139
  %1070 = vmatprep.subr.mxu0 0.0
  %1071 = vmatpush1.msra.mxu0 %v138
  %1072 = vmatprep.subr.mxu0 0.0
  %1073 = vmatpush1.msra.mxu0 %v137
  %1074 = vmatprep.subr.mxu0 0.0
  %1075 = vmatpush1.msra.mxu0 %v136
  %1076 = vmatprep.subr.mxu0 0.0
  %1077 = vmatpush1.msra.mxu0 %v135
  %1078 = vmatprep.subr.mxu0 0.0
  %1079 = vmatpush2.msra.mxu0 0.0
  %1080 = vmatprep.subr.mxu0 0.0
  %1081 = vmatpush2.msra.mxu0 0.0
  %1082 = vmatprep.subr.mxu0 0.0
  %1083 = vmatpush2.msra.mxu0 0.0
  %1084 = vmatprep.subr.mxu0 0.0
  %1085 = vmatpush2.msra.mxu0 0.0
  %1086 = vmatprep.subr.mxu0 0.0
  %1087 = vmatpush2.msra.mxu0 0.0
  %1088 = vmatprep.subr.mxu0 0.0
  %1089 = vmatpush2.msra.mxu0 0.0
  %1090 = vmatprep.subr.mxu0 0.0
  %1091 = vmatpush2.msra.mxu0 0.0
  %1092 = vmatprep.subr.mxu0 0.0
  %1093 = vmatpush2.msra.mxu0 0.0
  %1094 = vmatprep.subr.mxu0 0.0
  %1095 = vmatpush2.msra.mxu0 0.0
  %1096 = vmatprep.subr.mxu0 0.0
  %1097 = vmatpush2.msra.mxu0 0.0
  %1098 = vmatprep.subr.mxu0 0.0
  %1099 = vmatpush2.msra.mxu0 0.0
  %1100 = vmatprep.subr.mxu0 0.0
  %1101 = vmatpush2.msra.mxu0 0.0
  %1102 = vmatprep.subr.mxu0 0.0
  %1103 = vmatpush2.msra.mxu0 0.0
  %1104 = vmatprep.subr.mxu0 0.0
  %1105 = vmatpush2.msra.mxu0 0.0
  %1106 = vmatprep.subr.mxu0 0.0
  %1107 = vmatpush2.msra.mxu0 0.0
  %1108 = vmatprep.subr.mxu0 0.0
  %1109 = vmatpush2.msra.mxu0 0.0
  %1110 = vmatprep.mubr.f32.mxu0 0.0
  %1111 = vmatmul.mubr.f32.gmra.mxu0 %v951
  %v1112 = vpop.f32.mrf.mxu0
  %v1113 = vadd.f32 %v947, %v1112
  %v1114 = vpop.f32.mrf.mxu0
  %1115 = vmatprep.mubr.f32.mxu0 0.0
  %1116 = vmatmul.mubr.f32.gmra.mxu0 %v954
  %v1117 = vpop.f32.mrf.mxu0
  %v1118 = vadd.f32 %v947, %v1117
  %v1119 = vpop.f32.mrf.mxu0
  %1120 = vmatprep.mubr.f32.mxu0 0.0
  %1121 = vmatmul.mubr.f32.gmra.mxu0 %v957
  %v1122 = vpop.f32.mrf.mxu0
  %v1123 = vadd.f32 %v947, %v1122
  %v1124 = vpop.f32.mrf.mxu0
  %1125 = vmatprep.mubr.f32.mxu0 0.0
  %1126 = vmatmul.mubr.f32.gmra.mxu0 %v960
  %v1127 = vpop.f32.mrf.mxu0
  %v1128 = vadd.f32 %v947, %v1127
  %v1129 = vpop.f32.mrf.mxu0
  %1130 = vmatprep.mubr.f32.mxu0 0.0
  %1131 = vmatmul.mubr.f32.gmra.mxu0 %v963
  %v1132 = vpop.f32.mrf.mxu0
  %v1133 = vadd.f32 %v947, %v1132
  %v1134 = vpop.f32.mrf.mxu0
  %1135 = vmatprep.mubr.f32.mxu0 0.0
  %1136 = vmatmul.mubr.f32.gmra.mxu0 %v966
  %v1137 = vpop.f32.mrf.mxu0
  %v1138 = vadd.f32 %v947, %v1137
  %v1139 = vpop.f32.mrf.mxu0
  %1140 = vmatprep.mubr.f32.mxu0 0.0
  %1141 = vmatmul.mubr.f32.gmra.mxu0 %v969
  %v1142 = vpop.f32.mrf.mxu0
  %v1143 = vadd.f32 %v947, %v1142
  %v1144 = vpop.f32.mrf.mxu0
  %1145 = vmatprep.mubr.f32.mxu0 0.0
  %1146 = vmatmul.mubr.f32.gmra.mxu0 %v972
  %v1147 = vpop.f32.mrf.mxu0
  %v1148 = vadd.f32 %v947, %v1147
  %v1149 = vpop.f32.mrf.mxu0
  %1150 = vmatprep.mubr.f32.mxu0 0.0
  %1151 = vmatmul.mubr.f32.gmra.mxu0 %v975
  %v1152 = vpop.f32.mrf.mxu0
  %v1153 = vadd.f32 %v947, %v1152
  %v1154 = vpop.f32.mrf.mxu0
  %1155 = vmatprep.mubr.f32.mxu0 0.0
  %1156 = vmatmul.mubr.f32.gmra.mxu0 %v978
  %v1157 = vpop.f32.mrf.mxu0
  %v1158 = vadd.f32 %v947, %v1157
  %v1159 = vpop.f32.mrf.mxu0
  %1160 = vmatprep.mubr.f32.mxu0 0.0
  %1161 = vmatmul.mubr.f32.gmra.mxu0 %v981
  %v1162 = vpop.f32.mrf.mxu0
  %v1163 = vadd.f32 %v947, %v1162
  %v1164 = vpop.f32.mrf.mxu0
  %1165 = vmatprep.mubr.f32.mxu0 0.0
  %1166 = vmatmul.mubr.f32.gmra.mxu0 %v984
  %v1167 = vpop.f32.mrf.mxu0
  %v1168 = vadd.f32 %v947, %v1167
  %v1169 = vpop.f32.mrf.mxu0
  %1170 = vmatprep.mubr.f32.mxu0 0.0
  %1171 = vmatmul.mubr.f32.gmra.mxu0 %v987
  %v1172 = vpop.f32.mrf.mxu0
  %v1173 = vadd.f32 %v947, %v1172
  %v1174 = vpop.f32.mrf.mxu0
  %1175 = vmatprep.mubr.f32.mxu0 0.0
  %1176 = vmatmul.mubr.f32.gmra.mxu0 %v990
  %v1177 = vpop.f32.mrf.mxu0
  %v1178 = vadd.f32 %v947, %v1177
  %v1179 = vpop.f32.mrf.mxu0
  %1180 = vmatprep.mubr.f32.mxu0 0.0
  %1181 = vmatmul.mubr.f32.gmra.mxu0 %v993
  %v1182 = vpop.f32.mrf.mxu0
  %v1183 = vadd.f32 %v947, %v1182
  %v1184 = vpop.f32.mrf.mxu0
  %1185 = vmatprep.mubr.f32.mxu0 0.0
  %1186 = vmatmul.mubr.f32.gmra.mxu0 %v996
  %v1187 = vpop.f32.mrf.mxu0
  %v1188 = vadd.f32 %v947, %v1187
  %v1189 = vpop.f32.mrf.mxu0
  %1190 = vmatprep.mubr.f32.mxu0 0.0
  %1191 = vmatmul.mubr.f32.gmra.mxu0 %v999
  %v1192 = vpop.f32.mrf.mxu0
  %v1193 = vadd.f32 %v947, %v1192
  %v1194 = vpop.f32.mrf.mxu0
  %1195 = vmatprep.mubr.f32.mxu0 0.0
  %1196 = vmatmul.mubr.f32.gmra.mxu0 %v1002
  %v1197 = vpop.f32.mrf.mxu0
  %v1198 = vadd.f32 %v947, %v1197
  %v1199 = vpop.f32.mrf.mxu0
  %1200 = vmatprep.mubr.f32.mxu0 0.0
  %1201 = vmatmul.mubr.f32.gmra.mxu0 %v1005
  %v1202 = vpop.f32.mrf.mxu0
  %v1203 = vadd.f32 %v947, %v1202
  %v1204 = vpop.f32.mrf.mxu0
  %1205 = vmatprep.mubr.f32.mxu0 0.0
  %1206 = vmatmul.mubr.f32.gmra.mxu0 %v1008
  %v1207 = vpop.f32.mrf.mxu0
  %v1208 = vadd.f32 %v947, %v1207
  %v1209 = vpop.f32.mrf.mxu0
  %1210 = vmatprep.mubr.f32.mxu0 0.0
  %1211 = vmatmul.mubr.f32.gmra.mxu0 %v1011
  %v1212 = vpop.f32.mrf.mxu0
  %v1213 = vadd.f32 %v947, %v1212
  %v1214 = vpop.f32.mrf.mxu0
  %1215 = vmatprep.mubr.f32.mxu0 0.0
  %1216 = vmatmul.mubr.f32.gmra.mxu0 %v1014
  %v1217 = vpop.f32.mrf.mxu0
  %v1218 = vadd.f32 %v947, %v1217
  %v1219 = vpop.f32.mrf.mxu0
  %1220 = vmatprep.mubr.f32.mxu0 0.0
  %1221 = vmatmul.mubr.f32.gmra.mxu0 %v1017
  %v1222 = vpop.f32.mrf.mxu0
  %v1223 = vadd.f32 %v947, %v1222
  %v1224 = vpop.f32.mrf.mxu0
  %1225 = vmatprep.mubr.f32.mxu0 0.0
  %1226 = vmatmul.mubr.f32.gmra.mxu0 %v1020
  %v1227 = vpop.f32.mrf.mxu0
  %v1228 = vadd.f32 %v947, %v1227
  %v1229 = vpop.f32.mrf.mxu0
  %1230 = vmatprep.mubr.f32.mxu0 0.0
  %1231 = vmatmul.mubr.f32.gmra.mxu0 %v1023
  %v1232 = vpop.f32.mrf.mxu0
  %v1233 = vadd.f32 %v947, %v1232
  %v1234 = vpop.f32.mrf.mxu0
  %1235 = vmatprep.mubr.f32.mxu0 0.0
  %1236 = vmatmul.mubr.f32.gmra.mxu0 %v1026
  %v1237 = vpop.f32.mrf.mxu0
  %v1238 = vadd.f32 %v947, %v1237
  %v1239 = vpop.f32.mrf.mxu0
  %1240 = vmatprep.mubr.f32.mxu0 0.0
  %1241 = vmatmul.mubr.f32.gmra.mxu0 %v1029
  %v1242 = vpop.f32.mrf.mxu0
  %v1243 = vadd.f32 %v947, %v1242
  %v1244 = vpop.f32.mrf.mxu0
  %1245 = vmatprep.mubr.f32.mxu0 0.0
  %1246 = vmatmul.mubr.f32.gmra.mxu0 %v1032
  %v1247 = vpop.f32.mrf.mxu0
  %v1248 = vadd.f32 %v947, %v1247
  %v1249 = vpop.f32.mrf.mxu0
  %1250 = vmatprep.mubr.f32.mxu0 0.0
  %1251 = vmatmul.mubr.f32.gmra.mxu0 %v1035
  %v1252 = vpop.f32.mrf.mxu0
  %v1253 = vadd.f32 %v947, %v1252
  %v1254 = vpop.f32.mrf.mxu0
  %1255 = vmatprep.mubr.f32.mxu0 0.0
  %1256 = vmatmul.mubr.f32.gmra.mxu0 %v1038
  %v1257 = vpop.f32.mrf.mxu0
  %v1258 = vadd.f32 %v947, %v1257
  %v1259 = vpop.f32.mrf.mxu0
  %1260 = vmatprep.mubr.f32.mxu0 0.0
  %1261 = vmatmul.mubr.f32.gmra.mxu0 %v1041
  %v1262 = vpop.f32.mrf.mxu0
  %v1263 = vadd.f32 %v947, %v1262
  %v1264 = vpop.f32.mrf.mxu0
  %1265 = vmatprep.mubr.f32.mxu0 0.0
  %1266 = vmatmul.mubr.f32.gmra.mxu0 %v1044
  %v1267 = vpop.f32.mrf.mxu0
  %v1268 = vadd.f32 %v947, %v1267
  %v1269 = vpop.f32.mrf.mxu0
  %1270 = vdwg.mxu0
  %v1271 = vmax.f32 %v1113, 0.0
  %v1272 = vmax.f32 %v1118, 0.0
  %v1273 = vmax.f32 %v1123, 0.0
  %v1274 = vmax.f32 %v1128, 0.0
  %v1275 = vmax.f32 %v1133, 0.0
  %v1276 = vmax.f32 %v1138, 0.0
  %v1277 = vmax.f32 %v1143, 0.0
  %v1278 = vmax.f32 %v1148, 0.0
  %v1279 = vmax.f32 %v1153, 0.0
  %v1280 = vmax.f32 %v1158, 0.0
  %v1281 = vmax.f32 %v1163, 0.0
  %v1282 = vmax.f32 %v1168, 0.0
  %v1283 = vmax.f32 %v1173, 0.0
  %v1284 = vmax.f32 %v1178, 0.0
  %v1285 = vmax.f32 %v1183, 0.0
  %v1286 = vmax.f32 %v1188, 0.0
  %v1287 = vmax.f32 %v1193, 0.0
  %v1288 = vmax.f32 %v1198, 0.0
  %v1289 = vmax.f32 %v1203, 0.0
  %v1290 = vmax.f32 %v1208, 0.0
  %v1291 = vmax.f32 %v1213, 0.0
  %v1292 = vmax.f32 %v1218, 0.0
  %v1293 = vmax.f32 %v1223, 0.0
  %v1294 = vmax.f32 %v1228, 0.0
  %v1295 = vmax.f32 %v1233, 0.0
  %v1296 = vmax.f32 %v1238, 0.0
  %v1297 = vmax.f32 %v1243, 0.0
  %v1298 = vmax.f32 %v1248, 0.0
  %v1299 = vmax.f32 %v1253, 0.0
  %v1300 = vmax.f32 %v1258, 0.0
  %v1301 = vmax.f32 %v1263, 0.0
  %v1302 = vmax.f32 %v1268, 0.0
  %v1304 = vlaneseq
  %v1305 = vshrl.u32 %v1304, 7
  %v1306 = vsub.s32 0, %v1305
  %v1307 = vrot.slane %v160, %v1306
  %1309 = vmatprep.subr.mxu0 0.0
  %1310 = vmatpush1.msra.mxu0 %v159
  %1311 = vmatprep.subr.mxu0 0.0
  %1312 = vmatpush1.msra.mxu0 %v158
  %1313 = vmatprep.subr.mxu0 0.0
  %1314 = vmatpush1.msra.mxu0 %v157
  %1315 = vmatprep.subr.mxu0 0.0
  %1316 = vmatpush1.msra.mxu0 %v156
  %1317 = vmatprep.subr.mxu0 0.0
  %1318 = vmatpush1.msra.mxu0 %v155
  %1319 = vmatprep.subr.mxu0 0.0
  %1320 = vmatpush1.msra.mxu0 %v154
  %1321 = vmatprep.subr.mxu0 0.0
  %1322 = vmatpush1.msra.mxu0 %v153
  %1323 = vmatprep.subr.mxu0 0.0
  %1324 = vmatpush1.msra.mxu0 %v152
  %1325 = vmatprep.subr.mxu0 0.0
  %1326 = vmatpush1.msra.mxu0 %v151
  %1327 = vmatprep.subr.mxu0 0.0
  %1328 = vmatpush1.msra.mxu0 %v150
  %1329 = vmatprep.subr.mxu0 0.0
  %1330 = vmatpush1.msra.mxu0 %v149
  %1331 = vmatprep.subr.mxu0 0.0
  %1332 = vmatpush1.msra.mxu0 %v148
  %1333 = vmatprep.subr.mxu0 0.0
  %1334 = vmatpush1.msra.mxu0 %v147
  %1335 = vmatprep.subr.mxu0 0.0
  %1336 = vmatpush1.msra.mxu0 %v146
  %1337 = vmatprep.subr.mxu0 0.0
  %1338 = vmatpush1.msra.mxu0 %v145
  %1339 = vmatprep.subr.mxu0 0.0
  %1340 = vmatpush1.msra.mxu0 %v144
  %1341 = vmatprep.subr.mxu0 0.0
  %1342 = vmatpush2.msra.mxu0 0.0
  %1343 = vmatprep.subr.mxu0 0.0
  %1344 = vmatpush2.msra.mxu0 0.0
  %1345 = vmatprep.subr.mxu0 0.0
  %1346 = vmatpush2.msra.mxu0 0.0
  %1347 = vmatprep.subr.mxu0 0.0
  %1348 = vmatpush2.msra.mxu0 0.0
  %1349 = vmatprep.subr.mxu0 0.0
  %1350 = vmatpush2.msra.mxu0 0.0
  %1351 = vmatprep.subr.mxu0 0.0
  %1352 = vmatpush2.msra.mxu0 0.0
  %1353 = vmatprep.subr.mxu0 0.0
  %1354 = vmatpush2.msra.mxu0 0.0
  %1355 = vmatprep.subr.mxu0 0.0
  %1356 = vmatpush2.msra.mxu0 0.0
  %1357 = vmatprep.subr.mxu0 0.0
  %1358 = vmatpush2.msra.mxu0 0.0
  %1359 = vmatprep.subr.mxu0 0.0
  %1360 = vmatpush2.msra.mxu0 0.0
  %1361 = vmatprep.subr.mxu0 0.0
  %1362 = vmatpush2.msra.mxu0 0.0
  %1363 = vmatprep.subr.mxu0 0.0
  %1364 = vmatpush2.msra.mxu0 0.0
  %1365 = vmatprep.subr.mxu0 0.0
  %1366 = vmatpush2.msra.mxu0 0.0
  %1367 = vmatprep.subr.mxu0 0.0
  %1368 = vmatpush2.msra.mxu0 0.0
  %1369 = vmatprep.subr.mxu0 0.0
  %1370 = vmatpush2.msra.mxu0 0.0
  %1371 = vmatprep.subr.mxu0 0.0
  %1372 = vmatpush2.msra.mxu0 0.0
  %1373 = vmatprep.mubr.f32.mxu0 0.0
  %1374 = vmatmul.mubr.f32.gmra.mxu0 %v1271
  %v1375 = vpop.f32.mrf.mxu0
  %v1376 = vadd.f32 %v1307, %v1375
  %v1377 = vpop.f32.mrf.mxu0
  %1378 = vmatprep.mubr.f32.mxu0 0.0
  %1379 = vmatmul.mubr.f32.gmra.mxu0 %v1272
  %v1380 = vpop.f32.mrf.mxu0
  %v1381 = vadd.f32 %v1307, %v1380
  %v1382 = vpop.f32.mrf.mxu0
  %1383 = vmatprep.mubr.f32.mxu0 0.0
  %1384 = vmatmul.mubr.f32.gmra.mxu0 %v1273
  %v1385 = vpop.f32.mrf.mxu0
  %v1386 = vadd.f32 %v1307, %v1385
  %v1387 = vpop.f32.mrf.mxu0
  %1388 = vmatprep.mubr.f32.mxu0 0.0
  %1389 = vmatmul.mubr.f32.gmra.mxu0 %v1274
  %v1390 = vpop.f32.mrf.mxu0
  %v1391 = vadd.f32 %v1307, %v1390
  %v1392 = vpop.f32.mrf.mxu0
  %1393 = vmatprep.mubr.f32.mxu0 0.0
  %1394 = vmatmul.mubr.f32.gmra.mxu0 %v1275
  %v1395 = vpop.f32.mrf.mxu0
  %v1396 = vadd.f32 %v1307, %v1395
  %v1397 = vpop.f32.mrf.mxu0
  %1398 = vmatprep.mubr.f32.mxu0 0.0
  %1399 = vmatmul.mubr.f32.gmra.mxu0 %v1276
  %v1400 = vpop.f32.mrf.mxu0
  %v1401 = vadd.f32 %v1307, %v1400
  %v1402 = vpop.f32.mrf.mxu0
  %1403 = vmatprep.mubr.f32.mxu0 0.0
  %1404 = vmatmul.mubr.f32.gmra.mxu0 %v1277
  %v1405 = vpop.f32.mrf.mxu0
  %v1406 = vadd.f32 %v1307, %v1405
  %v1407 = vpop.f32.mrf.mxu0
  %1408 = vmatprep.mubr.f32.mxu0 0.0
  %1409 = vmatmul.mubr.f32.gmra.mxu0 %v1278
  %v1410 = vpop.f32.mrf.mxu0
  %v1411 = vadd.f32 %v1307, %v1410
  %v1412 = vpop.f32.mrf.mxu0
  %1413 = vmatprep.mubr.f32.mxu0 0.0
  %1414 = vmatmul.mubr.f32.gmra.mxu0 %v1279
  %v1415 = vpop.f32.mrf.mxu0
  %v1416 = vadd.f32 %v1307, %v1415
  %v1417 = vpop.f32.mrf.mxu0
  %1418 = vmatprep.mubr.f32.mxu0 0.0
  %1419 = vmatmul.mubr.f32.gmra.mxu0 %v1280
  %v1420 = vpop.f32.mrf.mxu0
  %v1421 = vadd.f32 %v1307, %v1420
  %v1422 = vpop.f32.mrf.mxu0
  %1423 = vmatprep.mubr.f32.mxu0 0.0
  %1424 = vmatmul.mubr.f32.gmra.mxu0 %v1281
  %v1425 = vpop.f32.mrf.mxu0
  %v1426 = vadd.f32 %v1307, %v1425
  %v1427 = vpop.f32.mrf.mxu0
  %1428 = vmatprep.mubr.f32.mxu0 0.0
  %1429 = vmatmul.mubr.f32.gmra.mxu0 %v1282
  %v1430 = vpop.f32.mrf.mxu0
  %v1431 = vadd.f32 %v1307, %v1430
  %v1432 = vpop.f32.mrf.mxu0
  %1433 = vmatprep.mubr.f32.mxu0 0.0
  %1434 = vmatmul.mubr.f32.gmra.mxu0 %v1283
  %v1435 = vpop.f32.mrf.mxu0
  %v1436 = vadd.f32 %v1307, %v1435
  %v1437 = vpop.f32.mrf.mxu0
  %1438 = vmatprep.mubr.f32.mxu0 0.0
  %1439 = vmatmul.mubr.f32.gmra.mxu0 %v1284
  %v1440 = vpop.f32.mrf.mxu0
  %v1441 = vadd.f32 %v1307, %v1440
  %v1442 = vpop.f32.mrf.mxu0
  %1443 = vmatprep.mubr.f32.mxu0 0.0
  %1444 = vmatmul.mubr.f32.gmra.mxu0 %v1285
  %v1445 = vpop.f32.mrf.mxu0
  %v1446 = vadd.f32 %v1307, %v1445
  %v1447 = vpop.f32.mrf.mxu0
  %1448 = vmatprep.mubr.f32.mxu0 0.0
  %1449 = vmatmul.mubr.f32.gmra.mxu0 %v1286
  %v1450 = vpop.f32.mrf.mxu0
  %v1451 = vadd.f32 %v1307, %v1450
  %v1452 = vpop.f32.mrf.mxu0
  %1453 = vmatprep.mubr.f32.mxu0 0.0
  %1454 = vmatmul.mubr.f32.gmra.mxu0 %v1287
  %v1455 = vpop.f32.mrf.mxu0
  %v1456 = vadd.f32 %v1307, %v1455
  %v1457 = vpop.f32.mrf.mxu0
  %1458 = vmatprep.mubr.f32.mxu0 0.0
  %1459 = vmatmul.mubr.f32.gmra.mxu0 %v1288
  %v1460 = vpop.f32.mrf.mxu0
  %v1461 = vadd.f32 %v1307, %v1460
  %v1462 = vpop.f32.mrf.mxu0
  %1463 = vmatprep.mubr.f32.mxu0 0.0
  %1464 = vmatmul.mubr.f32.gmra.mxu0 %v1289
  %v1465 = vpop.f32.mrf.mxu0
  %v1466 = vadd.f32 %v1307, %v1465
  %v1467 = vpop.f32.mrf.mxu0
  %1468 = vmatprep.mubr.f32.mxu0 0.0
  %1469 = vmatmul.mubr.f32.gmra.mxu0 %v1290
  %v1470 = vpop.f32.mrf.mxu0
  %v1471 = vadd.f32 %v1307, %v1470
  %v1472 = vpop.f32.mrf.mxu0
  %1473 = vmatprep.mubr.f32.mxu0 0.0
  %1474 = vmatmul.mubr.f32.gmra.mxu0 %v1291
  %v1475 = vpop.f32.mrf.mxu0
  %v1476 = vadd.f32 %v1307, %v1475
  %v1477 = vpop.f32.mrf.mxu0
  %1478 = vmatprep.mubr.f32.mxu0 0.0
  %1479 = vmatmul.mubr.f32.gmra.mxu0 %v1292
  %v1480 = vpop.f32.mrf.mxu0
  %v1481 = vadd.f32 %v1307, %v1480
  %v1482 = vpop.f32.mrf.mxu0
  %1483 = vmatprep.mubr.f32.mxu0 0.0
  %1484 = vmatmul.mubr.f32.gmra.mxu0 %v1293
  %v1485 = vpop.f32.mrf.mxu0
  %v1486 = vadd.f32 %v1307, %v1485
  %v1487 = vpop.f32.mrf.mxu0
  %1488 = vmatprep.mubr.f32.mxu0 0.0
  %1489 = vmatmul.mubr.f32.gmra.mxu0 %v1294
  %v1490 = vpop.f32.mrf.mxu0
  %v1491 = vadd.f32 %v1307, %v1490
  %v1492 = vpop.f32.mrf.mxu0
  %1493 = vmatprep.mubr.f32.mxu0 0.0
  %1494 = vmatmul.mubr.f32.gmra.mxu0 %v1295
  %v1495 = vpop.f32.mrf.mxu0
  %v1496 = vadd.f32 %v1307, %v1495
  %v1497 = vpop.f32.mrf.mxu0
  %1498 = vmatprep.mubr.f32.mxu0 0.0
  %1499 = vmatmul.mubr.f32.gmra.mxu0 %v1296
  %v1500 = vpop.f32.mrf.mxu0
  %v1501 = vadd.f32 %v1307, %v1500
  %v1502 = vpop.f32.mrf.mxu0
  %1503 = vmatprep.mubr.f32.mxu0 0.0
  %1504 = vmatmul.mubr.f32.gmra.mxu0 %v1297
  %v1505 = vpop.f32.mrf.mxu0
  %v1506 = vadd.f32 %v1307, %v1505
  %v1507 = vpop.f32.mrf.mxu0
  %1508 = vmatprep.mubr.f32.mxu0 0.0
  %1509 = vmatmul.mubr.f32.gmra.mxu0 %v1298
  %v1510 = vpop.f32.mrf.mxu0
  %v1511 = vadd.f32 %v1307, %v1510
  %v1512 = vpop.f32.mrf.mxu0
  %1513 = vmatprep.mubr.f32.mxu0 0.0
  %1514 = vmatmul.mubr.f32.gmra.mxu0 %v1299
  %v1515 = vpop.f32.mrf.mxu0
  %v1516 = vadd.f32 %v1307, %v1515
  %v1517 = vpop.f32.mrf.mxu0
  %1518 = vmatprep.mubr.f32.mxu0 0.0
  %1519 = vmatmul.mubr.f32.gmra.mxu0 %v1300
  %v1520 = vpop.f32.mrf.mxu0
  %v1521 = vadd.f32 %v1307, %v1520
  %v1522 = vpop.f32.mrf.mxu0
  %1523 = vmatprep.mubr.f32.mxu0 0.0
  %1524 = vmatmul.mubr.f32.gmra.mxu0 %v1301
  %v1525 = vpop.f32.mrf.mxu0
  %v1526 = vadd.f32 %v1307, %v1525
  %v1527 = vpop.f32.mrf.mxu0
  %1528 = vmatprep.mubr.f32.mxu0 0.0
  %1529 = vmatmul.mubr.f32.gmra.mxu0 %v1302
  %v1530 = vpop.f32.mrf.mxu0
  %v1531 = vadd.f32 %v1307, %v1530
  %v1532 = vpop.f32.mrf.mxu0
  %1533 = vdwg.mxu0
  %v1534 = vxor.u32 %v1376, 2147483648
  %v1535 = vxor.u32 %v1381, 2147483648
  %v1536 = vxor.u32 %v1386, 2147483648
  %v1537 = vxor.u32 %v1391, 2147483648
  %v1538 = vxor.u32 %v1396, 2147483648
  %v1539 = vxor.u32 %v1401, 2147483648
  %v1540 = vxor.u32 %v1406, 2147483648
  %v1541 = vxor.u32 %v1411, 2147483648
  %v1542 = vxor.u32 %v1416, 2147483648
  %v1543 = vxor.u32 %v1421, 2147483648
  %v1544 = vxor.u32 %v1426, 2147483648
  %v1545 = vxor.u32 %v1431, 2147483648
  %v1546 = vxor.u32 %v1436, 2147483648
  %v1547 = vxor.u32 %v1441, 2147483648
  %v1548 = vxor.u32 %v1446, 2147483648
  %v1549 = vxor.u32 %v1451, 2147483648
  %v1550 = vxor.u32 %v1456, 2147483648
  %v1551 = vxor.u32 %v1461, 2147483648
  %v1552 = vxor.u32 %v1466, 2147483648
  %v1553 = vxor.u32 %v1471, 2147483648
  %v1554 = vxor.u32 %v1476, 2147483648
  %v1555 = vxor.u32 %v1481, 2147483648
  %v1556 = vxor.u32 %v1486, 2147483648
  %v1557 = vxor.u32 %v1491, 2147483648
  %v1558 = vxor.u32 %v1496, 2147483648
  %v1559 = vxor.u32 %v1501, 2147483648
  %v1560 = vxor.u32 %v1506, 2147483648
  %v1561 = vxor.u32 %v1511, 2147483648
  %v1562 = vxor.u32 %v1516, 2147483648
  %v1563 = vxor.u32 %v1521, 2147483648
  %v1564 = vxor.u32 %v1526, 2147483648
  %v1565 = vxor.u32 %v1531, 2147483648
  %v1566 = vmul.f32 %v1534, 1.442695
  %v1567 = vpow.pop %v1566
  %v1568 = vmul.f32 %v1535, 1.442695
  %v1569 = vpow.pop %v1568
  %v1570 = vmul.f32 %v1536, 1.442695
  %v1571 = vpow.pop %v1570
  %v1572 = vmul.f32 %v1537, 1.442695
  %v1573 = vpow.pop %v1572
  %v1574 = vmul.f32 %v1538, 1.442695
  %v1575 = vpow.pop %v1574
  %v1576 = vmul.f32 %v1539, 1.442695
  %v1577 = vpow.pop %v1576
  %v1578 = vmul.f32 %v1540, 1.442695
  %v1579 = vpow.pop %v1578
  %v1580 = vmul.f32 %v1541, 1.442695
  %v1581 = vpow.pop %v1580
  %v1582 = vmul.f32 %v1542, 1.442695
  %v1583 = vpow.pop %v1582
  %v1584 = vmul.f32 %v1543, 1.442695
  %v1585 = vpow.pop %v1584
  %v1586 = vmul.f32 %v1544, 1.442695
  %v1587 = vpow.pop %v1586
  %v1588 = vmul.f32 %v1545, 1.442695
  %v1589 = vpow.pop %v1588
  %v1590 = vmul.f32 %v1546, 1.442695
  %v1591 = vpow.pop %v1590
  %v1592 = vmul.f32 %v1547, 1.442695
  %v1593 = vpow.pop %v1592
  %v1594 = vmul.f32 %v1548, 1.442695
  %v1595 = vpow.pop %v1594
  %v1596 = vmul.f32 %v1549, 1.442695
  %v1597 = vpow.pop %v1596
  %v1598 = vmul.f32 %v1550, 1.442695
  %v1599 = vpow.pop %v1598
  %v1600 = vmul.f32 %v1551, 1.442695
  %v1601 = vpow.pop %v1600
  %v1602 = vmul.f32 %v1552, 1.442695
  %v1603 = vpow.pop %v1602
  %v1604 = vmul.f32 %v1553, 1.442695
  %v1605 = vpow.pop %v1604
  %v1606 = vmul.f32 %v1554, 1.442695
  %v1607 = vpow.pop %v1606
  %v1608 = vmul.f32 %v1555, 1.442695
  %v1609 = vpow.pop %v1608
  %v1610 = vmul.f32 %v1556, 1.442695
  %v1611 = vpow.pop %v1610
  %v1612 = vmul.f32 %v1557, 1.442695
  %v1613 = vpow.pop %v1612
  %v1614 = vmul.f32 %v1558, 1.442695
  %v1615 = vpow.pop %v1614
  %v1616 = vmul.f32 %v1559, 1.442695
  %v1617 = vpow.pop %v1616
  %v1618 = vmul.f32 %v1560, 1.442695
  %v1619 = vpow.pop %v1618
  %v1620 = vmul.f32 %v1561, 1.442695
  %v1621 = vpow.pop %v1620
  %v1622 = vmul.f32 %v1562, 1.442695
  %v1623 = vpow.pop %v1622
  %v1624 = vmul.f32 %v1563, 1.442695
  %v1625 = vpow.pop %v1624
  %v1626 = vmul.f32 %v1564, 1.442695
  %v1627 = vpow.pop %v1626
  %v1628 = vmul.f32 %v1565, 1.442695
  %v1629 = vpow.pop %v1628
  %v1630 = vadd.f32 %v1567, 1.0
  %v1631 = vadd.f32 %v1569, 1.0
  %v1632 = vadd.f32 %v1571, 1.0
  %v1633 = vadd.f32 %v1573, 1.0
  %v1634 = vadd.f32 %v1575, 1.0
  %v1635 = vadd.f32 %v1577, 1.0
  %v1636 = vadd.f32 %v1579, 1.0
  %v1637 = vadd.f32 %v1581, 1.0
  %v1638 = vadd.f32 %v1583, 1.0
  %v1639 = vadd.f32 %v1585, 1.0
  %v1640 = vadd.f32 %v1587, 1.0
  %v1641 = vadd.f32 %v1589, 1.0
  %v1642 = vadd.f32 %v1591, 1.0
  %v1643 = vadd.f32 %v1593, 1.0
  %v1644 = vadd.f32 %v1595, 1.0
  %v1645 = vadd.f32 %v1597, 1.0
  %v1646 = vadd.f32 %v1599, 1.0
  %v1647 = vadd.f32 %v1601, 1.0
  %v1648 = vadd.f32 %v1603, 1.0
  %v1649 = vadd.f32 %v1605, 1.0
  %v1650 = vadd.f32 %v1607, 1.0
  %v1651 = vadd.f32 %v1609, 1.0
  %v1652 = vadd.f32 %v1611, 1.0
  %v1653 = vadd.f32 %v1613, 1.0
  %v1654 = vadd.f32 %v1615, 1.0
  %v1655 = vadd.f32 %v1617, 1.0
  %v1656 = vadd.f32 %v1619, 1.0
  %v1657 = vadd.f32 %v1621, 1.0
  %v1658 = vadd.f32 %v1623, 1.0
  %v1659 = vadd.f32 %v1625, 1.0
  %v1660 = vadd.f32 %v1627, 1.0
  %v1661 = vadd.f32 %v1629, 1.0
  %v1662 = vrcp.pop %v1630
  %v1663 = vmul.f32 1.0, %v1662
  %v1664 = vrcp.pop %v1631
  %v1665 = vmul.f32 1.0, %v1664
  %v1666 = vrcp.pop %v1632
  %v1667 = vmul.f32 1.0, %v1666
  %v1668 = vrcp.pop %v1633
  %v1669 = vmul.f32 1.0, %v1668
  %v1670 = vrcp.pop %v1634
  %v1671 = vmul.f32 1.0, %v1670
  %v1672 = vrcp.pop %v1635
  %v1673 = vmul.f32 1.0, %v1672
  %v1674 = vrcp.pop %v1636
  %v1675 = vmul.f32 1.0, %v1674
  %v1676 = vrcp.pop %v1637
  %v1677 = vmul.f32 1.0, %v1676
  %v1678 = vrcp.pop %v1638
  %v1679 = vmul.f32 1.0, %v1678
  %v1680 = vrcp.pop %v1639
  %v1681 = vmul.f32 1.0, %v1680
  %v1682 = vrcp.pop %v1640
  %v1683 = vmul.f32 1.0, %v1682
  %v1684 = vrcp.pop %v1641
  %v1685 = vmul.f32 1.0, %v1684
  %v1686 = vrcp.pop %v1642
  %v1687 = vmul.f32 1.0, %v1686
  %v1688 = vrcp.pop %v1643
  %v1689 = vmul.f32 1.0, %v1688
  %v1690 = vrcp.pop %v1644
  %v1691 = vmul.f32 1.0, %v1690
  %v1692 = vrcp.pop %v1645
  %v1693 = vmul.f32 1.0, %v1692
  %v1694 = vrcp.pop %v1646
  %v1695 = vmul.f32 1.0, %v1694
  %v1696 = vrcp.pop %v1647
  %v1697 = vmul.f32 1.0, %v1696
  %v1698 = vrcp.pop %v1648
  %v1699 = vmul.f32 1.0, %v1698
  %v1700 = vrcp.pop %v1649
  %v1701 = vmul.f32 1.0, %v1700
  %v1702 = vrcp.pop %v1650
  %v1703 = vmul.f32 1.0, %v1702
  %v1704 = vrcp.pop %v1651
  %v1705 = vmul.f32 1.0, %v1704
  %v1706 = vrcp.pop %v1652
  %v1707 = vmul.f32 1.0, %v1706
  %v1708 = vrcp.pop %v1653
  %v1709 = vmul.f32 1.0, %v1708
  %v1710 = vrcp.pop %v1654
  %v1711 = vmul.f32 1.0, %v1710
  %v1712 = vrcp.pop %v1655
  %v1713 = vmul.f32 1.0, %v1712
  %v1714 = vrcp.pop %v1656
  %v1715 = vmul.f32 1.0, %v1714
  %v1716 = vrcp.pop %v1657
  %v1717 = vmul.f32 1.0, %v1716
  %v1718 = vrcp.pop %v1658
  %v1719 = vmul.f32 1.0, %v1718
  %v1720 = vrcp.pop %v1659
  %v1721 = vmul.f32 1.0, %v1720
  %v1722 = vrcp.pop %v1660
  %v1723 = vmul.f32 1.0, %v1722
  %v1724 = vrcp.pop %v1661
  %v1725 = vmul.f32 1.0, %v1724
  %1726 = vst [vmem:[%s10] sm:$0xff] %v1663
  %1727 = vst [vmem:[%s10 + $0x8] sm:$0xff] %v1665
  %1728 = vst [vmem:[%s10 + $0x10] sm:$0xff] %v1667
  %1729 = vst [vmem:[%s10 + $0x18] sm:$0xff] %v1669
  %1730 = vst [vmem:[%s10 + $0x20] sm:$0xff] %v1671
  %1731 = vst [vmem:[%s10 + $0x28] sm:$0xff] %v1673
  %1732 = vst [vmem:[%s10 + $0x30] sm:$0xff] %v1675
  %1733 = vst [vmem:[%s10 + $0x38] sm:$0xff] %v1677
  %1734 = vst [vmem:[%s10 + $0x40] sm:$0xff] %v1679
  %1735 = vst [vmem:[%s10 + $0x48] sm:$0xff] %v1681
  %1736 = vst [vmem:[%s10 + $0x50] sm:$0xff] %v1683
  %1737 = vst [vmem:[%s10 + $0x58] sm:$0xff] %v1685
  %1738 = vst [vmem:[%s10 + $0x60] sm:$0xff] %v1687
  %1739 = vst [vmem:[%s10 + $0x68] sm:$0xff] %v1689
  %1740 = vst [vmem:[%s10 + $0x70] sm:$0xff] %v1691
  %1741 = vst [vmem:[%s10 + $0x78] sm:$0xff] %v1693
  %1742 = vst [vmem:[%s10 + $0x80] sm:$0xff] %v1695
  %1743 = vst [vmem:[%s10 + $0x88] sm:$0xff] %v1697
  %1744 = vst [vmem:[%s10 + $0x90] sm:$0xff] %v1699
  %1745 = vst [vmem:[%s10 + $0x98] sm:$0xff] %v1701
  %1746 = vst [vmem:[%s10 + $0xa0] sm:$0xff] %v1703
  %1747 = vst [vmem:[%s10 + $0xa8] sm:$0xff] %v1705
  %1748 = vst [vmem:[%s10 + $0xb0] sm:$0xff] %v1707
  %1749 = vst [vmem:[%s10 + $0xb8] sm:$0xff] %v1709
  %1750 = vst [vmem:[%s10 + $0xc0] sm:$0xff] %v1711
  %1751 = vst [vmem:[%s10 + $0xc8] sm:$0xff] %v1713
  %1752 = vst [vmem:[%s10 + $0xd0] sm:$0xff] %v1715
  %1753 = vst [vmem:[%s10 + $0xd8] sm:$0xff] %v1717
  %1754 = vst [vmem:[%s10 + $0xe0] sm:$0xff] %v1719
  %1755 = vst [vmem:[%s10 + $0xe8] sm:$0xff] %v1721
  %1756 = vst [vmem:[%s10 + $0xf0] sm:$0xff] %v1723
  %1757 = vst [vmem:[%s10 + $0xf8] sm:$0xff] %v1725
  %1758 = vst [vmem:[%s11] sm:$0xff] %v497
  %1759 = vst [vmem:[%s11 + $0x8] sm:$0xff] %v502
  %1760 = vst [vmem:[%s11 + $0x10] sm:$0xff] %v507
  %1761 = vst [vmem:[%s11 + $0x18] sm:$0xff] %v512
  %1762 = vst [vmem:[%s11 + $0x20] sm:$0xff] %v517
  %1763 = vst [vmem:[%s11 + $0x28] sm:$0xff] %v522
  %1764 = vst [vmem:[%s11 + $0x30] sm:$0xff] %v527
  %1765 = vst [vmem:[%s11 + $0x38] sm:$0xff] %v532
  %1766 = vst [vmem:[%s11 + $0x40] sm:$0xff] %v537
  %1767 = vst [vmem:[%s11 + $0x48] sm:$0xff] %v542
  %1768 = vst [vmem:[%s11 + $0x50] sm:$0xff] %v547
  %1769 = vst [vmem:[%s11 + $0x58] sm:$0xff] %v552
  %1770 = vst [vmem:[%s11 + $0x60] sm:$0xff] %v557
  %1771 = vst [vmem:[%s11 + $0x68] sm:$0xff] %v562
  %1772 = vst [vmem:[%s11 + $0x70] sm:$0xff] %v567
  %1773 = vst [vmem:[%s11 + $0x78] sm:$0xff] %v572
  %1774 = vst [vmem:[%s11 + $0x80] sm:$0xff] %v577
  %1775 = vst [vmem:[%s11 + $0x88] sm:$0xff] %v582
  %1776 = vst [vmem:[%s11 + $0x90] sm:$0xff] %v587
  %1777 = vst [vmem:[%s11 + $0x98] sm:$0xff] %v592
  %1778 = vst [vmem:[%s11 + $0xa0] sm:$0xff] %v597
  %1779 = vst [vmem:[%s11 + $0xa8] sm:$0xff] %v602
  %1780 = vst [vmem:[%s11 + $0xb0] sm:$0xff] %v607
  %1781 = vst [vmem:[%s11 + $0xb8] sm:$0xff] %v612
  %1782 = vst [vmem:[%s11 + $0xc0] sm:$0xff] %v617
  %1783 = vst [vmem:[%s11 + $0xc8] sm:$0xff] %v622
  %1784 = vst [vmem:[%s11 + $0xd0] sm:$0xff] %v627
  %1785 = vst [vmem:[%s11 + $0xd8] sm:$0xff] %v632
  %1786 = vst [vmem:[%s11 + $0xe0] sm:$0xff] %v637
  %1787 = vst [vmem:[%s11 + $0xe8] sm:$0xff] %v642
  %1788 = vst [vmem:[%s11 + $0xf0] sm:$0xff] %v647
  %1789 = vst [vmem:[%s11 + $0xf8] sm:$0xff] %v652
  // Predicated region
  $region42: #{_vae_forward_impl.1} parent=0 // pred_check
    _
  $region43: #{_vae_forward_impl.1} parent=0 // pred_check_branch
    %1791 = sbr.rel (0) target = $region45
  $region44: #{_vae_forward_impl.1} parent=0 // pred_region
    _
  $region45: #{_vae_forward_impl.1} parent=0 // pred_fallthru
    _
  // Predicated region
  $region46: #{_vae_forward_impl.1} parent=0 // pred_check
    _
  $region47: #{_vae_forward_impl.1} parent=0 // pred_check_branch
    %1793 = sbr.rel (0) target = $region49
  $region48: #{_vae_forward_impl.1} parent=0 // pred_region
    _
  $region49: #{_vae_forward_impl.1} parent=0 // pred_fallthru
    _
  // Predicated region
  $region50: #{_vae_forward_impl.1} parent=0 // pred_check
    _
  $region51: #{_vae_forward_impl.1} parent=0 // pred_check_branch
    %1795 = sbr.rel (0) target = $region53
  $region52: #{_vae_forward_impl.1} parent=0 // pred_region
    _
  $region53: #{_vae_forward_impl.1} parent=0 // pred_fallthru
    _
  // Predicated region
  $region54: #{_vae_forward_impl.1} parent=0 // pred_check
    _
  $region55: #{_vae_forward_impl.1} parent=0 // pred_check_branch
    %1797 = sbr.rel (0) target = $region57
  $region56: #{_vae_forward_impl.1} parent=0 // pred_region
    _
  $region57: #{_vae_forward_impl.1} parent=0 // pred_fallthru
    _

// kernel: _vae_forward_impl.1
$region0: #{_vae_forward_impl.1}
  #allocation0 [shape = 'u32[]', space=smem, size = 0x4, offset = 0x4, fixed_abs, tag = 'smem constant byte address 0x4 - core index']
  #allocation1 [shape = 'u32[144,128]{1,0:T(1,128)}', space=vmem, size = 0x12000, scoped, tag = 'internal scratch']
  %s0 = inlined_call_operand.vmem [shape: f32[256,128], index: 0, kind: input, shape index: {}]
  %s1 = inlined_call_operand.vmem [shape: f32[256,64], index: 1, kind: input, shape index: {}]
  %s2 = inlined_call_operand.vmem [shape: f32[128,128], index: 2, kind: input, shape index: {}]
  %s3 = inlined_call_operand.vmem [shape: f32[1,128], index: 3, kind: input, shape index: {}]
  %s4 = inlined_call_operand.vmem [shape: f32[128,128], index: 4, kind: input, shape index: {}]
  %s5 = inlined_call_operand.vmem [shape: f32[1,128], index: 5, kind: input, shape index: {}]
  %s6 = inlined_call_operand.vmem [shape: f32[64,128], index: 6, kind: input, shape index: {}]
  %s7 = inlined_call_operand.vmem [shape: f32[1,128], index: 7, kind: input, shape index: {}]
  %s8 = inlined_call_operand.vmem [shape: f32[128,128], index: 8, kind: input, shape index: {}]
  %s9 = inlined_call_operand.vmem [shape: f32[1,128], index: 9, kind: input, shape index: {}]
  %s10 = inlined_call_operand.vmem [shape: f32[256,128], index: 10, kind: output, shape index: {0}]
  %s11 = inlined_call_operand.vmem [shape: f32[256,128], index: 11, kind: output, shape index: {1}]
  %12 = xla_tuple %s10, %s11
  %s13 = sld [smem:[#allocation0]]
  $region58: #{_vae_forward_impl.1} parent=0
    _
  %s15 = ssub.s32 1, %s13
  %s16 = scalar_select 0, %s15, %s13
  // Predicated region
  $region2: #{_vae_forward_impl.1} parent=0 // pred_check
    _
  $region3: #{_vae_forward_impl.1} parent=0 // pred_check_branch
    %18 = sbr.rel (0) target = $region5
  $region4: #{_vae_forward_impl.1} parent=0 // pred_region
    _
  $region5: #{_vae_forward_impl.1} parent=0 // pred_fallthru
    _
  // Predicated region
  $region6: #{_vae_forward_impl.1} parent=0 // pred_check
    _
  $region7: #{_vae_forward_impl.1} parent=0 // pred_check_branch
    %20 = sbr.rel (0) target = $region9
  $region8: #{_vae_forward_impl.1} parent=0 // pred_region
    _
  $region9: #{_vae_forward_impl.1} parent=0 // pred_fallthru
    _
  // Predicated region
  $region10: #{_vae_forward_impl.1} parent=0 // pred_check
    _
  $region11: #{_vae_forward_impl.1} parent=0 // pred_check_branch
    %22 = sbr.rel (0) target = $region13
  $region12: #{_vae_forward_impl.1} parent=0 // pred_region
    _
  $region13: #{_vae_forward_impl.1} parent=0 // pred_fallthru
    _
  // Predicated region
  $region14: #{_vae_forward_impl.1} parent=0 // pred_check
    _
  $region15: #{_vae_forward_impl.1} parent=0 // pred_check_branch
    %24 = sbr.rel (0) target = $region17
  $region16: #{_vae_forward_impl.1} parent=0 // pred_region
    _
  $region17: #{_vae_forward_impl.1} parent=0 // pred_fallthru
    _
  // Predicated region
  $region18: #{_vae_forward_impl.1} parent=0 // pred_check
    _
  $region19: #{_vae_forward_impl.1} parent=0 // pred_check_branch
    %26 = sbr.rel (0) target = $region21
  $region20: #{_vae_forward_impl.1} parent=0 // pred_region
    _
  $region21: #{_vae_forward_impl.1} parent=0 // pred_fallthru
    _
  // Predicated region
  $region22: #{_vae_forward_impl.1} parent=0 // pred_check
    _
  $region23: #{_vae_forward_impl.1} parent=0 // pred_check_branch
    %28 = sbr.rel (0) target = $region25
  $region24: #{_vae_forward_impl.1} parent=0 // pred_region
    _
  $region25: #{_vae_forward_impl.1} parent=0 // pred_fallthru
    _
  // Predicated region
  $region26: #{_vae_forward_impl.1} parent=0 // pred_check
    _
  $region27: #{_vae_forward_impl.1} parent=0 // pred_check_branch
    %30 = sbr.rel (0) target = $region29
  $region28: #{_vae_forward_impl.1} parent=0 // pred_region
    _
  $region29: #{_vae_forward_impl.1} parent=0 // pred_fallthru
    _
  // Predicated region
  $region30: #{_vae_forward_impl.1} parent=0 // pred_check
    _
  $region31: #{_vae_forward_impl.1} parent=0 // pred_check_branch
    %32 = sbr.rel (0) target = $region33
  $region32: #{_vae_forward_impl.1} parent=0 // pred_region
    _
  $region33: #{_vae_forward_impl.1} parent=0 // pred_fallthru
    _
  // Predicated region
  $region34: #{_vae_forward_impl.1} parent=0 // pred_check
    _
  $region35: #{_vae_forward_impl.1} parent=0 // pred_check_branch
    %34 = sbr.rel (0) target = $region37
  $region36: #{_vae_forward_impl.1} parent=0 // pred_region
    _
  $region37: #{_vae_forward_impl.1} parent=0 // pred_fallthru
    _
  // Predicated region
  $region38: #{_vae_forward_impl.1} parent=0 // pred_check
    _
  $region39: #{_vae_forward_impl.1} parent=0 // pred_check_branch
    %36 = sbr.rel (0) target = $region41
  $region40: #{_vae_forward_impl.1} parent=0 // pred_region
    _
  $region41: #{_vae_forward_impl.1} parent=0 // pred_fallthru
    _
  %v37 = vld [vmem:[%s0] sm:$0xff]
  %v38 = vld [vmem:[%s0 + $0x8] sm:$0xff]
  %v39 = vld [vmem:[%s0 + $0x10] sm:$0xff]
  %v40 = vld [vmem:[%s0 + $0x18] sm:$0xff]
  %v41 = vld [vmem:[%s0 + $0x20] sm:$0xff]
  %v42 = vld [vmem:[%s0 + $0x28] sm:$0xff]
  %v43 = vld [vmem:[%s0 + $0x30] sm:$0xff]
  %v44 = vld [vmem:[%s0 + $0x38] sm:$0xff]
  %v45 = vld [vmem:[%s0 + $0x40] sm:$0xff]
  %v46 = vld [vmem:[%s0 + $0x48] sm:$0xff]
  %v47 = vld [vmem:[%s0 + $0x50] sm:$0xff]
  %v48 = vld [vmem:[%s0 + $0x58] sm:$0xff]
  %v49 = vld [vmem:[%s0 + $0x60] sm:$0xff]
  %v50 = vld [vmem:[%s0 + $0x68] sm:$0xff]
  %v51 = vld [vmem:[%s0 + $0x70] sm:$0xff]
  %v52 = vld [vmem:[%s0 + $0x78] sm:$0xff]
  %v53 = vld [vmem:[%s0 + $0x80] sm:$0xff]
  %v54 = vld [vmem:[%s0 + $0x88] sm:$0xff]
  %v55 = vld [vmem:[%s0 + $0x90] sm:$0xff]
  %v56 = vld [vmem:[%s0 + $0x98] sm:$0xff]
  %v57 = vld [vmem:[%s0 + $0xa0] sm:$0xff]
  %v58 = vld [vmem:[%s0 + $0xa8] sm:$0xff]
  %v59 = vld [vmem:[%s0 + $0xb0] sm:$0xff]
  %v60 = vld [vmem:[%s0 + $0xb8] sm:$0xff]
  %v61 = vld [vmem:[%s0 + $0xc0] sm:$0xff]
  %v62 = vld [vmem:[%s0 + $0xc8] sm:$0xff]
  %v63 = vld [vmem:[%s0 + $0xd0] sm:$0xff]
  %v64 = vld [vmem:[%s0 + $0xd8] sm:$0xff]
  %v65 = vld [vmem:[%s0 + $0xe0] sm:$0xff]
  %v66 = vld [vmem:[%s0 + $0xe8] sm:$0xff]
  %v67 = vld [vmem:[%s0 + $0xf0] sm:$0xff]
  %v68 = vld [vmem:[%s0 + $0xf8] sm:$0xff]
  %v69 = vld [vmem:[%s1] sm:$0xff]
  %v70 = vld [vmem:[%s1 + $0x8] sm:$0xff]
  %v71 = vld [vmem:[%s1 + $0x10] sm:$0xff]
  %v72 = vld [vmem:[%s1 + $0x18] sm:$0xff]
  %v73 = vld [vmem:[%s1 + $0x20] sm:$0xff]
  %v74 = vld [vmem:[%s1 + $0x28] sm:$0xff]
  %v75 = vld [vmem:[%s1 + $0x30] sm:$0xff]
  %v76 = vld [vmem:[%s1 + $0x38] sm:$0xff]
  %v77 = vld [vmem:[%s1 + $0x40] sm:$0xff]
  %v78 = vld [vmem:[%s1 + $0x48] sm:$0xff]
  %v79 = vld [vmem:[%s1 + $0x50] sm:$0xff]
  %v80 = vld [vmem:[%s1 + $0x58] sm:$0xff]
  %v81 = vld [vmem:[%s1 + $0x60] sm:$0xff]
  %v82 = vld [vmem:[%s1 + $0x68] sm:$0xff]
  %v83 = vld [vmem:[%s1 + $0x70] sm:$0xff]
  %v84 = vld [vmem:[%s1 + $0x78] sm:$0xff]
  %v85 = vld [vmem:[%s1 + $0x80] sm:$0xff]
  %v86 = vld [vmem:[%s1 + $0x88] sm:$0xff]
  %v87 = vld [vmem:[%s1 + $0x90] sm:$0xff]
  %v88 = vld [vmem:[%s1 + $0x98] sm:$0xff]
  %v89 = vld [vmem:[%s1 + $0xa0] sm:$0xff]
  %v90 = vld [vmem:[%s1 + $0xa8] sm:$0xff]
  %v91 = vld [vmem:[%s1 + $0xb0] sm:$0xff]
  %v92 = vld [vmem:[%s1 + $0xb8] sm:$0xff]
  %v93 = vld [vmem:[%s1 + $0xc0] sm:$0xff]
  %v94 = vld [vmem:[%s1 + $0xc8] sm:$0xff]
  %v95 = vld [vmem:[%s1 + $0xd0] sm:$0xff]
  %v96 = vld [vmem:[%s1 + $0xd8] sm:$0xff]
  %v97 = vld [vmem:[%s1 + $0xe0] sm:$0xff]
  %v98 = vld [vmem:[%s1 + $0xe8] sm:$0xff]
  %v99 = vld [vmem:[%s1 + $0xf0] sm:$0xff]
  %v100 = vld [vmem:[%s1 + $0xf8] sm:$0xff]
  %v101 = vld [vmem:[%s2] sm:$0xff]
  %v102 = vld [vmem:[%s2 + $0x8] sm:$0xff]
  %v103 = vld [vmem:[%s2 + $0x10] sm:$0xff]
  %v104 = vld [vmem:[%s2 + $0x18] sm:$0xff]
  %v105 = vld [vmem:[%s2 + $0x20] sm:$0xff]
  %v106 = vld [vmem:[%s2 + $0x28] sm:$0xff]
  %v107 = vld [vmem:[%s2 + $0x30] sm:$0xff]
  %v108 = vld [vmem:[%s2 + $0x38] sm:$0xff]
  %v109 = vld [vmem:[%s2 + $0x40] sm:$0xff]
  %v110 = vld [vmem:[%s2 + $0x48] sm:$0xff]
  %v111 = vld [vmem:[%s2 + $0x50] sm:$0xff]
  %v112 = vld [vmem:[%s2 + $0x58] sm:$0xff]
  %v113 = vld [vmem:[%s2 + $0x60] sm:$0xff]
  %v114 = vld [vmem:[%s2 + $0x68] sm:$0xff]
  %v115 = vld [vmem:[%s2 + $0x70] sm:$0xff]
  %v116 = vld [vmem:[%s2 + $0x78] sm:$0xff]
  %v117 = vld [vmem:[%s3] sm:$0x1]
  %v118 = vld [vmem:[%s4] sm:$0xff]
  %v119 = vld [vmem:[%s4 + $0x8] sm:$0xff]
  %v120 = vld [vmem:[%s4 + $0x10] sm:$0xff]
  %v121 = vld [vmem:[%s4 + $0x18] sm:$0xff]
  %v122 = vld [vmem:[%s4 + $0x20] sm:$0xff]
  %v123 = vld [vmem:[%s4 + $0x28] sm:$0xff]
  %v124 = vld [vmem:[%s4 + $0x30] sm:$0xff]
  %v125 = vld [vmem:[%s4 + $0x38] sm:$0xff]
  %v126 = vld [vmem:[%s4 + $0x40] sm:$0xff]
  %v127 = vld [vmem:[%s4 + $0x48] sm:$0xff]
  %v128 = vld [vmem:[%s4 + $0x50] sm:$0xff]
  %v129 = vld [vmem:[%s4 + $0x58] sm:$0xff]
  %v130 = vld [vmem:[%s4 + $0x60] sm:$0xff]
  %v131 = vld [vmem:[%s4 + $0x68] sm:$0xff]
  %v132 = vld [vmem:[%s4 + $0x70] sm:$0xff]
  %v133 = vld [vmem:[%s4 + $0x78] sm:$0xff]
  %v134 = vld [vmem:[%s5] sm:$0x1]
  %v135 = vld [vmem:[%s6] sm:$0xff]
  %v136 = vld [vmem:[%s6 + $0x8] sm:$0xff]
  %v137 = vld [vmem:[%s6 + $0x10] sm:$0xff]
  %v138 = vld [vmem:[%s6 + $0x18] sm:$0xff]
  %v139 = vld [vmem:[%s6 + $0x20] sm:$0xff]
  %v140 = vld [vmem:[%s6 + $0x28] sm:$0xff]
  %v141 = vld [vmem:[%s6 + $0x30] sm:$0xff]
  %v142 = vld [vmem:[%s6 + $0x38] sm:$0xff]
  %v143 = vld [vmem:[%s7] sm:$0x1]
  %v144 = vld [vmem:[%s8] sm:$0xff]
  %v145 = vld [vmem:[%s8 + $0x8] sm:$0xff]
  %v146 = vld [vmem:[%s8 + $0x10] sm:$0xff]
  %v147 = vld [vmem:[%s8 + $0x18] sm:$0xff]
  %v148 = vld [vmem:[%s8 + $0x20] sm:$0xff]
  %v149 = vld [vmem:[%s8 + $0x28] sm:$0xff]
  %v150 = vld [vmem:[%s8 + $0x30] sm:$0xff]
  %v151 = vld [vmem:[%s8 + $0x38] sm:$0xff]
  %v152 = vld [vmem:[%s8 + $0x40] sm:$0xff]
  %v153 = vld [vmem:[%s8 + $0x48] sm:$0xff]
  %v154 = vld [vmem:[%s8 + $0x50] sm:$0xff]
  %v155 = vld [vmem:[%s8 + $0x58] sm:$0xff]
  %v156 = vld [vmem:[%s8 + $0x60] sm:$0xff]
  %v157 = vld [vmem:[%s8 + $0x68] sm:$0xff]
  %v158 = vld [vmem:[%s8 + $0x70] sm:$0xff]
  %v159 = vld [vmem:[%s8 + $0x78] sm:$0xff]
  %v160 = vld [vmem:[%s9] sm:$0x1]
  %v162 = vlaneseq
  %v163 = vshrl.u32 %v162, 7
  %v164 = vsub.s32 0, %v163
  %v165 = vrot.slane %v117, %v164
  %167 = vmatprep.subr.mxu0 0.0
  %168 = vmatpush1.msra.mxu0 %v116
  %169 = vmatprep.subr.mxu0 0.0
  %170 = vmatpush1.msra.mxu0 %v115
  %171 = vmatprep.subr.mxu0 0.0
  %172 = vmatpush1.msra.mxu0 %v114
  %173 = vmatprep.subr.mxu0 0.0
  %174 = vmatpush1.msra.mxu0 %v113
  %175 = vmatprep.subr.mxu0 0.0
  %176 = vmatpush1.msra.mxu0 %v112
  %177 = vmatprep.subr.mxu0 0.0
  %178 = vmatpush1.msra.mxu0 %v111
  %179 = vmatprep.subr.mxu0 0.0
  %180 = vmatpush1.msra.mxu0 %v110
  %181 = vmatprep.subr.mxu0 0.0
  %182 = vmatpush1.msra.mxu0 %v109
  %183 = vmatprep.subr.mxu0 0.0
  %184 = vmatpush1.msra.mxu0 %v108
  %185 = vmatprep.subr.mxu0 0.0
  %186 = vmatpush1.msra.mxu0 %v107
  %187 = vmatprep.subr.mxu0 0.0
  %188 = vmatpush1.msra.mxu0 %v106
  %189 = vmatprep.subr.mxu0 0.0
  %190 = vmatpush1.msra.mxu0 %v105
  %191 = vmatprep.subr.mxu0 0.0
  %192 = vmatpush1.msra.mxu0 %v104
  %193 = vmatprep.subr.mxu0 0.0
  %194 = vmatpush1.msra.mxu0 %v103
  %195 = vmatprep.subr.mxu0 0.0
  %196 = vmatpush1.msra.mxu0 %v102
  %197 = vmatprep.subr.mxu0 0.0
  %198 = vmatpush1.msra.mxu0 %v101
  %199 = vmatprep.subr.mxu0 0.0
  %200 = vmatpush2.msra.mxu0 0.0
  %201 = vmatprep.subr.mxu0 0.0
  %202 = vmatpush2.msra.mxu0 0.0
  %203 = vmatprep.subr.mxu0 0.0
  %204 = vmatpush2.msra.mxu0 0.0
  %205 = vmatprep.subr.mxu0 0.0
  %206 = vmatpush2.msra.mxu0 0.0
  %207 = vmatprep.subr.mxu0 0.0
  %208 = vmatpush2.msra.mxu0 0.0
  %209 = vmatprep.subr.mxu0 0.0
  %210 = vmatpush2.msra.mxu0 0.0
  %211 = vmatprep.subr.mxu0 0.0
  %212 = vmatpush2.msra.mxu0 0.0
  %213 = vmatprep.subr.mxu0 0.0
  %214 = vmatpush2.msra.mxu0 0.0
  %215 = vmatprep.subr.mxu0 0.0
  %216 = vmatpush2.msra.mxu0 0.0
  %217 = vmatprep.subr.mxu0 0.0
  %218 = vmatpush2.msra.mxu0 0.0
  %219 = vmatprep.subr.mxu0 0.0
  %220 = vmatpush2.msra.mxu0 0.0
  %221 = vmatprep.subr.mxu0 0.0
  %222 = vmatpush2.msra.mxu0 0.0
  %223 = vmatprep.subr.mxu0 0.0
  %224 = vmatpush2.msra.mxu0 0.0
  %225 = vmatprep.subr.mxu0 0.0
  %226 = vmatpush2.msra.mxu0 0.0
  %227 = vmatprep.subr.mxu0 0.0
  %228 = vmatpush2.msra.mxu0 0.0
  %229 = vmatprep.subr.mxu0 0.0
  %230 = vmatpush2.msra.mxu0 0.0
  %231 = vmatprep.mubr.f32.mxu0 0.0
  %232 = vmatmul.mubr.f32.gmra.mxu0 %v37
  %v233 = vpop.f32.mrf.mxu0
  %v234 = vadd.f32 %v165, %v233
  %v235 = vpop.f32.mrf.mxu0
  %236 = vmatprep.mubr.f32.mxu0 0.0
  %237 = vmatmul.mubr.f32.gmra.mxu0 %v38
  %v238 = vpop.f32.mrf.mxu0
  %v239 = vadd.f32 %v165, %v238
  %v240 = vpop.f32.mrf.mxu0
  %241 = vmatprep.mubr.f32.mxu0 0.0
  %242 = vmatmul.mubr.f32.gmra.mxu0 %v39
  %v243 = vpop.f32.mrf.mxu0
  %v244 = vadd.f32 %v165, %v243
  %v245 = vpop.f32.mrf.mxu0
  %246 = vmatprep.mubr.f32.mxu0 0.0
  %247 = vmatmul.mubr.f32.gmra.mxu0 %v40
  %v248 = vpop.f32.mrf.mxu0
  %v249 = vadd.f32 %v165, %v248
  %v250 = vpop.f32.mrf.mxu0
  %251 = vmatprep.mubr.f32.mxu0 0.0
  %252 = vmatmul.mubr.f32.gmra.mxu0 %v41
  %v253 = vpop.f32.mrf.mxu0
  %v254 = vadd.f32 %v165, %v253
  %v255 = vpop.f32.mrf.mxu0
  %256 = vmatprep.mubr.f32.mxu0 0.0
  %257 = vmatmul.mubr.f32.gmra.mxu0 %v42
  %v258 = vpop.f32.mrf.mxu0
  %v259 = vadd.f32 %v165, %v258
  %v260 = vpop.f32.mrf.mxu0
  %261 = vmatprep.mubr.f32.mxu0 0.0
  %262 = vmatmul.mubr.f32.gmra.mxu0 %v43
  %v263 = vpop.f32.mrf.mxu0
  %v264 = vadd.f32 %v165, %v263
  %v265 = vpop.f32.mrf.mxu0
  %266 = vmatprep.mubr.f32.mxu0 0.0
  %267 = vmatmul.mubr.f32.gmra.mxu0 %v44
  %v268 = vpop.f32.mrf.mxu0
  %v269 = vadd.f32 %v165, %v268
  %v270 = vpop.f32.mrf.mxu0
  %271 = vmatprep.mubr.f32.mxu0 0.0
  %272 = vmatmul.mubr.f32.gmra.mxu0 %v45
  %v273 = vpop.f32.mrf.mxu0
  %v274 = vadd.f32 %v165, %v273
  %v275 = vpop.f32.mrf.mxu0
  %276 = vmatprep.mubr.f32.mxu0 0.0
  %277 = vmatmul.mubr.f32.gmra.mxu0 %v46
  %v278 = vpop.f32.mrf.mxu0
  %v279 = vadd.f32 %v165, %v278
  %v280 = vpop.f32.mrf.mxu0
  %281 = vmatprep.mubr.f32.mxu0 0.0
  %282 = vmatmul.mubr.f32.gmra.mxu0 %v47
  %v283 = vpop.f32.mrf.mxu0
  %v284 = vadd.f32 %v165, %v283
  %v285 = vpop.f32.mrf.mxu0
  %286 = vmatprep.mubr.f32.mxu0 0.0
  %287 = vmatmul.mubr.f32.gmra.mxu0 %v48
  %v288 = vpop.f32.mrf.mxu0
  %v289 = vadd.f32 %v165, %v288
  %v290 = vpop.f32.mrf.mxu0
  %291 = vmatprep.mubr.f32.mxu0 0.0
  %292 = vmatmul.mubr.f32.gmra.mxu0 %v49
  %v293 = vpop.f32.mrf.mxu0
  %v294 = vadd.f32 %v165, %v293
  %v295 = vpop.f32.mrf.mxu0
  %296 = vmatprep.mubr.f32.mxu0 0.0
  %297 = vmatmul.mubr.f32.gmra.mxu0 %v50
  %v298 = vpop.f32.mrf.mxu0
  %v299 = vadd.f32 %v165, %v298
  %v300 = vpop.f32.mrf.mxu0
  %301 = vmatprep.mubr.f32.mxu0 0.0
  %302 = vmatmul.mubr.f32.gmra.mxu0 %v51
  %v303 = vpop.f32.mrf.mxu0
  %v304 = vadd.f32 %v165, %v303
  %v305 = vpop.f32.mrf.mxu0
  %306 = vmatprep.mubr.f32.mxu0 0.0
  %307 = vmatmul.mubr.f32.gmra.mxu0 %v52
  %v308 = vpop.f32.mrf.mxu0
  %v309 = vadd.f32 %v165, %v308
  %v310 = vpop.f32.mrf.mxu0
  %311 = vmatprep.mubr.f32.mxu0 0.0
  %312 = vmatmul.mubr.f32.gmra.mxu0 %v53
  %v313 = vpop.f32.mrf.mxu0
  %v314 = vadd.f32 %v165, %v313
  %v315 = vpop.f32.mrf.mxu0
  %316 = vmatprep.mubr.f32.mxu0 0.0
  %317 = vmatmul.mubr.f32.gmra.mxu0 %v54
  %v318 = vpop.f32.mrf.mxu0
  %v319 = vadd.f32 %v165, %v318
  %v320 = vpop.f32.mrf.mxu0
  %321 = vmatprep.mubr.f32.mxu0 0.0
  %322 = vmatmul.mubr.f32.gmra.mxu0 %v55
  %v323 = vpop.f32.mrf.mxu0
  %v324 = vadd.f32 %v165, %v323
  %v325 = vpop.f32.mrf.mxu0
  %326 = vmatprep.mubr.f32.mxu0 0.0
  %327 = vmatmul.mubr.f32.gmra.mxu0 %v56
  %v328 = vpop.f32.mrf.mxu0
  %v329 = vadd.f32 %v165, %v328
  %v330 = vpop.f32.mrf.mxu0
  %331 = vmatprep.mubr.f32.mxu0 0.0
  %332 = vmatmul.mubr.f32.gmra.mxu0 %v57
  %v333 = vpop.f32.mrf.mxu0
  %v334 = vadd.f32 %v165, %v333
  %v335 = vpop.f32.mrf.mxu0
  %336 = vmatprep.mubr.f32.mxu0 0.0
  %337 = vmatmul.mubr.f32.gmra.mxu0 %v58
  %v338 = vpop.f32.mrf.mxu0
  %v339 = vadd.f32 %v165, %v338
  %v340 = vpop.f32.mrf.mxu0
  %341 = vmatprep.mubr.f32.mxu0 0.0
  %342 = vmatmul.mubr.f32.gmra.mxu0 %v59
  %v343 = vpop.f32.mrf.mxu0
  %v344 = vadd.f32 %v165, %v343
  %v345 = vpop.f32.mrf.mxu0
  %346 = vmatprep.mubr.f32.mxu0 0.0
  %347 = vmatmul.mubr.f32.gmra.mxu0 %v60
  %v348 = vpop.f32.mrf.mxu0
  %v349 = vadd.f32 %v165, %v348
  %v350 = vpop.f32.mrf.mxu0
  %351 = vmatprep.mubr.f32.mxu0 0.0
  %352 = vmatmul.mubr.f32.gmra.mxu0 %v61
  %v353 = vpop.f32.mrf.mxu0
  %v354 = vadd.f32 %v165, %v353
  %v355 = vpop.f32.mrf.mxu0
  %356 = vmatprep.mubr.f32.mxu0 0.0
  %357 = vmatmul.mubr.f32.gmra.mxu0 %v62
  %v358 = vpop.f32.mrf.mxu0
  %v359 = vadd.f32 %v165, %v358
  %v360 = vpop.f32.mrf.mxu0
  %361 = vmatprep.mubr.f32.mxu0 0.0
  %362 = vmatmul.mubr.f32.gmra.mxu0 %v63
  %v363 = vpop.f32.mrf.mxu0
  %v364 = vadd.f32 %v165, %v363
  %v365 = vpop.f32.mrf.mxu0
  %366 = vmatprep.mubr.f32.mxu0 0.0
  %367 = vmatmul.mubr.f32.gmra.mxu0 %v64
  %v368 = vpop.f32.mrf.mxu0
  %v369 = vadd.f32 %v165, %v368
  %v370 = vpop.f32.mrf.mxu0
  %371 = vmatprep.mubr.f32.mxu0 0.0
  %372 = vmatmul.mubr.f32.gmra.mxu0 %v65
  %v373 = vpop.f32.mrf.mxu0
  %v374 = vadd.f32 %v165, %v373
  %v375 = vpop.f32.mrf.mxu0
  %376 = vmatprep.mubr.f32.mxu0 0.0
  %377 = vmatmul.mubr.f32.gmra.mxu0 %v66
  %v378 = vpop.f32.mrf.mxu0
  %v379 = vadd.f32 %v165, %v378
  %v380 = vpop.f32.mrf.mxu0
  %381 = vmatprep.mubr.f32.mxu0 0.0
  %382 = vmatmul.mubr.f32.gmra.mxu0 %v67
  %v383 = vpop.f32.mrf.mxu0
  %v384 = vadd.f32 %v165, %v383
  %v385 = vpop.f32.mrf.mxu0
  %386 = vmatprep.mubr.f32.mxu0 0.0
  %387 = vmatmul.mubr.f32.gmra.mxu0 %v68
  %v388 = vpop.f32.mrf.mxu0
  %v389 = vadd.f32 %v165, %v388
  %v390 = vpop.f32.mrf.mxu0
  %391 = vdwg.mxu0
  %v392 = vmax.f32 %v234, 0.0
  %v393 = vmax.f32 %v239, 0.0
  %v394 = vmax.f32 %v244, 0.0
  %v395 = vmax.f32 %v249, 0.0
  %v396 = vmax.f32 %v254, 0.0
  %v397 = vmax.f32 %v259, 0.0
  %v398 = vmax.f32 %v264, 0.0
  %v399 = vmax.f32 %v269, 0.0
  %v400 = vmax.f32 %v274, 0.0
  %v401 = vmax.f32 %v279, 0.0
  %v402 = vmax.f32 %v284, 0.0
  %v403 = vmax.f32 %v289, 0.0
  %v404 = vmax.f32 %v294, 0.0
  %v405 = vmax.f32 %v299, 0.0
  %v406 = vmax.f32 %v304, 0.0
  %v407 = vmax.f32 %v309, 0.0
  %v408 = vmax.f32 %v314, 0.0
  %v409 = vmax.f32 %v319, 0.0
  %v410 = vmax.f32 %v324, 0.0
  %v411 = vmax.f32 %v329, 0.0
  %v412 = vmax.f32 %v334, 0.0
  %v413 = vmax.f32 %v339, 0.0
  %v414 = vmax.f32 %v344, 0.0
  %v415 = vmax.f32 %v349, 0.0
  %v416 = vmax.f32 %v354, 0.0
  %v417 = vmax.f32 %v359, 0.0
  %v418 = vmax.f32 %v364, 0.0
  %v419 = vmax.f32 %v369, 0.0
  %v420 = vmax.f32 %v374, 0.0
  %v421 = vmax.f32 %v379, 0.0
  %v422 = vmax.f32 %v384, 0.0
  %v423 = vmax.f32 %v389, 0.0
  %v425 = vlaneseq
  %v426 = vshrl.u32 %v425, 7
  %v427 = vsub.s32 0, %v426
  %v428 = vrot.slane %v134, %v427
  %430 = vmatprep.subr.mxu0 0.0
  %431 = vmatpush1.msra.mxu0 %v133
  %432 = vmatprep.subr.mxu0 0.0
  %433 = vmatpush1.msra.mxu0 %v132
  %434 = vmatprep.subr.mxu0 0.0
  %435 = vmatpush1.msra.mxu0 %v131
  %436 = vmatprep.subr.mxu0 0.0
  %437 = vmatpush1.msra.mxu0 %v130
  %438 = vmatprep.subr.mxu0 0.0
  %439 = vmatpush1.msra.mxu0 %v129
  %440 = vmatprep.subr.mxu0 0.0
  %441 = vmatpush1.msra.mxu0 %v128
  %442 = vmatprep.subr.mxu0 0.0
  %443 = vmatpush1.msra.mxu0 %v127
  %444 = vmatprep.subr.mxu0 0.0
  %445 = vmatpush1.msra.mxu0 %v126
  %446 = vmatprep.subr.mxu0 0.0
  %447 = vmatpush1.msra.mxu0 %v125
  %448 = vmatprep.subr.mxu0 0.0
  %449 = vmatpush1.msra.mxu0 %v124
  %450 = vmatprep.subr.mxu0 0.0
  %451 = vmatpush1.msra.mxu0 %v123
  %452 = vmatprep.subr.mxu0 0.0
  %453 = vmatpush1.msra.mxu0 %v122
  %454 = vmatprep.subr.mxu0 0.0
  %455 = vmatpush1.msra.mxu0 %v121
  %456 = vmatprep.subr.mxu0 0.0
  %457 = vmatpush1.msra.mxu0 %v120
  %458 = vmatprep.subr.mxu0 0.0
  %459 = vmatpush1.msra.mxu0 %v119
  %460 = vmatprep.subr.mxu0 0.0
  %461 = vmatpush1.msra.mxu0 %v118
  %462 = vmatprep.subr.mxu0 0.0
  %463 = vmatpush2.msra.mxu0 0.0
  %464 = vmatprep.subr.mxu0 0.0
  %465 = vmatpush2.msra.mxu0 0.0
  %466 = vmatprep.subr.mxu0 0.0
  %467 = vmatpush2.msra.mxu0 0.0
  %468 = vmatprep.subr.mxu0 0.0
  %469 = vmatpush2.msra.mxu0 0.0
  %470 = vmatprep.subr.mxu0 0.0
  %471 = vmatpush2.msra.mxu0 0.0
  %472 = vmatprep.subr.mxu0 0.0
  %473 = vmatpush2.msra.mxu0 0.0
  %474 = vmatprep.subr.mxu0 0.0
  %475 = vmatpush2.msra.mxu0 0.0
  %476 = vmatprep.subr.mxu0 0.0
  %477 = vmatpush2.msra.mxu0 0.0
  %478 = vmatprep.subr.mxu0 0.0
  %479 = vmatpush2.msra.mxu0 0.0
  %480 = vmatprep.subr.mxu0 0.0
  %481 = vmatpush2.msra.mxu0 0.0
  %482 = vmatprep.subr.mxu0 0.0
  %483 = vmatpush2.msra.mxu0 0.0
  %484 = vmatprep.subr.mxu0 0.0
  %485 = vmatpush2.msra.mxu0 0.0
  %486 = vmatprep.subr.mxu0 0.0
  %487 = vmatpush2.msra.mxu0 0.0
  %488 = vmatprep.subr.mxu0 0.0
  %489 = vmatpush2.msra.mxu0 0.0
  %490 = vmatprep.subr.mxu0 0.0
  %491 = vmatpush2.msra.mxu0 0.0
  %492 = vmatprep.subr.mxu0 0.0
  %493 = vmatpush2.msra.mxu0 0.0
  %494 = vmatprep.mubr.f32.mxu0 0.0
  %495 = vmatmul.mubr.f32.gmra.mxu0 %v392
  %v496 = vpop.f32.mrf.mxu0
  %v497 = vadd.f32 %v428, %v496
  %v498 = vpop.f32.mrf.mxu0
  %499 = vmatprep.mubr.f32.mxu0 0.0
  %500 = vmatmul.mubr.f32.gmra.mxu0 %v393
  %v501 = vpop.f32.mrf.mxu0
  %v502 = vadd.f32 %v428, %v501
  %v503 = vpop.f32.mrf.mxu0
  %504 = vmatprep.mubr.f32.mxu0 0.0
  %505 = vmatmul.mubr.f32.gmra.mxu0 %v394
  %v506 = vpop.f32.mrf.mxu0
  %v507 = vadd.f32 %v428, %v506
  %v508 = vpop.f32.mrf.mxu0
  %509 = vmatprep.mubr.f32.mxu0 0.0
  %510 = vmatmul.mubr.f32.gmra.mxu0 %v395
  %v511 = vpop.f32.mrf.mxu0
  %v512 = vadd.f32 %v428, %v511
  %v513 = vpop.f32.mrf.mxu0
  %514 = vmatprep.mubr.f32.mxu0 0.0
  %515 = vmatmul.mubr.f32.gmra.mxu0 %v396
  %v516 = vpop.f32.mrf.mxu0
  %v517 = vadd.f32 %v428, %v516
  %v518 = vpop.f32.mrf.mxu0
  %519 = vmatprep.mubr.f32.mxu0 0.0
  %520 = vmatmul.mubr.f32.gmra.mxu0 %v397
  %v521 = vpop.f32.mrf.mxu0
  %v522 = vadd.f32 %v428, %v521
  %v523 = vpop.f32.mrf.mxu0
  %524 = vmatprep.mubr.f32.mxu0 0.0
  %525 = vmatmul.mubr.f32.gmra.mxu0 %v398
  %v526 = vpop.f32.mrf.mxu0
  %v527 = vadd.f32 %v428, %v526
  %v528 = vpop.f32.mrf.mxu0
  %529 = vmatprep.mubr.f32.mxu0 0.0
  %530 = vmatmul.mubr.f32.gmra.mxu0 %v399
  %v531 = vpop.f32.mrf.mxu0
  %v532 = vadd.f32 %v428, %v531
  %v533 = vpop.f32.mrf.mxu0
  %534 = vmatprep.mubr.f32.mxu0 0.0
  %535 = vmatmul.mubr.f32.gmra.mxu0 %v400
  %v536 = vpop.f32.mrf.mxu0
  %v537 = vadd.f32 %v428, %v536
  %v538 = vpop.f32.mrf.mxu0
  %539 = vmatprep.mubr.f32.mxu0 0.0
  %540 = vmatmul.mubr.f32.gmra.mxu0 %v401
  %v541 = vpop.f32.mrf.mxu0
  %v542 = vadd.f32 %v428, %v541
  %v543 = vpop.f32.mrf.mxu0
  %544 = vmatprep.mubr.f32.mxu0 0.0
  %545 = vmatmul.mubr.f32.gmra.mxu0 %v402
  %v546 = vpop.f32.mrf.mxu0
  %v547 = vadd.f32 %v428, %v546
  %v548 = vpop.f32.mrf.mxu0
  %549 = vmatprep.mubr.f32.mxu0 0.0
  %550 = vmatmul.mubr.f32.gmra.mxu0 %v403
  %v551 = vpop.f32.mrf.mxu0
  %v552 = vadd.f32 %v428, %v551
  %v553 = vpop.f32.mrf.mxu0
  %554 = vmatprep.mubr.f32.mxu0 0.0
  %555 = vmatmul.mubr.f32.gmra.mxu0 %v404
  %v556 = vpop.f32.mrf.mxu0
  %v557 = vadd.f32 %v428, %v556
  %v558 = vpop.f32.mrf.mxu0
  %559 = vmatprep.mubr.f32.mxu0 0.0
  %560 = vmatmul.mubr.f32.gmra.mxu0 %v405
  %v561 = vpop.f32.mrf.mxu0
  %v562 = vadd.f32 %v428, %v561
  %v563 = vpop.f32.mrf.mxu0
  %564 = vmatprep.mubr.f32.mxu0 0.0
  %565 = vmatmul.mubr.f32.gmra.mxu0 %v406
  %v566 = vpop.f32.mrf.mxu0
  %v567 = vadd.f32 %v428, %v566
  %v568 = vpop.f32.mrf.mxu0
  %569 = vmatprep.mubr.f32.mxu0 0.0
  %570 = vmatmul.mubr.f32.gmra.mxu0 %v407
  %v571 = vpop.f32.mrf.mxu0
  %v572 = vadd.f32 %v428, %v571
  %v573 = vpop.f32.mrf.mxu0
  %574 = vmatprep.mubr.f32.mxu0 0.0
  %575 = vmatmul.mubr.f32.gmra.mxu0 %v408
  %v576 = vpop.f32.mrf.mxu0
  %v577 = vadd.f32 %v428, %v576
  %v578 = vpop.f32.mrf.mxu0
  %579 = vmatprep.mubr.f32.mxu0 0.0
  %580 = vmatmul.mubr.f32.gmra.mxu0 %v409
  %v581 = vpop.f32.mrf.mxu0
  %v582 = vadd.f32 %v428, %v581
  %v583 = vpop.f32.mrf.mxu0
  %584 = vmatprep.mubr.f32.mxu0 0.0
  %585 = vmatmul.mubr.f32.gmra.mxu0 %v410
  %v586 = vpop.f32.mrf.mxu0
  %v587 = vadd.f32 %v428, %v586
  %v588 = vpop.f32.mrf.mxu0
  %589 = vmatprep.mubr.f32.mxu0 0.0
  %590 = vmatmul.mubr.f32.gmra.mxu0 %v411
  %v591 = vpop.f32.mrf.mxu0
  %v592 = vadd.f32 %v428, %v591
  %v593 = vpop.f32.mrf.mxu0
  %594 = vmatprep.mubr.f32.mxu0 0.0
  %595 = vmatmul.mubr.f32.gmra.mxu0 %v412
  %v596 = vpop.f32.mrf.mxu0
  %v597 = vadd.f32 %v428, %v596
  %v598 = vpop.f32.mrf.mxu0
  %599 = vmatprep.mubr.f32.mxu0 0.0
  %600 = vmatmul.mubr.f32.gmra.mxu0 %v413
  %v601 = vpop.f32.mrf.mxu0
  %v602 = vadd.f32 %v428, %v601
  %v603 = vpop.f32.mrf.mxu0
  %604 = vmatprep.mubr.f32.mxu0 0.0
  %605 = vmatmul.mubr.f32.gmra.mxu0 %v414
  %v606 = vpop.f32.mrf.mxu0
  %v607 = vadd.f32 %v428, %v606
  %v608 = vpop.f32.mrf.mxu0
  %609 = vmatprep.mubr.f32.mxu0 0.0
  %610 = vmatmul.mubr.f32.gmra.mxu0 %v415
  %v611 = vpop.f32.mrf.mxu0
  %v612 = vadd.f32 %v428, %v611
  %v613 = vpop.f32.mrf.mxu0
  %614 = vmatprep.mubr.f32.mxu0 0.0
  %615 = vmatmul.mubr.f32.gmra.mxu0 %v416
  %v616 = vpop.f32.mrf.mxu0
  %v617 = vadd.f32 %v428, %v616
  %v618 = vpop.f32.mrf.mxu0
  %619 = vmatprep.mubr.f32.mxu0 0.0
  %620 = vmatmul.mubr.f32.gmra.mxu0 %v417
  %v621 = vpop.f32.mrf.mxu0
  %v622 = vadd.f32 %v428, %v621
  %v623 = vpop.f32.mrf.mxu0
  %624 = vmatprep.mubr.f32.mxu0 0.0
  %625 = vmatmul.mubr.f32.gmra.mxu0 %v418
  %v626 = vpop.f32.mrf.mxu0
  %v627 = vadd.f32 %v428, %v626
  %v628 = vpop.f32.mrf.mxu0
  %629 = vmatprep.mubr.f32.mxu0 0.0
  %630 = vmatmul.mubr.f32.gmra.mxu0 %v419
  %v631 = vpop.f32.mrf.mxu0
  %v632 = vadd.f32 %v428, %v631
  %v633 = vpop.f32.mrf.mxu0
  %634 = vmatprep.mubr.f32.mxu0 0.0
  %635 = vmatmul.mubr.f32.gmra.mxu0 %v420
  %v636 = vpop.f32.mrf.mxu0
  %v637 = vadd.f32 %v428, %v636
  %v638 = vpop.f32.mrf.mxu0
  %639 = vmatprep.mubr.f32.mxu0 0.0
  %640 = vmatmul.mubr.f32.gmra.mxu0 %v421
  %v641 = vpop.f32.mrf.mxu0
  %v642 = vadd.f32 %v428, %v641
  %v643 = vpop.f32.mrf.mxu0
  %644 = vmatprep.mubr.f32.mxu0 0.0
  %645 = vmatmul.mubr.f32.gmra.mxu0 %v422
  %v646 = vpop.f32.mrf.mxu0
  %v647 = vadd.f32 %v428, %v646
  %v648 = vpop.f32.mrf.mxu0
  %649 = vmatprep.mubr.f32.mxu0 0.0
  %650 = vmatmul.mubr.f32.gmra.mxu0 %v423
  %v651 = vpop.f32.mrf.mxu0
  %v652 = vadd.f32 %v428, %v651
  %v653 = vpop.f32.mrf.mxu0
  %654 = vdwg.mxu0
  %v655 = vmul.f32 %v497, 0.5
  %v656 = vmul.f32 %v502, 0.5
  %v657 = vmul.f32 %v507, 0.5
  %v658 = vmul.f32 %v512, 0.5
  %v659 = vmul.f32 %v517, 0.5
  %v660 = vmul.f32 %v522, 0.5
  %v661 = vmul.f32 %v527, 0.5
  %v662 = vmul.f32 %v532, 0.5
  %v663 = vmul.f32 %v537, 0.5
  %v664 = vmul.f32 %v542, 0.5
  %v665 = vmul.f32 %v547, 0.5
  %v666 = vmul.f32 %v552, 0.5
  %v667 = vmul.f32 %v557, 0.5
  %v668 = vmul.f32 %v562, 0.5
  %v669 = vmul.f32 %v567, 0.5
  %v670 = vmul.f32 %v572, 0.5
  %v671 = vmul.f32 %v577, 0.5
  %v672 = vmul.f32 %v582, 0.5
  %v673 = vmul.f32 %v587, 0.5
  %v674 = vmul.f32 %v592, 0.5
  %v675 = vmul.f32 %v597, 0.5
  %v676 = vmul.f32 %v602, 0.5
  %v677 = vmul.f32 %v607, 0.5
  %v678 = vmul.f32 %v612, 0.5
  %v679 = vmul.f32 %v617, 0.5
  %v680 = vmul.f32 %v622, 0.5
  %v681 = vmul.f32 %v627, 0.5
  %v682 = vmul.f32 %v632, 0.5
  %v683 = vmul.f32 %v637, 0.5
  %v684 = vmul.f32 %v642, 0.5
  %v685 = vmul.f32 %v647, 0.5
  %v686 = vmul.f32 %v652, 0.5
  %v687 = vmul.f32 %v655, 1.442695
  %v688 = vpow.pop %v687
  %v689 = vmul.f32 %v656, 1.442695
  %v690 = vpow.pop %v689
  %v691 = vmul.f32 %v657, 1.442695
  %v692 = vpow.pop %v691
  %v693 = vmul.f32 %v658, 1.442695
  %v694 = vpow.pop %v693
  %v695 = vmul.f32 %v659, 1.442695
  %v696 = vpow.pop %v695
  %v697 = vmul.f32 %v660, 1.442695
  %v698 = vpow.pop %v697
  %v699 = vmul.f32 %v661, 1.442695
  %v700 = vpow.pop %v699
  %v701 = vmul.f32 %v662, 1.442695
  %v702 = vpow.pop %v701
  %v703 = vmul.f32 %v663, 1.442695
  %v704 = vpow.pop %v703
  %v705 = vmul.f32 %v664, 1.442695
  %v706 = vpow.pop %v705
  %v707 = vmul.f32 %v665, 1.442695
  %v708 = vpow.pop %v707
  %v709 = vmul.f32 %v666, 1.442695
  %v710 = vpow.pop %v709
  %v711 = vmul.f32 %v667, 1.442695
  %v712 = vpow.pop %v711
  %v713 = vmul.f32 %v668, 1.442695
  %v714 = vpow.pop %v713
  %v715 = vmul.f32 %v669, 1.442695
  %v716 = vpow.pop %v715
  %v717 = vmul.f32 %v670, 1.442695
  %v718 = vpow.pop %v717
  %v719 = vmul.f32 %v671, 1.442695
  %v720 = vpow.pop %v719
  %v721 = vmul.f32 %v672, 1.442695
  %v722 = vpow.pop %v721
  %v723 = vmul.f32 %v673, 1.442695
  %v724 = vpow.pop %v723
  %v725 = vmul.f32 %v674, 1.442695
  %v726 = vpow.pop %v725
  %v727 = vmul.f32 %v675, 1.442695
  %v728 = vpow.pop %v727
  %v729 = vmul.f32 %v676, 1.442695
  %v730 = vpow.pop %v729
  %v731 = vmul.f32 %v677, 1.442695
  %v732 = vpow.pop %v731
  %v733 = vmul.f32 %v678, 1.442695
  %v734 = vpow.pop %v733
  %v735 = vmul.f32 %v679, 1.442695
  %v736 = vpow.pop %v735
  %v737 = vmul.f32 %v680, 1.442695
  %v738 = vpow.pop %v737
  %v739 = vmul.f32 %v681, 1.442695
  %v740 = vpow.pop %v739
  %v741 = vmul.f32 %v682, 1.442695
  %v742 = vpow.pop %v741
  %v743 = vmul.f32 %v683, 1.442695
  %v744 = vpow.pop %v743
  %v745 = vmul.f32 %v684, 1.442695
  %v746 = vpow.pop %v745
  %v747 = vmul.f32 %v685, 1.442695
  %v748 = vpow.pop %v747
  %v749 = vmul.f32 %v686, 1.442695
  %v750 = vpow.pop %v749
  %783 = vrot.lane.b32.xlu0 %v688, 64
  %v784 = vpop.permute.xlu0 %783
  %785 = vrot.lane.b32.xlu0 %v690, 64
  %v786 = vpop.permute.xlu0 %785
  %787 = vrot.lane.b32.xlu0 %v692, 64
  %v788 = vpop.permute.xlu0 %787
  %789 = vrot.lane.b32.xlu0 %v694, 64
  %v790 = vpop.permute.xlu0 %789
  %791 = vrot.lane.b32.xlu0 %v696, 64
  %v792 = vpop.permute.xlu0 %791
  %793 = vrot.lane.b32.xlu0 %v698, 64
  %v794 = vpop.permute.xlu0 %793
  %795 = vrot.lane.b32.xlu0 %v700, 64
  %v796 = vpop.permute.xlu0 %795
  %797 = vrot.lane.b32.xlu0 %v702, 64
  %v798 = vpop.permute.xlu0 %797
  %799 = vrot.lane.b32.xlu0 %v704, 64
  %v800 = vpop.permute.xlu0 %799
  %801 = vrot.lane.b32.xlu0 %v706, 64
  %v802 = vpop.permute.xlu0 %801
  %803 = vrot.lane.b32.xlu0 %v708, 64
  %v804 = vpop.permute.xlu0 %803
  %805 = vrot.lane.b32.xlu0 %v710, 64
  %v806 = vpop.permute.xlu0 %805
  %807 = vrot.lane.b32.xlu0 %v712, 64
  %v808 = vpop.permute.xlu0 %807
  %809 = vrot.lane.b32.xlu0 %v714, 64
  %v810 = vpop.permute.xlu0 %809
  %811 = vrot.lane.b32.xlu0 %v716, 64
  %v812 = vpop.permute.xlu0 %811
  %813 = vrot.lane.b32.xlu0 %v718, 64
  %v814 = vpop.permute.xlu0 %813
  %815 = vrot.lane.b32.xlu0 %v720, 64
  %v816 = vpop.permute.xlu0 %815
  %817 = vrot.lane.b32.xlu0 %v722, 64
  %v818 = vpop.permute.xlu0 %817
  %819 = vrot.lane.b32.xlu0 %v724, 64
  %v820 = vpop.permute.xlu0 %819
  %821 = vrot.lane.b32.xlu0 %v726, 64
  %v822 = vpop.permute.xlu0 %821
  %823 = vrot.lane.b32.xlu0 %v728, 64
  %v824 = vpop.permute.xlu0 %823
  %825 = vrot.lane.b32.xlu0 %v730, 64
  %v826 = vpop.permute.xlu0 %825
  %827 = vrot.lane.b32.xlu0 %v732, 64
  %v828 = vpop.permute.xlu0 %827
  %829 = vrot.lane.b32.xlu0 %v734, 64
  %v830 = vpop.permute.xlu0 %829
  %831 = vrot.lane.b32.xlu0 %v736, 64
  %v832 = vpop.permute.xlu0 %831
  %833 = vrot.lane.b32.xlu0 %v738, 64
  %v834 = vpop.permute.xlu0 %833
  %835 = vrot.lane.b32.xlu0 %v740, 64
  %v836 = vpop.permute.xlu0 %835
  %837 = vrot.lane.b32.xlu0 %v742, 64
  %v838 = vpop.permute.xlu0 %837
  %839 = vrot.lane.b32.xlu0 %v744, 64
  %v840 = vpop.permute.xlu0 %839
  %841 = vrot.lane.b32.xlu0 %v746, 64
  %v842 = vpop.permute.xlu0 %841
  %843 = vrot.lane.b32.xlu0 %v748, 64
  %v844 = vpop.permute.xlu0 %843
  %845 = vrot.lane.b32.xlu0 %v750, 64
  %v846 = vpop.permute.xlu0 %845
  %v879 = vmul.f32 %v69, %v784
  %v880 = vmul.f32 %v70, %v786
  %v881 = vmul.f32 %v71, %v788
  %v882 = vmul.f32 %v72, %v790
  %v883 = vmul.f32 %v73, %v792
  %v884 = vmul.f32 %v74, %v794
  %v885 = vmul.f32 %v75, %v796
  %v886 = vmul.f32 %v76, %v798
  %v887 = vmul.f32 %v77, %v800
  %v888 = vmul.f32 %v78, %v802
  %v889 = vmul.f32 %v79, %v804
  %v890 = vmul.f32 %v80, %v806
  %v891 = vmul.f32 %v81, %v808
  %v892 = vmul.f32 %v82, %v810
  %v893 = vmul.f32 %v83, %v812
  %v894 = vmul.f32 %v84, %v814
  %v895 = vmul.f32 %v85, %v816
  %v896 = vmul.f32 %v86, %v818
  %v897 = vmul.f32 %v87, %v820
  %v898 = vmul.f32 %v88, %v822
  %v899 = vmul.f32 %v89, %v824
  %v900 = vmul.f32 %v90, %v826
  %v901 = vmul.f32 %v91, %v828
  %v902 = vmul.f32 %v92, %v830
  %v903 = vmul.f32 %v93, %v832
  %v904 = vmul.f32 %v94, %v834
  %v905 = vmul.f32 %v95, %v836
  %v906 = vmul.f32 %v96, %v838
  %v907 = vmul.f32 %v97, %v840
  %v908 = vmul.f32 %v98, %v842
  %v909 = vmul.f32 %v99, %v844
  %v910 = vmul.f32 %v100, %v846
  %v911 = vadd.f32 %v497, %v879
  %v912 = vadd.f32 %v502, %v880
  %v913 = vadd.f32 %v507, %v881
  %v914 = vadd.f32 %v512, %v882
  %v915 = vadd.f32 %v517, %v883
  %v916 = vadd.f32 %v522, %v884
  %v917 = vadd.f32 %v527, %v885
  %v918 = vadd.f32 %v532, %v886
  %v919 = vadd.f32 %v537, %v887
  %v920 = vadd.f32 %v542, %v888
  %v921 = vadd.f32 %v547, %v889
  %v922 = vadd.f32 %v552, %v890
  %v923 = vadd.f32 %v557, %v891
  %v924 = vadd.f32 %v562, %v892
  %v925 = vadd.f32 %v567, %v893
  %v926 = vadd.f32 %v572, %v894
  %v927 = vadd.f32 %v577, %v895
  %v928 = vadd.f32 %v582, %v896
  %v929 = vadd.f32 %v587, %v897
  %v930 = vadd.f32 %v592, %v898
  %v931 = vadd.f32 %v597, %v899
  %v932 = vadd.f32 %v602, %v900
  %v933 = vadd.f32 %v607, %v901
  %v934 = vadd.f32 %v612, %v902
  %v935 = vadd.f32 %v617, %v903
  %v936 = vadd.f32 %v622, %v904
  %v937 = vadd.f32 %v627, %v905
  %v938 = vadd.f32 %v632, %v906
  %v939 = vadd.f32 %v637, %v907
  %v940 = vadd.f32 %v642, %v908
  %v941 = vadd.f32 %v647, %v909
  %v942 = vadd.f32 %v652, %v910
  %v944 = vlaneseq
  %v945 = vshrl.u32 %v944, 7
  %v946 = vsub.s32 0, %v945
  %v947 = vrot.slane %v143, %v946
  %vm949 = vcmask 523264
  %v951 = vsel %vm949, %v911, 0
  %v954 = vsel %vm949, %v912, 0
  %v957 = vsel %vm949, %v913, 0
  %v960 = vsel %vm949, %v914, 0
  %v963 = vsel %vm949, %v915, 0
  %v966 = vsel %vm949, %v916, 0
  %v969 = vsel %vm949, %v917, 0
  %v972 = vsel %vm949, %v918, 0
  %v975 = vsel %vm949, %v919, 0
  %v978 = vsel %vm949, %v920, 0
  %v981 = vsel %vm949, %v921, 0
  %v984 = vsel %vm949, %v922, 0
  %v987 = vsel %vm949, %v923, 0
  %v990 = vsel %vm949, %v924, 0
  %v993 = vsel %vm949, %v925, 0
  %v996 = vsel %vm949, %v926, 0
  %v999 = vsel %vm949, %v927, 0
  %v1002 = vsel %vm949, %v928, 0
  %v1005 = vsel %vm949, %v929, 0
  %v1008 = vsel %vm949, %v930, 0
  %v1011 = vsel %vm949, %v931, 0
  %v1014 = vsel %vm949, %v932, 0
  %v1017 = vsel %vm949, %v933, 0
  %v1020 = vsel %vm949, %v934, 0
  %v1023 = vsel %vm949, %v935, 0
  %v1026 = vsel %vm949, %v936, 0
  %v1029 = vsel %vm949, %v937, 0
  %v1032 = vsel %vm949, %v938, 0
  %v1035 = vsel %vm949, %v939, 0
  %v1038 = vsel %vm949, %v940, 0
  %v1041 = vsel %vm949, %v941, 0
  %v1044 = vsel %vm949, %v942, 0
  %1046 = vmatprep.subr.mxu0 0.0
  %1047 = vmatpush1.msra.mxu0 0.0
  %1048 = vmatprep.subr.mxu0 0.0
  %1049 = vmatpush1.msra.mxu0 0.0
  %1050 = vmatprep.subr.mxu0 0.0
  %1051 = vmatpush1.msra.mxu0 0.0
  %1052 = vmatprep.subr.mxu0 0.0
  %1053 = vmatpush1.msra.mxu0 0.0
  %1054 = vmatprep.subr.mxu0 0.0
  %1055 = vmatpush1.msra.mxu0 0.0
  %1056 = vmatprep.subr.mxu0 0.0
  %1057 = vmatpush1.msra.mxu0 0.0
  %1058 = vmatprep.subr.mxu0 0.0
  %1059 = vmatpush1.msra.mxu0 0.0
  %1060 = vmatprep.subr.mxu0 0.0
  %1061 = vmatpush1.msra.mxu0 0.0
  %1062 = vmatprep.subr.mxu0 0.0
  %1063 = vmatpush1.msra.mxu0 %v142
  %1064 = vmatprep.subr.mxu0 0.0
  %1065 = vmatpush1.msra.mxu0 %v141
  %1066 = vmatprep.subr.mxu0 0.0
  %1067 = vmatpush1.msra.mxu0 %v140
  %1068 = vmatprep.subr.mxu0 0.0
  %1069 = vmatpush1.msra.mxu0 %v139
  %1070 = vmatprep.subr.mxu0 0.0
  %1071 = vmatpush1.msra.mxu0 %v138
  %1072 = vmatprep.subr.mxu0 0.0
  %1073 = vmatpush1.msra.mxu0 %v137
  %1074 = vmatprep.subr.mxu0 0.0
  %1075 = vmatpush1.msra.mxu0 %v136
  %1076 = vmatprep.subr.mxu0 0.0
  %1077 = vmatpush1.msra.mxu0 %v135
  %1078 = vmatprep.subr.mxu0 0.0
  %1079 = vmatpush2.msra.mxu0 0.0
  %1080 = vmatprep.subr.mxu0 0.0
  %1081 = vmatpush2.msra.mxu0 0.0
  %1082 = vmatprep.subr.mxu0 0.0
  %1083 = vmatpush2.msra.mxu0 0.0
  %1084 = vmatprep.subr.mxu0 0.0
  %1085 = vmatpush2.msra.mxu0 0.0
  %1086 = vmatprep.subr.mxu0 0.0
  %1087 = vmatpush2.msra.mxu0 0.0
  %1088 = vmatprep.subr.mxu0 0.0
  %1089 = vmatpush2.msra.mxu0 0.0
  %1090 = vmatprep.subr.mxu0 0.0
  %1091 = vmatpush2.msra.mxu0 0.0
  %1092 = vmatprep.subr.mxu0 0.0
  %1093 = vmatpush2.msra.mxu0 0.0
  %1094 = vmatprep.subr.mxu0 0.0
  %1095 = vmatpush2.msra.mxu0 0.0
  %1096 = vmatprep.subr.mxu0 0.0
  %1097 = vmatpush2.msra.mxu0 0.0
  %1098 = vmatprep.subr.mxu0 0.0
  %1099 = vmatpush2.msra.mxu0 0.0
  %1100 = vmatprep.subr.mxu0 0.0
  %1101 = vmatpush2.msra.mxu0 0.0
  %1102 = vmatprep.subr.mxu0 0.0
  %1103 = vmatpush2.msra.mxu0 0.0
  %1104 = vmatprep.subr.mxu0 0.0
  %1105 = vmatpush2.msra.mxu0 0.0
  %1106 = vmatprep.subr.mxu0 0.0
  %1107 = vmatpush2.msra.mxu0 0.0
  %1108 = vmatprep.subr.mxu0 0.0
  %1109 = vmatpush2.msra.mxu0 0.0
  %1110 = vmatprep.mubr.f32.mxu0 0.0
  %1111 = vmatmul.mubr.f32.gmra.mxu0 %v951
  %v1112 = vpop.f32.mrf.mxu0
  %v1113 = vadd.f32 %v947, %v1112
  %v1114 = vpop.f32.mrf.mxu0
  %1115 = vmatprep.mubr.f32.mxu0 0.0
  %1116 = vmatmul.mubr.f32.gmra.mxu0 %v954
  %v1117 = vpop.f32.mrf.mxu0
  %v1118 = vadd.f32 %v947, %v1117
  %v1119 = vpop.f32.mrf.mxu0
  %1120 = vmatprep.mubr.f32.mxu0 0.0
  %1121 = vmatmul.mubr.f32.gmra.mxu0 %v957
  %v1122 = vpop.f32.mrf.mxu0
  %v1123 = vadd.f32 %v947, %v1122
  %v1124 = vpop.f32.mrf.mxu0
  %1125 = vmatprep.mubr.f32.mxu0 0.0
  %1126 = vmatmul.mubr.f32.gmra.mxu0 %v960
  %v1127 = vpop.f32.mrf.mxu0
  %v1128 = vadd.f32 %v947, %v1127
  %v1129 = vpop.f32.mrf.mxu0
  %1130 = vmatprep.mubr.f32.mxu0 0.0
  %1131 = vmatmul.mubr.f32.gmra.mxu0 %v963
  %v1132 = vpop.f32.mrf.mxu0
  %v1133 = vadd.f32 %v947, %v1132
  %v1134 = vpop.f32.mrf.mxu0
  %1135 = vmatprep.mubr.f32.mxu0 0.0
  %1136 = vmatmul.mubr.f32.gmra.mxu0 %v966
  %v1137 = vpop.f32.mrf.mxu0
  %v1138 = vadd.f32 %v947, %v1137
  %v1139 = vpop.f32.mrf.mxu0
  %1140 = vmatprep.mubr.f32.mxu0 0.0
  %1141 = vmatmul.mubr.f32.gmra.mxu0 %v969
  %v1142 = vpop.f32.mrf.mxu0
  %v1143 = vadd.f32 %v947, %v1142
  %v1144 = vpop.f32.mrf.mxu0
  %1145 = vmatprep.mubr.f32.mxu0 0.0
  %1146 = vmatmul.mubr.f32.gmra.mxu0 %v972
  %v1147 = vpop.f32.mrf.mxu0
  %v1148 = vadd.f32 %v947, %v1147
  %v1149 = vpop.f32.mrf.mxu0
  %1150 = vmatprep.mubr.f32.mxu0 0.0
  %1151 = vmatmul.mubr.f32.gmra.mxu0 %v975
  %v1152 = vpop.f32.mrf.mxu0
  %v1153 = vadd.f32 %v947, %v1152
  %v1154 = vpop.f32.mrf.mxu0
  %1155 = vmatprep.mubr.f32.mxu0 0.0
  %1156 = vmatmul.mubr.f32.gmra.mxu0 %v978
  %v1157 = vpop.f32.mrf.mxu0
  %v1158 = vadd.f32 %v947, %v1157
  %v1159 = vpop.f32.mrf.mxu0
  %1160 = vmatprep.mubr.f32.mxu0 0.0
  %1161 = vmatmul.mubr.f32.gmra.mxu0 %v981
  %v1162 = vpop.f32.mrf.mxu0
  %v1163 = vadd.f32 %v947, %v1162
  %v1164 = vpop.f32.mrf.mxu0
  %1165 = vmatprep.mubr.f32.mxu0 0.0
  %1166 = vmatmul.mubr.f32.gmra.mxu0 %v984
  %v1167 = vpop.f32.mrf.mxu0
  %v1168 = vadd.f32 %v947, %v1167
  %v1169 = vpop.f32.mrf.mxu0
  %1170 = vmatprep.mubr.f32.mxu0 0.0
  %1171 = vmatmul.mubr.f32.gmra.mxu0 %v987
  %v1172 = vpop.f32.mrf.mxu0
  %v1173 = vadd.f32 %v947, %v1172
  %v1174 = vpop.f32.mrf.mxu0
  %1175 = vmatprep.mubr.f32.mxu0 0.0
  %1176 = vmatmul.mubr.f32.gmra.mxu0 %v990
  %v1177 = vpop.f32.mrf.mxu0
  %v1178 = vadd.f32 %v947, %v1177
  %v1179 = vpop.f32.mrf.mxu0
  %1180 = vmatprep.mubr.f32.mxu0 0.0
  %1181 = vmatmul.mubr.f32.gmra.mxu0 %v993
  %v1182 = vpop.f32.mrf.mxu0
  %v1183 = vadd.f32 %v947, %v1182
  %v1184 = vpop.f32.mrf.mxu0
  %1185 = vmatprep.mubr.f32.mxu0 0.0
  %1186 = vmatmul.mubr.f32.gmra.mxu0 %v996
  %v1187 = vpop.f32.mrf.mxu0
  %v1188 = vadd.f32 %v947, %v1187
  %v1189 = vpop.f32.mrf.mxu0
  %1190 = vmatprep.mubr.f32.mxu0 0.0
  %1191 = vmatmul.mubr.f32.gmra.mxu0 %v999
  %v1192 = vpop.f32.mrf.mxu0
  %v1193 = vadd.f32 %v947, %v1192
  %v1194 = vpop.f32.mrf.mxu0
  %1195 = vmatprep.mubr.f32.mxu0 0.0
  %1196 = vmatmul.mubr.f32.gmra.mxu0 %v1002
  %v1197 = vpop.f32.mrf.mxu0
  %v1198 = vadd.f32 %v947, %v1197
  %v1199 = vpop.f32.mrf.mxu0
  %1200 = vmatprep.mubr.f32.mxu0 0.0
  %1201 = vmatmul.mubr.f32.gmra.mxu0 %v1005
  %v1202 = vpop.f32.mrf.mxu0
  %v1203 = vadd.f32 %v947, %v1202
  %v1204 = vpop.f32.mrf.mxu0
  %1205 = vmatprep.mubr.f32.mxu0 0.0
  %1206 = vmatmul.mubr.f32.gmra.mxu0 %v1008
  %v1207 = vpop.f32.mrf.mxu0
  %v1208 = vadd.f32 %v947, %v1207
  %v1209 = vpop.f32.mrf.mxu0
  %1210 = vmatprep.mubr.f32.mxu0 0.0
  %1211 = vmatmul.mubr.f32.gmra.mxu0 %v1011
  %v1212 = vpop.f32.mrf.mxu0
  %v1213 = vadd.f32 %v947, %v1212
  %v1214 = vpop.f32.mrf.mxu0
  %1215 = vmatprep.mubr.f32.mxu0 0.0
  %1216 = vmatmul.mubr.f32.gmra.mxu0 %v1014
  %v1217 = vpop.f32.mrf.mxu0
  %v1218 = vadd.f32 %v947, %v1217
  %v1219 = vpop.f32.mrf.mxu0
  %1220 = vmatprep.mubr.f32.mxu0 0.0
  %1221 = vmatmul.mubr.f32.gmra.mxu0 %v1017
  %v1222 = vpop.f32.mrf.mxu0
  %v1223 = vadd.f32 %v947, %v1222
  %v1224 = vpop.f32.mrf.mxu0
  %1225 = vmatprep.mubr.f32.mxu0 0.0
  %1226 = vmatmul.mubr.f32.gmra.mxu0 %v1020
  %v1227 = vpop.f32.mrf.mxu0
  %v1228 = vadd.f32 %v947, %v1227
  %v1229 = vpop.f32.mrf.mxu0
  %1230 = vmatprep.mubr.f32.mxu0 0.0
  %1231 = vmatmul.mubr.f32.gmra.mxu0 %v1023
  %v1232 = vpop.f32.mrf.mxu0
  %v1233 = vadd.f32 %v947, %v1232
  %v1234 = vpop.f32.mrf.mxu0
  %1235 = vmatprep.mubr.f32.mxu0 0.0
  %1236 = vmatmul.mubr.f32.gmra.mxu0 %v1026
  %v1237 = vpop.f32.mrf.mxu0
  %v1238 = vadd.f32 %v947, %v1237
  %v1239 = vpop.f32.mrf.mxu0
  %1240 = vmatprep.mubr.f32.mxu0 0.0
  %1241 = vmatmul.mubr.f32.gmra.mxu0 %v1029
  %v1242 = vpop.f32.mrf.mxu0
  %v1243 = vadd.f32 %v947, %v1242
  %v1244 = vpop.f32.mrf.mxu0
  %1245 = vmatprep.mubr.f32.mxu0 0.0
  %1246 = vmatmul.mubr.f32.gmra.mxu0 %v1032
  %v1247 = vpop.f32.mrf.mxu0
  %v1248 = vadd.f32 %v947, %v1247
  %v1249 = vpop.f32.mrf.mxu0
  %1250 = vmatprep.mubr.f32.mxu0 0.0
  %1251 = vmatmul.mubr.f32.gmra.mxu0 %v1035
  %v1252 = vpop.f32.mrf.mxu0
  %v1253 = vadd.f32 %v947, %v1252
  %v1254 = vpop.f32.mrf.mxu0
  %1255 = vmatprep.mubr.f32.mxu0 0.0
  %1256 = vmatmul.mubr.f32.gmra.mxu0 %v1038
  %v1257 = vpop.f32.mrf.mxu0
  %v1258 = vadd.f32 %v947, %v1257
  %v1259 = vpop.f32.mrf.mxu0
  %1260 = vmatprep.mubr.f32.mxu0 0.0
  %1261 = vmatmul.mubr.f32.gmra.mxu0 %v1041
  %v1262 = vpop.f32.mrf.mxu0
  %v1263 = vadd.f32 %v947, %v1262
  %v1264 = vpop.f32.mrf.mxu0
  %1265 = vmatprep.mubr.f32.mxu0 0.0
  %1266 = vmatmul.mubr.f32.gmra.mxu0 %v1044
  %v1267 = vpop.f32.mrf.mxu0
  %v1268 = vadd.f32 %v947, %v1267
  %v1269 = vpop.f32.mrf.mxu0
  %1270 = vdwg.mxu0
  %v1271 = vmax.f32 %v1113, 0.0
  %v1272 = vmax.f32 %v1118, 0.0
  %v1273 = vmax.f32 %v1123, 0.0
  %v1274 = vmax.f32 %v1128, 0.0
  %v1275 = vmax.f32 %v1133, 0.0
  %v1276 = vmax.f32 %v1138, 0.0
  %v1277 = vmax.f32 %v1143, 0.0
  %v1278 = vmax.f32 %v1148, 0.0
  %v1279 = vmax.f32 %v1153, 0.0
  %v1280 = vmax.f32 %v1158, 0.0
  %v1281 = vmax.f32 %v1163, 0.0
  %v1282 = vmax.f32 %v1168, 0.0
  %v1283 = vmax.f32 %v1173, 0.0
  %v1284 = vmax.f32 %v1178, 0.0
  %v1285 = vmax.f32 %v1183, 0.0
  %v1286 = vmax.f32 %v1188, 0.0
  %v1287 = vmax.f32 %v1193, 0.0
  %v1288 = vmax.f32 %v1198, 0.0
  %v1289 = vmax.f32 %v1203, 0.0
  %v1290 = vmax.f32 %v1208, 0.0
  %v1291 = vmax.f32 %v1213, 0.0
  %v1292 = vmax.f32 %v1218, 0.0
  %v1293 = vmax.f32 %v1223, 0.0
  %v1294 = vmax.f32 %v1228, 0.0
  %v1295 = vmax.f32 %v1233, 0.0
  %v1296 = vmax.f32 %v1238, 0.0
  %v1297 = vmax.f32 %v1243, 0.0
  %v1298 = vmax.f32 %v1248, 0.0
  %v1299 = vmax.f32 %v1253, 0.0
  %v1300 = vmax.f32 %v1258, 0.0
  %v1301 = vmax.f32 %v1263, 0.0
  %v1302 = vmax.f32 %v1268, 0.0
  %v1304 = vlaneseq
  %v1305 = vshrl.u32 %v1304, 7
  %v1306 = vsub.s32 0, %v1305
  %v1307 = vrot.slane %v160, %v1306
  %1309 = vmatprep.subr.mxu0 0.0
  %1310 = vmatpush1.msra.mxu0 %v159
  %1311 = vmatprep.subr.mxu0 0.0
  %1312 = vmatpush1.msra.mxu0 %v158
  %1313 = vmatprep.subr.mxu0 0.0
  %1314 = vmatpush1.msra.mxu0 %v157
  %1315 = vmatprep.subr.mxu0 0.0
  %1316 = vmatpush1.msra.mxu0 %v156
  %1317 = vmatprep.subr.mxu0 0.0
  %1318 = vmatpush1.msra.mxu0 %v155
  %1319 = vmatprep.subr.mxu0 0.0
  %1320 = vmatpush1.msra.mxu0 %v154
  %1321 = vmatprep.subr.mxu0 0.0
  %1322 = vmatpush1.msra.mxu0 %v153
  %1323 = vmatprep.subr.mxu0 0.0
  %1324 = vmatpush1.msra.mxu0 %v152
  %1325 = vmatprep.subr.mxu0 0.0
  %1326 = vmatpush1.msra.mxu0 %v151
  %1327 = vmatprep.subr.mxu0 0.0
  %1328 = vmatpush1.msra.mxu0 %v150
  %1329 = vmatprep.subr.mxu0 0.0
  %1330 = vmatpush1.msra.mxu0 %v149
  %1331 = vmatprep.subr.mxu0 0.0
  %1332 = vmatpush1.msra.mxu0 %v148
  %1333 = vmatprep.subr.mxu0 0.0
  %1334 = vmatpush1.msra.mxu0 %v147
  %1335 = vmatprep.subr.mxu0 0.0
  %1336 = vmatpush1.msra.mxu0 %v146
  %1337 = vmatprep.subr.mxu0 0.0
  %1338 = vmatpush1.msra.mxu0 %v145
  %1339 = vmatprep.subr.mxu0 0.0
  %1340 = vmatpush1.msra.mxu0 %v144
  %1341 = vmatprep.subr.mxu0 0.0
  %1342 = vmatpush2.msra.mxu0 0.0
  %1343 = vmatprep.subr.mxu0 0.0
  %1344 = vmatpush2.msra.mxu0 0.0
  %1345 = vmatprep.subr.mxu0 0.0
  %1346 = vmatpush2.msra.mxu0 0.0
  %1347 = vmatprep.subr.mxu0 0.0
  %1348 = vmatpush2.msra.mxu0 0.0
  %1349 = vmatprep.subr.mxu0 0.0
  %1350 = vmatpush2.msra.mxu0 0.0
  %1351 = vmatprep.subr.mxu0 0.0
  %1352 = vmatpush2.msra.mxu0 0.0
  %1353 = vmatprep.subr.mxu0 0.0
  %1354 = vmatpush2.msra.mxu0 0.0
  %1355 = vmatprep.subr.mxu0 0.0
  %1356 = vmatpush2.msra.mxu0 0.0
  %1357 = vmatprep.subr.mxu0 0.0
  %1358 = vmatpush2.msra.mxu0 0.0
  %1359 = vmatprep.subr.mxu0 0.0
  %1360 = vmatpush2.msra.mxu0 0.0
  %1361 = vmatprep.subr.mxu0 0.0
  %1362 = vmatpush2.msra.mxu0 0.0
  %1363 = vmatprep.subr.mxu0 0.0
  %1364 = vmatpush2.msra.mxu0 0.0
  %1365 = vmatprep.subr.mxu0 0.0
  %1366 = vmatpush2.msra.mxu0 0.0
  %1367 = vmatprep.subr.mxu0 0.0
  %1368 = vmatpush2.msra.mxu0 0.0
  %1369 = vmatprep.subr.mxu0 0.0
  %1370 = vmatpush2.msra.mxu0 0.0
  %1371 = vmatprep.subr.mxu0 0.0
  %1372 = vmatpush2.msra.mxu0 0.0
  %1373 = vmatprep.mubr.f32.mxu0 0.0
  %1374 = vmatmul.mubr.f32.gmra.mxu0 %v1271
  %v1375 = vpop.f32.mrf.mxu0
  %v1376 = vadd.f32 %v1307, %v1375
  %v1377 = vpop.f32.mrf.mxu0
  %1378 = vmatprep.mubr.f32.mxu0 0.0
  %1379 = vmatmul.mubr.f32.gmra.mxu0 %v1272
  %v1380 = vpop.f32.mrf.mxu0
  %v1381 = vadd.f32 %v1307, %v1380
  %v1382 = vpop.f32.mrf.mxu0
  %1383 = vmatprep.mubr.f32.mxu0 0.0
  %1384 = vmatmul.mubr.f32.gmra.mxu0 %v1273
  %v1385 = vpop.f32.mrf.mxu0
  %v1386 = vadd.f32 %v1307, %v1385
  %v1387 = vpop.f32.mrf.mxu0
  %1388 = vmatprep.mubr.f32.mxu0 0.0
  %1389 = vmatmul.mubr.f32.gmra.mxu0 %v1274
  %v1390 = vpop.f32.mrf.mxu0
  %v1391 = vadd.f32 %v1307, %v1390
  %v1392 = vpop.f32.mrf.mxu0
  %1393 = vmatprep.mubr.f32.mxu0 0.0
  %1394 = vmatmul.mubr.f32.gmra.mxu0 %v1275
  %v1395 = vpop.f32.mrf.mxu0
  %v1396 = vadd.f32 %v1307, %v1395
  %v1397 = vpop.f32.mrf.mxu0
  %1398 = vmatprep.mubr.f32.mxu0 0.0
  %1399 = vmatmul.mubr.f32.gmra.mxu0 %v1276
  %v1400 = vpop.f32.mrf.mxu0
  %v1401 = vadd.f32 %v1307, %v1400
  %v1402 = vpop.f32.mrf.mxu0
  %1403 = vmatprep.mubr.f32.mxu0 0.0
  %1404 = vmatmul.mubr.f32.gmra.mxu0 %v1277
  %v1405 = vpop.f32.mrf.mxu0
  %v1406 = vadd.f32 %v1307, %v1405
  %v1407 = vpop.f32.mrf.mxu0
  %1408 = vmatprep.mubr.f32.mxu0 0.0
  %1409 = vmatmul.mubr.f32.gmra.mxu0 %v1278
  %v1410 = vpop.f32.mrf.mxu0
  %v1411 = vadd.f32 %v1307, %v1410
  %v1412 = vpop.f32.mrf.mxu0
  %1413 = vmatprep.mubr.f32.mxu0 0.0
  %1414 = vmatmul.mubr.f32.gmra.mxu0 %v1279
  %v1415 = vpop.f32.mrf.mxu0
  %v1416 = vadd.f32 %v1307, %v1415
  %v1417 = vpop.f32.mrf.mxu0
  %1418 = vmatprep.mubr.f32.mxu0 0.0
  %1419 = vmatmul.mubr.f32.gmra.mxu0 %v1280
  %v1420 = vpop.f32.mrf.mxu0
  %v1421 = vadd.f32 %v1307, %v1420
  %v1422 = vpop.f32.mrf.mxu0
  %1423 = vmatprep.mubr.f32.mxu0 0.0
  %1424 = vmatmul.mubr.f32.gmra.mxu0 %v1281
  %v1425 = vpop.f32.mrf.mxu0
  %v1426 = vadd.f32 %v1307, %v1425
  %v1427 = vpop.f32.mrf.mxu0
  %1428 = vmatprep.mubr.f32.mxu0 0.0
  %1429 = vmatmul.mubr.f32.gmra.mxu0 %v1282
  %v1430 = vpop.f32.mrf.mxu0
  %v1431 = vadd.f32 %v1307, %v1430
  %v1432 = vpop.f32.mrf.mxu0
  %1433 = vmatprep.mubr.f32.mxu0 0.0
  %1434 = vmatmul.mubr.f32.gmra.mxu0 %v1283
  %v1435 = vpop.f32.mrf.mxu0
  %v1436 = vadd.f32 %v1307, %v1435
  %v1437 = vpop.f32.mrf.mxu0
  %1438 = vmatprep.mubr.f32.mxu0 0.0
  %1439 = vmatmul.mubr.f32.gmra.mxu0 %v1284
  %v1440 = vpop.f32.mrf.mxu0
  %v1441 = vadd.f32 %v1307, %v1440
  %v1442 = vpop.f32.mrf.mxu0
  %1443 = vmatprep.mubr.f32.mxu0 0.0
  %1444 = vmatmul.mubr.f32.gmra.mxu0 %v1285
  %v1445 = vpop.f32.mrf.mxu0
  %v1446 = vadd.f32 %v1307, %v1445
  %v1447 = vpop.f32.mrf.mxu0
  %1448 = vmatprep.mubr.f32.mxu0 0.0
  %1449 = vmatmul.mubr.f32.gmra.mxu0 %v1286
  %v1450 = vpop.f32.mrf.mxu0
  %v1451 = vadd.f32 %v1307, %v1450
  %v1452 = vpop.f32.mrf.mxu0
  %1453 = vmatprep.mubr.f32.mxu0 0.0
  %1454 = vmatmul.mubr.f32.gmra.mxu0 %v1287
  %v1455 = vpop.f32.mrf.mxu0
  %v1456 = vadd.f32 %v1307, %v1455
  %v1457 = vpop.f32.mrf.mxu0
  %1458 = vmatprep.mubr.f32.mxu0 0.0
  %1459 = vmatmul.mubr.f32.gmra.mxu0 %v1288
  %v1460 = vpop.f32.mrf.mxu0
  %v1461 = vadd.f32 %v1307, %v1460
  %v1462 = vpop.f32.mrf.mxu0
  %1463 = vmatprep.mubr.f32.mxu0 0.0
  %1464 = vmatmul.mubr.f32.gmra.mxu0 %v1289
  %v1465 = vpop.f32.mrf.mxu0
  %v1466 = vadd.f32 %v1307, %v1465
  %v1467 = vpop.f32.mrf.mxu0
  %1468 = vmatprep.mubr.f32.mxu0 0.0
  %1469 = vmatmul.mubr.f32.gmra.mxu0 %v1290
  %v1470 = vpop.f32.mrf.mxu0
  %v1471 = vadd.f32 %v1307, %v1470
  %v1472 = vpop.f32.mrf.mxu0
  %1473 = vmatprep.mubr.f32.mxu0 0.0
  %1474 = vmatmul.mubr.f32.gmra.mxu0 %v1291
  %v1475 = vpop.f32.mrf.mxu0
  %v1476 = vadd.f32 %v1307, %v1475
  %v1477 = vpop.f32.mrf.mxu0
  %1478 = vmatprep.mubr.f32.mxu0 0.0
  %1479 = vmatmul.mubr.f32.gmra.mxu0 %v1292
  %v1480 = vpop.f32.mrf.mxu0
  %v1481 = vadd.f32 %v1307, %v1480
  %v1482 = vpop.f32.mrf.mxu0
  %1483 = vmatprep.mubr.f32.mxu0 0.0
  %1484 = vmatmul.mubr.f32.gmra.mxu0 %v1293
  %v1485 = vpop.f32.mrf.mxu0
  %v1486 = vadd.f32 %v1307, %v1485
  %v1487 = vpop.f32.mrf.mxu0
  %1488 = vmatprep.mubr.f32.mxu0 0.0
  %1489 = vmatmul.mubr.f32.gmra.mxu0 %v1294
  %v1490 = vpop.f32.mrf.mxu0
  %v1491 = vadd.f32 %v1307, %v1490
  %v1492 = vpop.f32.mrf.mxu0
  %1493 = vmatprep.mubr.f32.mxu0 0.0
  %1494 = vmatmul.mubr.f32.gmra.mxu0 %v1295
  %v1495 = vpop.f32.mrf.mxu0
  %v1496 = vadd.f32 %v1307, %v1495
  %v1497 = vpop.f32.mrf.mxu0
  %1498 = vmatprep.mubr.f32.mxu0 0.0
  %1499 = vmatmul.mubr.f32.gmra.mxu0 %v1296
  %v1500 = vpop.f32.mrf.mxu0
  %v1501 = vadd.f32 %v1307, %v1500
  %v1502 = vpop.f32.mrf.mxu0
  %1503 = vmatprep.mubr.f32.mxu0 0.0
  %1504 = vmatmul.mubr.f32.gmra.mxu0 %v1297
  %v1505 = vpop.f32.mrf.mxu0
  %v1506 = vadd.f32 %v1307, %v1505
  %v1507 = vpop.f32.mrf.mxu0
  %1508 = vmatprep.mubr.f32.mxu0 0.0
  %1509 = vmatmul.mubr.f32.gmra.mxu0 %v1298
  %v1510 = vpop.f32.mrf.mxu0
  %v1511 = vadd.f32 %v1307, %v1510
  %v1512 = vpop.f32.mrf.mxu0
  %1513 = vmatprep.mubr.f32.mxu0 0.0
  %1514 = vmatmul.mubr.f32.gmra.mxu0 %v1299
  %v1515 = vpop.f32.mrf.mxu0
  %v1516 = vadd.f32 %v1307, %v1515
  %v1517 = vpop.f32.mrf.mxu0
  %1518 = vmatprep.mubr.f32.mxu0 0.0
  %1519 = vmatmul.mubr.f32.gmra.mxu0 %v1300
  %v1520 = vpop.f32.mrf.mxu0
  %v1521 = vadd.f32 %v1307, %v1520
  %v1522 = vpop.f32.mrf.mxu0
  %1523 = vmatprep.mubr.f32.mxu0 0.0
  %1524 = vmatmul.mubr.f32.gmra.mxu0 %v1301
  %v1525 = vpop.f32.mrf.mxu0
  %v1526 = vadd.f32 %v1307, %v1525
  %v1527 = vpop.f32.mrf.mxu0
  %1528 = vmatprep.mubr.f32.mxu0 0.0
  %1529 = vmatmul.mubr.f32.gmra.mxu0 %v1302
  %v1530 = vpop.f32.mrf.mxu0
  %v1531 = vadd.f32 %v1307, %v1530
  %v1532 = vpop.f32.mrf.mxu0
  %1533 = vdwg.mxu0
  %v1534 = vxor.u32 %v1376, 2147483648
  %v1535 = vxor.u32 %v1381, 2147483648
  %v1536 = vxor.u32 %v1386, 2147483648
  %v1537 = vxor.u32 %v1391, 2147483648
  %v1538 = vxor.u32 %v1396, 2147483648
  %v1539 = vxor.u32 %v1401, 2147483648
  %v1540 = vxor.u32 %v1406, 2147483648
  %v1541 = vxor.u32 %v1411, 2147483648
  %v1542 = vxor.u32 %v1416, 2147483648
  %v1543 = vxor.u32 %v1421, 2147483648
  %v1544 = vxor.u32 %v1426, 2147483648
  %v1545 = vxor.u32 %v1431, 2147483648
  %v1546 = vxor.u32 %v1436, 2147483648
  %v1547 = vxor.u32 %v1441, 2147483648
  %v1548 = vxor.u32 %v1446, 2147483648
  %v1549 = vxor.u32 %v1451, 2147483648
  %v1550 = vxor.u32 %v1456, 2147483648
  %v1551 = vxor.u32 %v1461, 2147483648
  %v1552 = vxor.u32 %v1466, 2147483648
  %v1553 = vxor.u32 %v1471, 2147483648
  %v1554 = vxor.u32 %v1476, 2147483648
  %v1555 = vxor.u32 %v1481, 2147483648
  %v1556 = vxor.u32 %v1486, 2147483648
  %v1557 = vxor.u32 %v1491, 2147483648
  %v1558 = vxor.u32 %v1496, 2147483648
  %v1559 = vxor.u32 %v1501, 2147483648
  %v1560 = vxor.u32 %v1506, 2147483648
  %v1561 = vxor.u32 %v1511, 2147483648
  %v1562 = vxor.u32 %v1516, 2147483648
  %v1563 = vxor.u32 %v1521, 2147483648
  %v1564 = vxor.u32 %v1526, 2147483648
  %v1565 = vxor.u32 %v1531, 2147483648
  %v1566 = vmul.f32 %v1534, 1.442695
  %v1567 = vpow.pop %v1566
  %v1568 = vmul.f32 %v1535, 1.442695
  %v1569 = vpow.pop %v1568
  %v1570 = vmul.f32 %v1536, 1.442695
  %v1571 = vpow.pop %v1570
  %v1572 = vmul.f32 %v1537, 1.442695
  %v1573 = vpow.pop %v1572
  %v1574 = vmul.f32 %v1538, 1.442695
  %v1575 = vpow.pop %v1574
  %v1576 = vmul.f32 %v1539, 1.442695
  %v1577 = vpow.pop %v1576
  %v1578 = vmul.f32 %v1540, 1.442695
  %v1579 = vpow.pop %v1578
  %v1580 = vmul.f32 %v1541, 1.442695
  %v1581 = vpow.pop %v1580
  %v1582 = vmul.f32 %v1542, 1.442695
  %v1583 = vpow.pop %v1582
  %v1584 = vmul.f32 %v1543, 1.442695
  %v1585 = vpow.pop %v1584
  %v1586 = vmul.f32 %v1544, 1.442695
  %v1587 = vpow.pop %v1586
  %v1588 = vmul.f32 %v1545, 1.442695
  %v1589 = vpow.pop %v1588
  %v1590 = vmul.f32 %v1546, 1.442695
  %v1591 = vpow.pop %v1590
  %v1592 = vmul.f32 %v1547, 1.442695
  %v1593 = vpow.pop %v1592
  %v1594 = vmul.f32 %v1548, 1.442695
  %v1595 = vpow.pop %v1594
  %v1596 = vmul.f32 %v1549, 1.442695
  %v1597 = vpow.pop %v1596
  %v1598 = vmul.f32 %v1550, 1.442695
  %v1599 = vpow.pop %v1598
  %v1600 = vmul.f32 %v1551, 1.442695
  %v1601 = vpow.pop %v1600
  %v1602 = vmul.f32 %v1552, 1.442695
  %v1603 = vpow.pop %v1602
  %v1604 = vmul.f32 %v1553, 1.442695
  %v1605 = vpow.pop %v1604
  %v1606 = vmul.f32 %v1554, 1.442695
  %v1607 = vpow.pop %v1606
  %v1608 = vmul.f32 %v1555, 1.442695
  %v1609 = vpow.pop %v1608
  %v1610 = vmul.f32 %v1556, 1.442695
  %v1611 = vpow.pop %v1610
  %v1612 = vmul.f32 %v1557, 1.442695
  %v1613 = vpow.pop %v1612
  %v1614 = vmul.f32 %v1558, 1.442695
  %v1615 = vpow.pop %v1614
  %v1616 = vmul.f32 %v1559, 1.442695
  %v1617 = vpow.pop %v1616
  %v1618 = vmul.f32 %v1560, 1.442695
  %v1619 = vpow.pop %v1618
  %v1620 = vmul.f32 %v1561, 1.442695
  %v1621 = vpow.pop %v1620
  %v1622 = vmul.f32 %v1562, 1.442695
  %v1623 = vpow.pop %v1622
  %v1624 = vmul.f32 %v1563, 1.442695
  %v1625 = vpow.pop %v1624
  %v1626 = vmul.f32 %v1564, 1.442695
  %v1627 = vpow.pop %v1626
  %v1628 = vmul.f32 %v1565, 1.442695
  %v1629 = vpow.pop %v1628
  %v1630 = vadd.f32 %v1567, 1.0
  %v1631 = vadd.f32 %v1569, 1.0
  %v1632 = vadd.f32 %v1571, 1.0
  %v1633 = vadd.f32 %v1573, 1.0
  %v1634 = vadd.f32 %v1575, 1.0
  %v1635 = vadd.f32 %v1577, 1.0
  %v1636 = vadd.f32 %v1579, 1.0
  %v1637 = vadd.f32 %v1581, 1.0
  %v1638 = vadd.f32 %v1583, 1.0
  %v1639 = vadd.f32 %v1585, 1.0
  %v1640 = vadd.f32 %v1587, 1.0
  %v1641 = vadd.f32 %v1589, 1.0
  %v1642 = vadd.f32 %v1591, 1.0
  %v1643 = vadd.f32 %v1593, 1.0
  %v1644 = vadd.f32 %v1595, 1.0
  %v1645 = vadd.f32 %v1597, 1.0
  %v1646 = vadd.f32 %v1599, 1.0
  %v1647 = vadd.f32 %v1601, 1.0
  %v1648 = vadd.f32 %v1603, 1.0
  %v1649 = vadd.f32 %v1605, 1.0
  %v1650 = vadd.f32 %v1607, 1.0
  %v1651 = vadd.f32 %v1609, 1.0
  %v1652 = vadd.f32 %v1611, 1.0
  %v1653 = vadd.f32 %v1613, 1.0
  %v1654 = vadd.f32 %v1615, 1.0
  %v1655 = vadd.f32 %v1617, 1.0
  %v1656 = vadd.f32 %v1619, 1.0
  %v1657 = vadd.f32 %v1621, 1.0
  %v1658 = vadd.f32 %v1623, 1.0
  %v1659 = vadd.f32 %v1625, 1.0
  %v1660 = vadd.f32 %v1627, 1.0
  %v1661 = vadd.f32 %v1629, 1.0
  %v1662 = vrcp.pop %v1630
  %v1663 = vmul.f32 1.0, %v1662
  %v1664 = vrcp.pop %v1631
  %v1665 = vmul.f32 1.0, %v1664
  %v1666 = vrcp.pop %v1632
  %v1667 = vmul.f32 1.0, %v1666
  %v1668 = vrcp.pop %v1633
  %v1669 = vmul.f32 1.0, %v1668
  %v1670 = vrcp.pop %v1634
  %v1671 = vmul.f32 1.0, %v1670
  %v1672 = vrcp.pop %v1635
  %v1673 = vmul.f32 1.0, %v1672
  %v1674 = vrcp.pop %v1636
  %v1675 = vmul.f32 1.0, %v1674
  %v1676 = vrcp.pop %v1637
  %v1677 = vmul.f32 1.0, %v1676
  %v1678 = vrcp.pop %v1638
  %v1679 = vmul.f32 1.0, %v1678
  %v1680 = vrcp.pop %v1639
  %v1681 = vmul.f32 1.0, %v1680
  %v1682 = vrcp.pop %v1640
  %v1683 = vmul.f32 1.0, %v1682
  %v1684 = vrcp.pop %v1641
  %v1685 = vmul.f32 1.0, %v1684
  %v1686 = vrcp.pop %v1642
  %v1687 = vmul.f32 1.0, %v1686
  %v1688 = vrcp.pop %v1643
  %v1689 = vmul.f32 1.0, %v1688
  %v1690 = vrcp.pop %v1644
  %v1691 = vmul.f32 1.0, %v1690
  %v1692 = vrcp.pop %v1645
  %v1693 = vmul.f32 1.0, %v1692
  %v1694 = vrcp.pop %v1646
  %v1695 = vmul.f32 1.0, %v1694
  %v1696 = vrcp.pop %v1647
  %v1697 = vmul.f32 1.0, %v1696
  %v1698 = vrcp.pop %v1648
  %v1699 = vmul.f32 1.0, %v1698
  %v1700 = vrcp.pop %v1649
  %v1701 = vmul.f32 1.0, %v1700
  %v1702 = vrcp.pop %v1650
  %v1703 = vmul.f32 1.0, %v1702
  %v1704 = vrcp.pop %v1651
  %v1705 = vmul.f32 1.0, %v1704
  %v1706 = vrcp.pop %v1652
  %v1707 = vmul.f32 1.0, %v1706
  %v1708 = vrcp.pop %v1653
  %v1709 = vmul.f32 1.0, %v1708
  %v1710 = vrcp.pop %v1654
  %v1711 = vmul.f32 1.0, %v1710
  %v1712 = vrcp.pop %v1655
  %v1713 = vmul.f32 1.0, %v1712
  %v1714 = vrcp.pop %v1656
  %v1715 = vmul.f32 1.0, %v1714
  %v1716 = vrcp.pop %v1657
  %v1717 = vmul.f32 1.0, %v1716
  %v1718 = vrcp.pop %v1658
  %v1719 = vmul.f32 1.0, %v1718
  %v1720 = vrcp.pop %v1659
  %v1721 = vmul.f32 1.0, %v1720
  %v1722 = vrcp.pop %v1660
  %v1723 = vmul.f32 1.0, %v1722
  %v1724 = vrcp.pop %v1661
  %v1725 = vmul.f32 1.0, %v1724
  %1726 = vst [vmem:[%s10] sm:$0xff] %v1663
  %1727 = vst [vmem:[%s10 + $0x8] sm:$0xff] %v1665
  %1728 = vst [vmem:[%s10 + $0x10] sm:$0xff] %v1667
  %1729 = vst [vmem:[%s10 + $0x18] sm:$0xff] %v1669
  %1730 = vst [vmem:[%s10 + $0x20] sm:$0xff] %v1671
  %1731 = vst [vmem:[%s10 + $0x28] sm:$0xff] %v1673
  %1732 = vst [vmem:[%s10 + $0x30] sm:$0xff] %v1675
  %1733 = vst [vmem:[%s10 + $0x38] sm:$0xff] %v1677
  %1734 = vst [vmem:[%s10 + $0x40] sm:$0xff] %v1679
  %1735 = vst [vmem:[%s10 + $0x48] sm:$0xff] %v1681
  %1736 = vst [vmem:[%s10 + $0x50] sm:$0xff] %v1683
  %1737 = vst [vmem:[%s10 + $0x58] sm:$0xff] %v1685
  %1738 = vst [vmem:[%s10 + $0x60] sm:$0xff] %v1687
  %1739 = vst [vmem:[%s10 + $0x68] sm:$0xff] %v1689
  %1740 = vst [vmem:[%s10 + $0x70] sm:$0xff] %v1691
  %1741 = vst [vmem:[%s10 + $0x78] sm:$0xff] %v1693
  %1742 = vst [vmem:[%s10 + $0x80] sm:$0xff] %v1695
  %1743 = vst [vmem:[%s10 + $0x88] sm:$0xff] %v1697
  %1744 = vst [vmem:[%s10 + $0x90] sm:$0xff] %v1699
  %1745 = vst [vmem:[%s10 + $0x98] sm:$0xff] %v1701
  %1746 = vst [vmem:[%s10 + $0xa0] sm:$0xff] %v1703
  %1747 = vst [vmem:[%s10 + $0xa8] sm:$0xff] %v1705
  %1748 = vst [vmem:[%s10 + $0xb0] sm:$0xff] %v1707
  %1749 = vst [vmem:[%s10 + $0xb8] sm:$0xff] %v1709
  %1750 = vst [vmem:[%s10 + $0xc0] sm:$0xff] %v1711
  %1751 = vst [vmem:[%s10 + $0xc8] sm:$0xff] %v1713
  %1752 = vst [vmem:[%s10 + $0xd0] sm:$0xff] %v1715
  %1753 = vst [vmem:[%s10 + $0xd8] sm:$0xff] %v1717
  %1754 = vst [vmem:[%s10 + $0xe0] sm:$0xff] %v1719
  %1755 = vst [vmem:[%s10 + $0xe8] sm:$0xff] %v1721
  %1756 = vst [vmem:[%s10 + $0xf0] sm:$0xff] %v1723
  %1757 = vst [vmem:[%s10 + $0xf8] sm:$0xff] %v1725
  %1758 = vst [vmem:[%s11] sm:$0xff] %v497
  %1759 = vst [vmem:[%s11 + $0x8] sm:$0xff] %v502
  %1760 = vst [vmem:[%s11 + $0x10] sm:$0xff] %v507
  %1761 = vst [vmem:[%s11 + $0x18] sm:$0xff] %v512
  %1762 = vst [vmem:[%s11 + $0x20] sm:$0xff] %v517
  %1763 = vst [vmem:[%s11 + $0x28] sm:$0xff] %v522
  %1764 = vst [vmem:[%s11 + $0x30] sm:$0xff] %v527
  %1765 = vst [vmem:[%s11 + $0x38] sm:$0xff] %v532
  %1766 = vst [vmem:[%s11 + $0x40] sm:$0xff] %v537
  %1767 = vst [vmem:[%s11 + $0x48] sm:$0xff] %v542
  %1768 = vst [vmem:[%s11 + $0x50] sm:$0xff] %v547
  %1769 = vst [vmem:[%s11 + $0x58] sm:$0xff] %v552
  %1770 = vst [vmem:[%s11 + $0x60] sm:$0xff] %v557
  %1771 = vst [vmem:[%s11 + $0x68] sm:$0xff] %v562
  %1772 = vst [vmem:[%s11 + $0x70] sm:$0xff] %v567
  %1773 = vst [vmem:[%s11 + $0x78] sm:$0xff] %v572
  %1774 = vst [vmem:[%s11 + $0x80] sm:$0xff] %v577
  %1775 = vst [vmem:[%s11 + $0x88] sm:$0xff] %v582
  %1776 = vst [vmem:[%s11 + $0x90] sm:$0xff] %v587
  %1777 = vst [vmem:[%s11 + $0x98] sm:$0xff] %v592
  %1778 = vst [vmem:[%s11 + $0xa0] sm:$0xff] %v597
  %1779 = vst [vmem:[%s11 + $0xa8] sm:$0xff] %v602
  %1780 = vst [vmem:[%s11 + $0xb0] sm:$0xff] %v607
  %1781 = vst [vmem:[%s11 + $0xb8] sm:$0xff] %v612
  %1782 = vst [vmem:[%s11 + $0xc0] sm:$0xff] %v617
  %1783 = vst [vmem:[%s11 + $0xc8] sm:$0xff] %v622
  %1784 = vst [vmem:[%s11 + $0xd0] sm:$0xff] %v627
  %1785 = vst [vmem:[%s11 + $0xd8] sm:$0xff] %v632
  %1786 = vst [vmem:[%s11 + $0xe0] sm:$0xff] %v637
  %1787 = vst [vmem:[%s11 + $0xe8] sm:$0xff] %v642
  %1788 = vst [vmem:[%s11 + $0xf0] sm:$0xff] %v647
  %1789 = vst [vmem:[%s11 + $0xf8] sm:$0xff] %v652
  // Predicated region
  $region42: #{_vae_forward_impl.1} parent=0 // pred_check
    _
  $region43: #{_vae_forward_impl.1} parent=0 // pred_check_branch
    %1791 = sbr.rel (0) target = $region45
  $region44: #{_vae_forward_impl.1} parent=0 // pred_region
    _
  $region45: #{_vae_forward_impl.1} parent=0 // pred_fallthru
    _
  // Predicated region
  $region46: #{_vae_forward_impl.1} parent=0 // pred_check
    _
  $region47: #{_vae_forward_impl.1} parent=0 // pred_check_branch
    %1793 = sbr.rel (0) target = $region49
  $region48: #{_vae_forward_impl.1} parent=0 // pred_region
    _
  $region49: #{_vae_forward_impl.1} parent=0 // pred_fallthru
    _
  // Predicated region
  $region50: #{_vae_forward_impl.1} parent=0 // pred_check
    _
  $region51: #{_vae_forward_impl.1} parent=0 // pred_check_branch
    %1795 = sbr.rel (0) target = $region53
  $region52: #{_vae_forward_impl.1} parent=0 // pred_region
    _
  $region53: #{_vae_forward_impl.1} parent=0 // pred_fallthru
    _
  // Predicated region
  $region54: #{_vae_forward_impl.1} parent=0 // pred_check
    _
  $region55: #{_vae_forward_impl.1} parent=0 // pred_check_branch
    %1797 = sbr.rel (0) target = $region57
  $region56: #{_vae_forward_impl.1} parent=0 // pred_region
    _
  $region57: #{_vae_forward_impl.1} parent=0 // pred_fallthru
    _

</llo_original>
